<compile_context>
chip_gen: v7x
topology: tpu7x:2x2x1
jax: 0.10.0
libtpu: 0.0.40
codegen_flags: <defaults>
</compile_context>

<pallas_src>
import functools

import jax
import jax.numpy as jnp
from jax import lax
from jax.experimental import pallas as pl
from jax.experimental.pallas import tpu as pltpu


def _round_up(x, m):
    return ((x + m - 1) // m) * m


@functools.lru_cache(maxsize=1)
def _vmem_limit_bytes():
    # 3/4 of physical VMEM (v7x: 64 MiB -> 48 MiB, v5e/v6e: 128 MiB -> 96 MiB).
    # Falls back to the compiler default if the query is unavailable.
    try:
        cap = int(pltpu.get_tpu_info().vmem_capacity_bytes)
    except Exception:
        return None
    if cap <= 0:
        return None
    return (3 * cap) // 4


def _compiler_params(dimension_semantics):
    kwargs = dict(dimension_semantics=dimension_semantics)
    lim = _vmem_limit_bytes()
    if lim is not None:
        kwargs["vmem_limit_bytes"] = lim
    return pltpu.CompilerParams(**kwargs)


# ---------------------------------------------------------------------------
# Kernel 1 (sr_ratio == 1): KV projection, computed ONCE per token
#   kv = x @ Wkv + bkv
# ---------------------------------------------------------------------------
def _kv_proj_kernel(x_ref, wkv_ref, bkv_ref, o_ref):
    kv = jnp.dot(x_ref[...], wkv_ref[...],
                 preferred_element_type=jnp.float32) + bkv_ref[...]
    o_ref[...] = kv.astype(o_ref.dtype)


def _kv_proj_pallas(x_rows, wkv, bkv, *, out_dtype, tile_r=512):
    R, C = x_rows.shape
    C2 = wkv.shape[1]
    tr = min(tile_r, _round_up(R, 8))
    r_pad = pl.cdiv(R, tr) * tr
    if r_pad != R:
        x_rows = jnp.pad(x_rows, ((0, r_pad - R), (0, 0)))
    out = pl.pallas_call(
        _kv_proj_kernel,
        out_shape=jax.ShapeDtypeStruct((r_pad, C2), out_dtype),
        grid_spec=pltpu.PrefetchScalarGridSpec(
            num_scalar_prefetch=0,
            grid=(r_pad // tr,),
            in_specs=[
                pl.BlockSpec((tr, C), lambda i: (i, 0)),   # token rows
                pl.BlockSpec((C, C2), lambda i: (0, 0)),   # Wkv (VMEM-resident)
                pl.BlockSpec((1, C2), lambda i: (0, 0)),   # bkv
            ],
            out_specs=pl.BlockSpec((tr, C2), lambda i: (i, 0)),
        ),
        compiler_params=_compiler_params(("parallel",)),
    )(x_rows, wkv, bkv)
    return out[:R] if r_pad != R else out


# ---------------------------------------------------------------------------
# Kernel 2 (sr_ratio > 1): Conv2d(k=s=sr) as im2col matmul + LayerNorm + Wkv,
# fused so the sub-sample path emits the (rows, 2C) K/V tensor directly.
# ---------------------------------------------------------------------------
def _sr_ln_kv_kernel(p_ref, wsr_ref, bsr_ref, g_ref, beta_ref,
                     wkv_ref, bkv_ref, o_ref, *, eps):
    y = jnp.dot(p_ref[...], wsr_ref[...],
                preferred_element_type=jnp.float32) + bsr_ref[...]
    mu = jnp.mean(y, axis=-1, keepdims=True)
    var = jnp.mean(jnp.square(y - mu), axis=-1, keepdims=True)
    y = (y - mu) * lax.rsqrt(var + eps)
    y = y * g_ref[...] + beta_ref[...]
    kv = jnp.dot(y.astype(wkv_ref.dtype), wkv_ref[...],
                 preferred_element_type=jnp.float32) + bkv_ref[...]
    o_ref[...] = kv.astype(o_ref.dtype)


def _sr_ln_kv_pallas(patches, w_sr_flat, b_sr, gamma, beta, wkv, bkv,
                     *, out_dtype, eps, tile_r=256):
    R, K = patches.shape
    C = w_sr_flat.shape[1]
    C2 = wkv.shape[1]
    tr = min(tile_r, _round_up(R, 8))
    r_pad = pl.cdiv(R, tr) * tr
    if r_pad != R:
        patches = jnp.pad(patches, ((0, r_pad - R), (0, 0)))
    out = pl.pallas_call(
        functools.partial(_sr_ln_kv_kernel, eps=eps),
        out_shape=jax.ShapeDtypeStruct((r_pad, C2), out_dtype),
        grid_spec=pltpu.PrefetchScalarGridSpec(
            num_scalar_prefetch=0,
            grid=(r_pad // tr,),
            in_specs=[
                pl.BlockSpec((tr, K), lambda i: (i, 0)),   # im2col patch rows
                pl.BlockSpec((K, C), lambda i: (0, 0)),    # flattened conv weight
                pl.BlockSpec((1, C), lambda i: (0, 0)),    # conv bias
                pl.BlockSpec((1, C), lambda i: (0, 0)),    # LN gamma
                pl.BlockSpec((1, C), lambda i: (0, 0)),    # LN beta
                pl.BlockSpec((C, C2), lambda i: (0, 0)),   # Wkv
                pl.BlockSpec((1, C2), lambda i: (0, 0)),   # bkv
            ],
            out_specs=pl.BlockSpec((tr, C2), lambda i: (i, 0)),
        ),
        compiler_params=_compiler_params(("parallel",)),
    )(patches, w_sr_flat, b_sr, gamma, beta, wkv, bkv)
    return out[:R] if r_pad != R else out


# ---------------------------------------------------------------------------
# Kernel 3: fused q projection + multi-head softmax attention + out projection
# (K/V precomputed; softmax scale pre-folded into Wq/bq).
# ---------------------------------------------------------------------------
def _gsa_attn_kernel(xq_ref, kv_ref, wq_ref, bq_ref, wproj_ref, bproj_ref,
                     o_ref, *, num_heads, head_dim, approx_recip):
    xq = xq_ref[...]                                  # (tq, C)  compute dtype
    kv = kv_ref[...]                                  # (n_kv, 2C) compute dtype
    cdt = kv.dtype
    C = wq_ref.shape[1]
    tq = xq.shape[0]

    q = jnp.dot(xq, wq_ref[...], preferred_element_type=jnp.float32) + bq_ref[...]
    q = q.astype(cdt)                                 # scale already in Wq / bq

    acc = jnp.zeros((tq, C), jnp.float32)
    for h in range(num_heads):                        # static unroll over heads
        lo = h * head_dim
        qh = q[:, lo:lo + head_dim]
        kh = kv[:, lo:lo + head_dim]
        vh = kv[:, C + lo:C + lo + head_dim]
        # scores (tq, n_kv): contract head_dim without an explicit transpose
        s = lax.dot_general(qh, kh, (((1,), (1,)), ((), ())),
                            preferred_element_type=jnp.float32)
        p = jnp.exp(s - jnp.max(s, axis=-1, keepdims=True))
        l = jnp.sum(p, axis=-1, keepdims=True)                    # (tq, 1)
        oh = jnp.dot(p.astype(cdt), vh, preferred_element_type=jnp.float32)
        # Deferred softmax normalization: scale the small (tq, hd) result with
        # an EUP reciprocal instead of dividing the (tq, n_kv) probabilities.
        oh = oh * pl.reciprocal(l, approx=approx_recip)
        # Fold the head-concat into the output projection.
        acc = acc + jnp.dot(oh.astype(cdt), wproj_ref[lo:lo + head_dim, :],
                            preferred_element_type=jnp.float32)
    o_ref[...] = (acc + bproj_ref[...]).astype(o_ref.dtype)       # proj_drop(0)=id


def global_subsample_attn_pallas(
        x, wq, bq, wkv, bkv, wproj, bproj, *,
        head_dim=32, sr_ratio=1,
        w_sr=None, b_sr=None, ln_gamma=None, ln_beta=None, ln_eps=1e-5,
        tile_q=256, kv_tile=512, compute_dtype=jnp.bfloat16):
    """x: (B, H, W, C) NHWC.  Linear weights in matmul form (in, out); biases
    (1, out).  w_sr is the Conv2d weight in OIHW = (C, C, sr, sr)."""
    B, H, W, C = x.shape
    assert C % head_dim == 0
    num_heads = C // head_dim
    scale = head_dim ** -0.5
    N = H * W
    out_dtype = x.dtype

    # Matmul operands in compute_dtype (bf16 by default -> full-rate MXU,
    # halved DMA bytes); accumulation stays f32 in-kernel.  Biases stay f32.
    x_c = x.astype(compute_dtype)
    wq_c = (wq * scale).astype(compute_dtype)         # fold softmax scale into Wq
    bq_c = (bq * scale).astype(jnp.float32)           # ... and into bq
    wkv_c = wkv.astype(compute_dtype)
    wproj_c = wproj.astype(compute_dtype)
    bkv_c = bkv.astype(jnp.float32)
    bproj_c = bproj.astype(jnp.float32)

    x_q = x_c.reshape(B, N, C)                # free, contiguous reshape of NHWC

    # ---- K/V tensor: computed ONCE per token (hoisted out of the attention
    # ---- kernel, which previously recomputed it per query tile).
    if sr_ratio > 1:
        # VALID conv with kernel == stride: crop then non-overlapping sr x sr
        # patches (im2col), matching PyTorch.
        Hc, Wc = (H // sr_ratio) * sr_ratio, (W // sr_ratio) * sr_ratio
        Hk, Wk = Hc // sr_ratio, Wc // sr_ratio
        n_kv = Hk * Wk
        K = sr_ratio * sr_ratio * C
        xc = x_c[:, :Hc, :Wc, :]
        patches = xc.reshape(B, Hk, sr_ratio, Wk, sr_ratio, C)
        patches = jnp.transpose(patches, (0, 1, 3, 2, 4, 5)).reshape(B * n_kv, K)
        # TODO(synk): replace this wrapper-side im2col transpose with sr*sr
        # in-kernel strided-slice (C,C) matmuls to avoid the extra HBM copy.
        w_sr_flat = jnp.transpose(w_sr, (2, 3, 1, 0)).reshape(K, C).astype(compute_dtype)
        kv = _sr_ln_kv_pallas(
            patches, w_sr_flat,
            b_sr.reshape(1, C).astype(jnp.float32),
            ln_gamma.astype(jnp.float32), ln_beta.astype(jnp.float32),
            wkv_c, bkv_c, out_dtype=compute_dtype, eps=ln_eps)
    else:
        n_kv = N
        kv = _kv_proj_pallas(x_q.reshape(B * N, C), wkv_c, bkv_c,
                             out_dtype=compute_dtype, tile_r=kv_tile)
    kv = kv.reshape(B, n_kv, 2 * C)

    # ---- fused q-proj + attention + out-proj over query tiles.
    tq = min(tile_q, _round_up(N, 8))
    n_pad = pl.cdiv(N, tq) * tq
    if n_pad != N:
        x_q = jnp.pad(x_q, ((0, 0), (0, n_pad - N), (0, 0)))

    # TODO(synk): for very large n_kv on v7x (64 MiB VMEM), add a kv grid axis
    # with online-softmax (flash-style m/l/acc scratch) instead of holding the
    # whole (n_kv, 2C) block resident.
    kernel = functools.partial(
        _gsa_attn_kernel, num_heads=num_heads, head_dim=head_dim,
        approx_recip=(compute_dtype != jnp.float32))
    out = pl.pallas_call(
        kernel,
        out_shape=jax.ShapeDtypeStruct((B, n_pad, C), out_dtype),
        grid_spec=pltpu.PrefetchScalarGridSpec(
            num_scalar_prefetch=0,
            grid=(B, n_pad // tq),
            in_specs=[
                pl.BlockSpec((None, tq, C), lambda b, i: (b, i, 0)),        # queries
                pl.BlockSpec((None, n_kv, 2 * C), lambda b, i: (b, 0, 0)),  # K/V (per batch)
                pl.BlockSpec((C, C), lambda b, i: (0, 0)),                  # Wq (scaled)
                pl.BlockSpec((1, C), lambda b, i: (0, 0)),                  # bq (scaled)
                pl.BlockSpec((C, C), lambda b, i: (0, 0)),                  # Wproj
                pl.BlockSpec((1, C), lambda b, i: (0, 0)),                  # bproj
            ],
            out_specs=pl.BlockSpec((None, tq, C), lambda b, i: (b, i, 0)),
        ),
        compiler_params=_compiler_params(("parallel", "parallel")),
    )(x_q, kv, wq_c, bq_c, wproj_c, bproj_c)

    if n_pad != N:
        out = out[:, :N, :]
    return out.reshape(B, H, W, C)


# ---------------------------------------------------------------------------
# Pure-JAX reference (mirrors the PyTorch forward exactly, f32)
# ---------------------------------------------------------------------------
def gsa_reference(x, wq, bq, wkv, bkv, wproj, bproj, *, head_dim, sr_ratio=1,
                  w_sr=None, b_sr=None, ln_gamma=None, ln_beta=None, ln_eps=1e-5):
    B, H, W, C = x.shape
    nh = C // head_dim
    scale = head_dim ** -0.5
    N = H * W
    xt = x.reshape(B, N, C)

    q = xt @ wq + bq
    q = q.reshape(B, N, nh, head_dim).transpose(0, 2, 1, 3)      # (B, nh, N, hd)

    if sr_ratio > 1:
        xc = jnp.transpose(x, (0, 3, 1, 2))                      # NCHW
        y = lax.conv_general_dilated(
            xc, w_sr, window_strides=(sr_ratio, sr_ratio), padding="VALID",
            dimension_numbers=("NCHW", "OIHW", "NCHW"))
        y = y + b_sr.reshape(1, C, 1, 1)
        y = y.reshape(B, C, -1).transpose(0, 2, 1)               # (B, N_kv, C)
        mu = y.mean(-1, keepdims=True)
        var = ((y - mu) ** 2).mean(-1, keepdims=True)
        xkv = (y - mu) / jnp.sqrt(var + ln_eps) * ln_gamma[0] + ln_beta[0]
    else:
        xkv = xt

    kv = xkv @ wkv + bkv
    M = kv.shape[1]
    kv = kv.reshape(B, M, 2, nh, head_dim).transpose(2, 0, 3, 1, 4)
    k, v = kv[0], kv[1]                                          # (B, nh, M, hd)

    attn = (q * scale) @ jnp.swapaxes(k, -2, -1)
    attn = jax.nn.softmax(attn, axis=-1)
    o = attn @ v                                                 # (B, nh, N, hd)
    o = jnp.swapaxes(o, 1, 2).reshape(B, N, C)
    o = o @ wproj + bproj
    return o.reshape(B, H, W, C)


if __name__ == "__main__":
    # Full-precision reference matmuls so the f32 validation is apples-to-apples.
    jax.config.update("jax_default_matmul_precision", "highest")

    B, H, W = 2, 16, 16
    head_dim = 32
    C = 128                      # dim; num_heads = 4; lane-dense output (C % 128 == 0)
    sr = 2

    key = jax.random.PRNGKey(0)
    ks = jax.random.split(key, 11)
    x = jax.random.normal(ks[0], (B, H, W, C), dtype=jnp.float32)

    wq = jax.random.normal(ks[1], (C, C), jnp.float32) * 0.1
    bq = jax.random.normal(ks[2], (1, C), jnp.float32) * 0.1
    wkv = jax.random.normal(ks[3], (C, 2 * C), jnp.float32) * 0.1
    bkv = jax.random.normal(ks[4], (1, 2 * C), jnp.float32) * 0.1
    wproj = jax.random.normal(ks[5], (C, C), jnp.float32) * 0.1
    bproj = jax.random.normal(ks[6], (1, C), jnp.float32) * 0.1

    # sr_ratio>1 extras: Conv2d(C, C, kernel=stride=sr) weight (OIHW) + LayerNorm affine.
    w_sr = jax.random.normal(ks[7], (C, C, sr, sr), jnp.float32) * 0.05
    b_sr = jax.random.normal(ks[8], (C,), jnp.float32) * 0.1
    ln_gamma = 1.0 + 0.1 * jax.random.normal(ks[9], (1, C), jnp.float32)
    ln_beta = 0.1 * jax.random.normal(ks[10], (1, C), jnp.float32)

    sr_kwargs = dict(w_sr=w_sr, b_sr=b_sr, ln_gamma=ln_gamma, ln_beta=ln_beta)

    # 1) f32 compute mode: tight numerical check of the module semantics.
    for sr_ratio, extra in ((1, {}), (sr, sr_kwargs)):
        out = global_subsample_attn_pallas(
            x, wq, bq, wkv, bkv, wproj, bproj, head_dim=head_dim,
            sr_ratio=sr_ratio, compute_dtype=jnp.float32, **extra)
        out = jax.block_until_ready(out)
        ref = gsa_reference(x, wq, bq, wkv, bkv, wproj, bproj,
                            head_dim=head_dim, sr_ratio=sr_ratio, **extra)
        assert out.shape == (B, H, W, C)
        assert jnp.allclose(out, ref, atol=1e-4, rtol=1e-4), \
            f"f32 mismatch (sr_ratio={sr_ratio})"

    # 2) Default bf16 performance path (bf16 operands, f32 accumulation,
    #    approximate softmax reciprocal) -> looser tolerance vs f32 reference.
    for sr_ratio, extra in ((1, {}), (sr, sr_kwargs)):
        out = global_subsample_attn_pallas(
            x, wq, bq, wkv, bkv, wproj, bproj, head_dim=head_dim,
            sr_ratio=sr_ratio, **extra)
        out = jax.block_until_ready(out)
        ref = gsa_reference(x, wq, bq, wkv, bkv, wproj, bproj,
                            head_dim=head_dim, sr_ratio=sr_ratio, **extra)
        assert out.shape == (B, H, W, C)
        assert jnp.allclose(out.astype(jnp.float32), ref, atol=7.5e-2, rtol=5e-2), \
            f"bf16 mismatch (sr_ratio={sr_ratio})"

    print("KERNEL_OK")
</pallas_src>

<mosaic_0001>
module attributes {stable_mosaic.version = 11 : i64} {
  func.func @_kv_proj_kernel(%arg0: i32, %arg1: memref<512x128xf32, #tpu.memory_space<vmem>>, %arg2: memref<128x256xf32, #tpu.memory_space<vmem>>, %arg3: memref<1x256xf32, #tpu.memory_space<vmem>>, %arg4: memref<512x256xf32, #tpu.memory_space<vmem>>) attributes {dimension_semantics = [#tpu.dimension_semantics<parallel>], iteration_bounds = array<i64: 1>, scalar_prefetch = 0 : i64, scratch_operands = 0 : i64, tpu.core_type = #tpu.core_type<tc>, window_params = [{transform_indices = @transform_0, window_bounds = array<i64: 512, 128>}, {pipeline_mode = #tpu.pipeline_mode<synchronous>, transform_indices = @transform_1, window_bounds = array<i64: 128, 256>}, {pipeline_mode = #tpu.pipeline_mode<synchronous>, transform_indices = @transform_2, window_bounds = array<i64: 1, 256>}, {transform_indices = @transform_3, window_bounds = array<i64: 512, 256>}]} {
    %c0 = arith.constant 0 : index
    %c0_0 = arith.constant 0 : index
    %0 = vector.load %arg1[%c0, %c0_0] : memref<512x128xf32, #tpu.memory_space<vmem>>, vector<512x128xf32>
    %c0_1 = arith.constant 0 : index
    %c0_2 = arith.constant 0 : index
    %1 = vector.load %arg2[%c0_1, %c0_2] : memref<128x256xf32, #tpu.memory_space<vmem>>, vector<128x256xf32>
    %cst = arith.constant dense<0.000000e+00> : vector<512x256xf32>
    %2 = tpu.matmul %0, %1, %cst {dimension_numbers = #tpu.dot_dimension_numbers<[1], [0], [0], [1], [0, 0, 1, 1], [], []>, precision = #tpu.contract_precision<fp32>} : vector<512x128xf32>, vector<128x256xf32>, vector<512x256xf32> -> vector<512x256xf32>
    %c0_3 = arith.constant 0 : index
    %c0_4 = arith.constant 0 : index
    %3 = vector.load %arg3[%c0_3, %c0_4] : memref<1x256xf32, #tpu.memory_space<vmem>>, vector<1x256xf32>
    %4 = vector.broadcast %3 : vector<1x256xf32> to vector<512x256xf32>
    %5 = arith.addf %2, %4 : vector<512x256xf32>
    %c0_5 = arith.constant 0 : index
    %c0_6 = arith.constant 0 : index
    %6 = vector.load %arg4[%c0_5, %c0_6] : memref<512x256xf32, #tpu.memory_space<vmem>>, vector<512x256xf32>
    tpu.vector_store %arg4[%c0_5, %c0_6], %5 {strides = array<i32>} : memref<512x256xf32, #tpu.memory_space<vmem>>, vector<512x256xf32>,
    return
  }
  func.func @transform_0(%arg0: i32) -> (i32, i32) {
    %c0_i32 = arith.constant 0 : i32
    %c0_i32_0 = arith.constant 0 : i32
    return %arg0, %c0_i32 : i32, i32
  }
  func.func @transform_1(%arg0: i32) -> (i32, i32) {
    %c0_i32 = arith.constant 0 : i32
    %c0_i32_0 = arith.constant 0 : i32
    %c0_i32_1 = arith.constant 0 : i32
    return %c0_i32, %c0_i32_0 : i32, i32
  }
  func.func @transform_2(%arg0: i32) -> (i32, i32) {
    %c0_i32 = arith.constant 0 : i32
    %c0_i32_0 = arith.constant 0 : i32
    %c0_i32_1 = arith.constant 0 : i32
    return %c0_i32, %c0_i32_0 : i32, i32
  }
  func.func @transform_3(%arg0: i32) -> (i32, i32) {
    %c0_i32 = arith.constant 0 : i32
    %c0_i32_0 = arith.constant 0 : i32
    return %arg0, %c0_i32 : i32, i32
  }
}

</mosaic_0001>

<llo_original>
// kernel: tpu_custom_call.1
$region0: #{tpu_custom_call.1}
  #allocation0 [shape = 'u32[]', space=smem, size = 0x4, offset = 0x4, fixed_abs, tag = 'smem constant byte address 0x4 - core index']
  #allocation1 [shape = 'u32[144,128]{1,0:T(1,128)}', space=vmem, size = 0x12000, scoped, tag = 'internal scratch']
  %s0 = inlined_call_operand.hbm [shape: f32[512,128], index: 0, kind: input, shape index: {}]
  %s1 = inlined_call_operand.hbm [shape: f32[128,256], index: 1, kind: input, shape index: {}]
  %s2 = inlined_call_operand.vmem [shape: f32[1,256], index: 2, kind: input, shape index: {}]
  %s3 = inlined_call_operand.hbm [shape: f32[512,256], index: 3, kind: output, shape index: {}]
  %s4 = sld [smem:[#allocation0]]
  $region30: #{tpu_custom_call.1} parent=0
    _
  %s6 = ssub.s32 1, %s4
  %s7 = scalar_select 0, %s6, %s4
  $region1: #{tpu_custom_call.1} parent=0
    #allocation2 [shape = 'u8[262144]{0}', space=vmem, size = 0x40000, scoped, tag = 'input window, operand 0, single buffered']
    #allocation3 [shape = 's32[1]{0}', space=sflag, size = 0x4, scoped, tag = 'scoped memory for tpu_custom_call.1']
    #allocation4 [shape = 's32[1]{0}', space=sflag, size = 0x4, scoped, tag = 'scoped memory for tpu_custom_call.1']
    #allocation5 [shape = 'u8[131072]{0}', space=vmem, size = 0x20000, scoped, tag = 'input window, operand 1, single buffered']
    #allocation6 [shape = 's32[1]{0}', space=sflag, size = 0x4, scoped, tag = 'scoped memory for tpu_custom_call.1']
    #allocation7 [shape = 'u8[524288]{0}', space=vmem, size = 0x80000, scoped, tag = 'output window, operand 0, single buffered']
    %8 = vsyncpa [#allocation3], 0
    %9 = vsyncpa [#allocation6], 0
    %10 = vsyncpa [#allocation4], 0
    // Predicated region
    $region2: #{tpu_custom_call.1} parent=1 // pred_check
      _
    $region3: #{tpu_custom_call.1} parent=1 // pred_check_branch
      %12 = sbr.rel (0) target = $region5
    $region4: #{tpu_custom_call.1} parent=1 // pred_region
      %s14 = ssub.s32 8192, 8192
      %15 = vsyncadd [#allocation3], %s14
      %s16 = sshll.u32 [#allocation2], 4
      %s17 = int_to_ptr.vmem [resolvable:$true] %s16
      %22 = dma.hbm_to_vmem [thread:$0]  %s0, 8192, %s17, [#allocation3], 128, 128, 8
    $region5: #{tpu_custom_call.1} parent=1 // pred_fallthru
      _
    // Predicated region
    $region6: #{tpu_custom_call.1} parent=1 // pred_check
      _
    $region7: #{tpu_custom_call.1} parent=1 // pred_check_branch
      %24 = sbr.rel (0) target = $region9
    $region8: #{tpu_custom_call.1} parent=1 // pred_region
      %s26 = ssub.s32 4096, 4096
      %27 = vsyncadd [#allocation6], %s26
      %s28 = sshll.u32 [#allocation5], 4
      %s29 = int_to_ptr.vmem [resolvable:$true] %s28
      %34 = dma.hbm_to_vmem [thread:$0]  %s1, 4096, %s29, [#allocation6], 256, 256, 16
    $region9: #{tpu_custom_call.1} parent=1 // pred_fallthru
      _
    // Predicated region
    $region10: #{tpu_custom_call.1} parent=1 // pred_check
      _
    $region11: #{tpu_custom_call.1} parent=1 // pred_check_branch
      %36 = sbr.rel (0) target = $region13
    $region12: #{tpu_custom_call.1} parent=1 // pred_region
      _
    $region13: #{tpu_custom_call.1} parent=1 // pred_fallthru
      _
    // Predicated region
    $region14: #{tpu_custom_call.1} parent=1 // pred_check
      _
    $region15: #{tpu_custom_call.1} parent=1 // pred_check_branch
      %38 = sbr.rel (0) target = $region17
    $region16: #{tpu_custom_call.1} parent=1 // pred_region
      %39 = dma.done [#allocation3], 8192
    $region17: #{tpu_custom_call.1} parent=1 // pred_fallthru
      _
    // Predicated region
    $region18: #{tpu_custom_call.1} parent=1 // pred_check
      _
    $region19: #{tpu_custom_call.1} parent=1 // pred_check_branch
      %41 = sbr.rel (0) target = $region21
    $region20: #{tpu_custom_call.1} parent=1 // pred_region
      %42 = dma.done [#allocation6], 4096
    $region21: #{tpu_custom_call.1} parent=1 // pred_fallthru
      _
    %v43 = vld [vmem:[#allocation2] sm:$0xff]
    %v44 = vld [vmem:[#allocation2 + $0x8] sm:$0xff]
    %v45 = vld [vmem:[#allocation2 + $0x10] sm:$0xff]
    %v46 = vld [vmem:[#allocation2 + $0x18] sm:$0xff]
    %v47 = vld [vmem:[#allocation2 + $0x20] sm:$0xff]
    %v48 = vld [vmem:[#allocation2 + $0x28] sm:$0xff]
    %v49 = vld [vmem:[#allocation2 + $0x30] sm:$0xff]
    %v50 = vld [vmem:[#allocation2 + $0x38] sm:$0xff]
    %v51 = vld [vmem:[#allocation2 + $0x40] sm:$0xff]
    %v52 = vld [vmem:[#allocation2 + $0x48] sm:$0xff]
    %v53 = vld [vmem:[#allocation2 + $0x50] sm:$0xff]
    %v54 = vld [vmem:[#allocation2 + $0x58] sm:$0xff]
    %v55 = vld [vmem:[#allocation2 + $0x60] sm:$0xff]
    %v56 = vld [vmem:[#allocation2 + $0x68] sm:$0xff]
    %v57 = vld [vmem:[#allocation2 + $0x70] sm:$0xff]
    %v58 = vld [vmem:[#allocation2 + $0x78] sm:$0xff]
    %v59 = vld [vmem:[#allocation2 + $0x80] sm:$0xff]
    %v60 = vld [vmem:[#allocation2 + $0x88] sm:$0xff]
    %v61 = vld [vmem:[#allocation2 + $0x90] sm:$0xff]
    %v62 = vld [vmem:[#allocation2 + $0x98] sm:$0xff]
    %v63 = vld [vmem:[#allocation2 + $0xa0] sm:$0xff]
    %v64 = vld [vmem:[#allocation2 + $0xa8] sm:$0xff]
    %v65 = vld [vmem:[#allocation2 + $0xb0] sm:$0xff]
    %v66 = vld [vmem:[#allocation2 + $0xb8] sm:$0xff]
    %v67 = vld [vmem:[#allocation2 + $0xc0] sm:$0xff]
    %v68 = vld [vmem:[#allocation2 + $0xc8] sm:$0xff]
    %v69 = vld [vmem:[#allocation2 + $0xd0] sm:$0xff]
    %v70 = vld [vmem:[#allocation2 + $0xd8] sm:$0xff]
    %v71 = vld [vmem:[#allocation2 + $0xe0] sm:$0xff]
    %v72 = vld [vmem:[#allocation2 + $0xe8] sm:$0xff]
    %v73 = vld [vmem:[#allocation2 + $0xf0] sm:$0xff]
    %v74 = vld [vmem:[#allocation2 + $0xf8] sm:$0xff]
    %v75 = vld [vmem:[#allocation2 + $0x100] sm:$0xff]
    %v76 = vld [vmem:[#allocation2 + $0x108] sm:$0xff]
    %v77 = vld [vmem:[#allocation2 + $0x110] sm:$0xff]
    %v78 = vld [vmem:[#allocation2 + $0x118] sm:$0xff]
    %v79 = vld [vmem:[#allocation2 + $0x120] sm:$0xff]
    %v80 = vld [vmem:[#allocation2 + $0x128] sm:$0xff]
    %v81 = vld [vmem:[#allocation2 + $0x130] sm:$0xff]
    %v82 = vld [vmem:[#allocation2 + $0x138] sm:$0xff]
    %v83 = vld [vmem:[#allocation2 + $0x140] sm:$0xff]
    %v84 = vld [vmem:[#allocation2 + $0x148] sm:$0xff]
    %v85 = vld [vmem:[#allocation2 + $0x150] sm:$0xff]
    %v86 = vld [vmem:[#allocation2 + $0x158] sm:$0xff]
    %v87 = vld [vmem:[#allocation2 + $0x160] sm:$0xff]
    %v88 = vld [vmem:[#allocation2 + $0x168] sm:$0xff]
    %v89 = vld [vmem:[#allocation2 + $0x170] sm:$0xff]
    %v90 = vld [vmem:[#allocation2 + $0x178] sm:$0xff]
    %v91 = vld [vmem:[#allocation2 + $0x180] sm:$0xff]
    %v92 = vld [vmem:[#allocation2 + $0x188] sm:$0xff]
    %v93 = vld [vmem:[#allocation2 + $0x190] sm:$0xff]
    %v94 = vld [vmem:[#allocation2 + $0x198] sm:$0xff]
    %v95 = vld [vmem:[#allocation2 + $0x1a0] sm:$0xff]
    %v96 = vld [vmem:[#allocation2 + $0x1a8] sm:$0xff]
    %v97 = vld [vmem:[#allocation2 + $0x1b0] sm:$0xff]
    %v98 = vld [vmem:[#allocation2 + $0x1b8] sm:$0xff]
    %v99 = vld [vmem:[#allocation2 + $0x1c0] sm:$0xff]
    %v100 = vld [vmem:[#allocation2 + $0x1c8] sm:$0xff]
    %v101 = vld [vmem:[#allocation2 + $0x1d0] sm:$0xff]
    %v102 = vld [vmem:[#allocation2 + $0x1d8] sm:$0xff]
    %v103 = vld [vmem:[#allocation2 + $0x1e0] sm:$0xff]
    %v104 = vld [vmem:[#allocation2 + $0x1e8] sm:$0xff]
    %v105 = vld [vmem:[#allocation2 + $0x1f0] sm:$0xff]
    %v106 = vld [vmem:[#allocation2 + $0x1f8] sm:$0xff]
    %v107 = vld [vmem:[#allocation5] sm:$0xff]
    %v108 = vld [vmem:[#allocation5 + $0x8] sm:$0xff]
    %v109 = vld [vmem:[#allocation5 + $0x10] sm:$0xff]
    %v110 = vld [vmem:[#allocation5 + $0x18] sm:$0xff]
    %v111 = vld [vmem:[#allocation5 + $0x20] sm:$0xff]
    %v112 = vld [vmem:[#allocation5 + $0x28] sm:$0xff]
    %v113 = vld [vmem:[#allocation5 + $0x30] sm:$0xff]
    %v114 = vld [vmem:[#allocation5 + $0x38] sm:$0xff]
    %v115 = vld [vmem:[#allocation5 + $0x40] sm:$0xff]
    %v116 = vld [vmem:[#allocation5 + $0x48] sm:$0xff]
    %v117 = vld [vmem:[#allocation5 + $0x50] sm:$0xff]
    %v118 = vld [vmem:[#allocation5 + $0x58] sm:$0xff]
    %v119 = vld [vmem:[#allocation5 + $0x60] sm:$0xff]
    %v120 = vld [vmem:[#allocation5 + $0x68] sm:$0xff]
    %v121 = vld [vmem:[#allocation5 + $0x70] sm:$0xff]
    %v122 = vld [vmem:[#allocation5 + $0x78] sm:$0xff]
    %v123 = vld [vmem:[#allocation5 + $0x80] sm:$0xff]
    %v124 = vld [vmem:[#allocation5 + $0x88] sm:$0xff]
    %v125 = vld [vmem:[#allocation5 + $0x90] sm:$0xff]
    %v126 = vld [vmem:[#allocation5 + $0x98] sm:$0xff]
    %v127 = vld [vmem:[#allocation5 + $0xa0] sm:$0xff]
    %v128 = vld [vmem:[#allocation5 + $0xa8] sm:$0xff]
    %v129 = vld [vmem:[#allocation5 + $0xb0] sm:$0xff]
    %v130 = vld [vmem:[#allocation5 + $0xb8] sm:$0xff]
    %v131 = vld [vmem:[#allocation5 + $0xc0] sm:$0xff]
    %v132 = vld [vmem:[#allocation5 + $0xc8] sm:$0xff]
    %v133 = vld [vmem:[#allocation5 + $0xd0] sm:$0xff]
    %v134 = vld [vmem:[#allocation5 + $0xd8] sm:$0xff]
    %v135 = vld [vmem:[#allocation5 + $0xe0] sm:$0xff]
    %v136 = vld [vmem:[#allocation5 + $0xe8] sm:$0xff]
    %v137 = vld [vmem:[#allocation5 + $0xf0] sm:$0xff]
    %v138 = vld [vmem:[#allocation5 + $0xf8] sm:$0xff]
    %v139 = vld [vmem:[%s2] sm:$0x3]
    %v141 = vlaneseq
    %v142 = vshrl.u32 %v141, 7
    %v143 = vsub.s32 0, %v142
    %v144 = vrot.slane %v139, %v143
    %v145 = vlaneseq
    %v146 = vshrl.u32 %v145, 7
    %v147 = vsub.s32 1, %v146
    %v148 = vrot.slane %v139, %v147
    %v151 = vand.u32 %v108, 4294901760
    %152 = vmatprep.subr.mxu0 %v151
    %v153 = vand.u32 %v107, 4294901760
    %154 = vmatpush1.msra.mxu0 %v153
    %v155 = vand.u32 %v110, 4294901760
    %156 = vmatprep.subr.mxu0 %v155
    %v157 = vand.u32 %v109, 4294901760
    %158 = vmatpush1.msra.mxu0 %v157
    %v159 = vand.u32 %v112, 4294901760
    %160 = vmatprep.subr.mxu0 %v159
    %v161 = vand.u32 %v111, 4294901760
    %162 = vmatpush1.msra.mxu0 %v161
    %v163 = vand.u32 %v114, 4294901760
    %164 = vmatprep.subr.mxu0 %v163
    %v165 = vand.u32 %v113, 4294901760
    %166 = vmatpush1.msra.mxu0 %v165
    %v167 = vand.u32 %v116, 4294901760
    %168 = vmatprep.subr.mxu0 %v167
    %v169 = vand.u32 %v115, 4294901760
    %170 = vmatpush1.msra.mxu0 %v169
    %v171 = vand.u32 %v118, 4294901760
    %172 = vmatprep.subr.mxu0 %v171
    %v173 = vand.u32 %v117, 4294901760
    %174 = vmatpush1.msra.mxu0 %v173
    %v175 = vand.u32 %v120, 4294901760
    %176 = vmatprep.subr.mxu0 %v175
    %v177 = vand.u32 %v119, 4294901760
    %178 = vmatpush1.msra.mxu0 %v177
    %v179 = vand.u32 %v122, 4294901760
    %180 = vmatprep.subr.mxu0 %v179
    %v181 = vand.u32 %v121, 4294901760
    %182 = vmatpush1.msra.mxu0 %v181
    %v183 = vand.u32 %v124, 4294901760
    %184 = vmatprep.subr.mxu0 %v183
    %v185 = vand.u32 %v123, 4294901760
    %186 = vmatpush1.msra.mxu0 %v185
    %v187 = vand.u32 %v126, 4294901760
    %188 = vmatprep.subr.mxu0 %v187
    %v189 = vand.u32 %v125, 4294901760
    %190 = vmatpush1.msra.mxu0 %v189
    %v191 = vand.u32 %v128, 4294901760
    %192 = vmatprep.subr.mxu0 %v191
    %v193 = vand.u32 %v127, 4294901760
    %194 = vmatpush1.msra.mxu0 %v193
    %v195 = vand.u32 %v130, 4294901760
    %196 = vmatprep.subr.mxu0 %v195
    %v197 = vand.u32 %v129, 4294901760
    %198 = vmatpush1.msra.mxu0 %v197
    %v199 = vand.u32 %v132, 4294901760
    %200 = vmatprep.subr.mxu0 %v199
    %v201 = vand.u32 %v131, 4294901760
    %202 = vmatpush1.msra.mxu0 %v201
    %v203 = vand.u32 %v134, 4294901760
    %204 = vmatprep.subr.mxu0 %v203
    %v205 = vand.u32 %v133, 4294901760
    %206 = vmatpush1.msra.mxu0 %v205
    %v207 = vand.u32 %v136, 4294901760
    %208 = vmatprep.subr.mxu0 %v207
    %v209 = vand.u32 %v135, 4294901760
    %210 = vmatpush1.msra.mxu0 %v209
    %v211 = vand.u32 %v138, 4294901760
    %212 = vmatprep.subr.mxu0 %v211
    %v213 = vand.u32 %v137, 4294901760
    %214 = vmatpush1.msra.mxu0 %v213
    %215 = vmatprep.subr.mxu0 0.0
    %216 = vmatpush1.msra.mxu0 0.0
    %217 = vmatprep.subr.mxu0 0.0
    %218 = vmatpush1.msra.mxu0 0.0
    %219 = vmatprep.subr.mxu0 0.0
    %220 = vmatpush1.msra.mxu0 0.0
    %221 = vmatprep.subr.mxu0 0.0
    %222 = vmatpush1.msra.mxu0 0.0
    %223 = vmatprep.subr.mxu0 0.0
    %224 = vmatpush1.msra.mxu0 0.0
    %225 = vmatprep.subr.mxu0 0.0
    %226 = vmatpush1.msra.mxu0 0.0
    %227 = vmatprep.subr.mxu0 0.0
    %228 = vmatpush1.msra.mxu0 0.0
    %229 = vmatprep.subr.mxu0 0.0
    %230 = vmatpush1.msra.mxu0 0.0
    %231 = vmatprep.subr.mxu0 0.0
    %232 = vmatpush1.msra.mxu0 0.0
    %233 = vmatprep.subr.mxu0 0.0
    %234 = vmatpush1.msra.mxu0 0.0
    %235 = vmatprep.subr.mxu0 0.0
    %236 = vmatpush1.msra.mxu0 0.0
    %237 = vmatprep.subr.mxu0 0.0
    %238 = vmatpush1.msra.mxu0 0.0
    %239 = vmatprep.subr.mxu0 0.0
    %240 = vmatpush1.msra.mxu0 0.0
    %241 = vmatprep.subr.mxu0 0.0
    %242 = vmatpush1.msra.mxu0 0.0
    %243 = vmatprep.subr.mxu0 0.0
    %244 = vmatpush1.msra.mxu0 0.0
    %245 = vmatprep.subr.mxu0 0.0
    %246 = vmatpush1.msra.mxu0 0.0
    %247 = vmatprep.mubr.f32.mxu0 0.0
    %v248 = vand.u32 %v43, 4294901760
    %v249 = vsub.f32 %v43, %v248
    %v250 = vand.u32 %v249, 4294901760
    %v251 = vsub.f32 %v249, %v250
    %v252 = vand.u32 %v251, 4294901760
    %253 = vmatmul.mubr.f32.gmra.mrb[0].mxu0 %v252
    %v254 = vpop.f32.mrb[0].mxu0
    %v255 = vadd.f32 %v144, %v254
    %v256 = vpop.f32.mrb[0].mxu0
    %v257 = vadd.f32 %v148, %v256
    %258 = vmatprep.mubr.f32.mxu0 0.0
    %v259 = vand.u32 %v44, 4294901760
    %v260 = vsub.f32 %v44, %v259
    %v261 = vand.u32 %v260, 4294901760
    %v262 = vsub.f32 %v260, %v261
    %v263 = vand.u32 %v262, 4294901760
    %264 = vmatmul.mubr.f32.gmra.mrb[0].mxu0 %v263
    %v265 = vpop.f32.mrb[0].mxu0
    %v266 = vadd.f32 %v144, %v265
    %v267 = vpop.f32.mrb[0].mxu0
    %v268 = vadd.f32 %v148, %v267
    %269 = vmatprep.mubr.f32.mxu0 0.0
    %v270 = vand.u32 %v45, 4294901760
    %v271 = vsub.f32 %v45, %v270
    %v272 = vand.u32 %v271, 4294901760
    %v273 = vsub.f32 %v271, %v272
    %v274 = vand.u32 %v273, 4294901760
    %275 = vmatmul.mubr.f32.gmra.mrb[0].mxu0 %v274
    %v276 = vpop.f32.mrb[0].mxu0
    %v277 = vadd.f32 %v144, %v276
    %v278 = vpop.f32.mrb[0].mxu0
    %v279 = vadd.f32 %v148, %v278
    %280 = vmatprep.mubr.f32.mxu0 0.0
    %v281 = vand.u32 %v46, 4294901760
    %v282 = vsub.f32 %v46, %v281
    %v283 = vand.u32 %v282, 4294901760
    %v284 = vsub.f32 %v282, %v283
    %v285 = vand.u32 %v284, 4294901760
    %286 = vmatmul.mubr.f32.gmra.mrb[0].mxu0 %v285
    %v287 = vpop.f32.mrb[0].mxu0
    %v288 = vadd.f32 %v144, %v287
    %v289 = vpop.f32.mrb[0].mxu0
    %v290 = vadd.f32 %v148, %v289
    %291 = vmatprep.mubr.f32.mxu0 0.0
    %v292 = vand.u32 %v47, 4294901760
    %v293 = vsub.f32 %v47, %v292
    %v294 = vand.u32 %v293, 4294901760
    %v295 = vsub.f32 %v293, %v294
    %v296 = vand.u32 %v295, 4294901760
    %297 = vmatmul.mubr.f32.gmra.mrb[0].mxu0 %v296
    %v298 = vpop.f32.mrb[0].mxu0
    %v299 = vadd.f32 %v144, %v298
    %v300 = vpop.f32.mrb[0].mxu0
    %v301 = vadd.f32 %v148, %v300
    %302 = vmatprep.mubr.f32.mxu0 0.0
    %v303 = vand.u32 %v48, 4294901760
    %v304 = vsub.f32 %v48, %v303
    %v305 = vand.u32 %v304, 4294901760
    %v306 = vsub.f32 %v304, %v305
    %v307 = vand.u32 %v306, 4294901760
    %308 = vmatmul.mubr.f32.gmra.mrb[0].mxu0 %v307
    %v309 = vpop.f32.mrb[0].mxu0
    %v310 = vadd.f32 %v144, %v309
    %v311 = vpop.f32.mrb[0].mxu0
    %v312 = vadd.f32 %v148, %v311
    %313 = vmatprep.mubr.f32.mxu0 0.0
    %v314 = vand.u32 %v49, 4294901760
    %v315 = vsub.f32 %v49, %v314
    %v316 = vand.u32 %v315, 4294901760
    %v317 = vsub.f32 %v315, %v316
    %v318 = vand.u32 %v317, 4294901760
    %319 = vmatmul.mubr.f32.gmra.mrb[0].mxu0 %v318
    %v320 = vpop.f32.mrb[0].mxu0
    %v321 = vadd.f32 %v144, %v320
    %v322 = vpop.f32.mrb[0].mxu0
    %v323 = vadd.f32 %v148, %v322
    %324 = vmatprep.mubr.f32.mxu0 0.0
    %v325 = vand.u32 %v50, 4294901760
    %v326 = vsub.f32 %v50, %v325
    %v327 = vand.u32 %v326, 4294901760
    %v328 = vsub.f32 %v326, %v327
    %v329 = vand.u32 %v328, 4294901760
    %330 = vmatmul.mubr.f32.gmra.mrb[0].mxu0 %v329
    %v331 = vpop.f32.mrb[0].mxu0
    %v332 = vadd.f32 %v144, %v331
    %v333 = vpop.f32.mrb[0].mxu0
    %v334 = vadd.f32 %v148, %v333
    %335 = vmatprep.mubr.f32.mxu0 0.0
    %v336 = vand.u32 %v51, 4294901760
    %v337 = vsub.f32 %v51, %v336
    %v338 = vand.u32 %v337, 4294901760
    %v339 = vsub.f32 %v337, %v338
    %v340 = vand.u32 %v339, 4294901760
    %341 = vmatmul.mubr.f32.gmra.mrb[0].mxu0 %v340
    %v342 = vpop.f32.mrb[0].mxu0
    %v343 = vadd.f32 %v144, %v342
    %v344 = vpop.f32.mrb[0].mxu0
    %v345 = vadd.f32 %v148, %v344
    %346 = vmatprep.mubr.f32.mxu0 0.0
    %v347 = vand.u32 %v52, 4294901760
    %v348 = vsub.f32 %v52, %v347
    %v349 = vand.u32 %v348, 4294901760
    %v350 = vsub.f32 %v348, %v349
    %v351 = vand.u32 %v350, 4294901760
    %352 = vmatmul.mubr.f32.gmra.mrb[0].mxu0 %v351
    %v353 = vpop.f32.mrb[0].mxu0
    %v354 = vadd.f32 %v144, %v353
    %v355 = vpop.f32.mrb[0].mxu0
    %v356 = vadd.f32 %v148, %v355
    %357 = vmatprep.mubr.f32.mxu0 0.0
    %v358 = vand.u32 %v53, 4294901760
    %v359 = vsub.f32 %v53, %v358
    %v360 = vand.u32 %v359, 4294901760
    %v361 = vsub.f32 %v359, %v360
    %v362 = vand.u32 %v361, 4294901760
    %363 = vmatmul.mubr.f32.gmra.mrb[0].mxu0 %v362
    %v364 = vpop.f32.mrb[0].mxu0
    %v365 = vadd.f32 %v144, %v364
    %v366 = vpop.f32.mrb[0].mxu0
    %v367 = vadd.f32 %v148, %v366
    %368 = vmatprep.mubr.f32.mxu0 0.0
    %v369 = vand.u32 %v54, 4294901760
    %v370 = vsub.f32 %v54, %v369
    %v371 = vand.u32 %v370, 4294901760
    %v372 = vsub.f32 %v370, %v371
    %v373 = vand.u32 %v372, 4294901760
    %374 = vmatmul.mubr.f32.gmra.mrb[0].mxu0 %v373
    %v375 = vpop.f32.mrb[0].mxu0
    %v376 = vadd.f32 %v144, %v375
    %v377 = vpop.f32.mrb[0].mxu0
    %v378 = vadd.f32 %v148, %v377
    %379 = vmatprep.mubr.f32.mxu0 0.0
    %v380 = vand.u32 %v55, 4294901760
    %v381 = vsub.f32 %v55, %v380
    %v382 = vand.u32 %v381, 4294901760
    %v383 = vsub.f32 %v381, %v382
    %v384 = vand.u32 %v383, 4294901760
    %385 = vmatmul.mubr.f32.gmra.mrb[0].mxu0 %v384
    %v386 = vpop.f32.mrb[0].mxu0
    %v387 = vadd.f32 %v144, %v386
    %v388 = vpop.f32.mrb[0].mxu0
    %v389 = vadd.f32 %v148, %v388
    %390 = vmatprep.mubr.f32.mxu0 0.0
    %v391 = vand.u32 %v56, 4294901760
    %v392 = vsub.f32 %v56, %v391
    %v393 = vand.u32 %v392, 4294901760
    %v394 = vsub.f32 %v392, %v393
    %v395 = vand.u32 %v394, 4294901760
    %396 = vmatmul.mubr.f32.gmra.mrb[0].mxu0 %v395
    %v397 = vpop.f32.mrb[0].mxu0
    %v398 = vadd.f32 %v144, %v397
    %v399 = vpop.f32.mrb[0].mxu0
    %v400 = vadd.f32 %v148, %v399
    %401 = vmatprep.mubr.f32.mxu0 0.0
    %v402 = vand.u32 %v57, 4294901760
    %v403 = vsub.f32 %v57, %v402
    %v404 = vand.u32 %v403, 4294901760
    %v405 = vsub.f32 %v403, %v404
    %v406 = vand.u32 %v405, 4294901760
    %407 = vmatmul.mubr.f32.gmra.mrb[0].mxu0 %v406
    %v408 = vpop.f32.mrb[0].mxu0
    %v409 = vadd.f32 %v144, %v408
    %v410 = vpop.f32.mrb[0].mxu0
    %v411 = vadd.f32 %v148, %v410
    %412 = vmatprep.mubr.f32.mxu0 0.0
    %v413 = vand.u32 %v58, 4294901760
    %v414 = vsub.f32 %v58, %v413
    %v415 = vand.u32 %v414, 4294901760
    %v416 = vsub.f32 %v414, %v415
    %v417 = vand.u32 %v416, 4294901760
    %418 = vmatmul.mubr.f32.gmra.mrb[0].mxu0 %v417
    %v419 = vpop.f32.mrb[0].mxu0
    %v420 = vadd.f32 %v144, %v419
    %v421 = vpop.f32.mrb[0].mxu0
    %v422 = vadd.f32 %v148, %v421
    %423 = vmatprep.mubr.f32.mxu0 0.0
    %v424 = vand.u32 %v59, 4294901760
    %v425 = vsub.f32 %v59, %v424
    %v426 = vand.u32 %v425, 4294901760
    %v427 = vsub.f32 %v425, %v426
    %v428 = vand.u32 %v427, 4294901760
    %429 = vmatmul.mubr.f32.gmra.mrb[0].mxu0 %v428
    %v430 = vpop.f32.mrb[0].mxu0
    %v431 = vadd.f32 %v144, %v430
    %v432 = vpop.f32.mrb[0].mxu0
    %v433 = vadd.f32 %v148, %v432
    %434 = vmatprep.mubr.f32.mxu0 0.0
    %v435 = vand.u32 %v60, 4294901760
    %v436 = vsub.f32 %v60, %v435
    %v437 = vand.u32 %v436, 4294901760
    %v438 = vsub.f32 %v436, %v437
    %v439 = vand.u32 %v438, 4294901760
    %440 = vmatmul.mubr.f32.gmra.mrb[0].mxu0 %v439
    %v441 = vpop.f32.mrb[0].mxu0
    %v442 = vadd.f32 %v144, %v441
    %v443 = vpop.f32.mrb[0].mxu0
    %v444 = vadd.f32 %v148, %v443
    %445 = vmatprep.mubr.f32.mxu0 0.0
    %v446 = vand.u32 %v61, 4294901760
    %v447 = vsub.f32 %v61, %v446
    %v448 = vand.u32 %v447, 4294901760
    %v449 = vsub.f32 %v447, %v448
    %v450 = vand.u32 %v449, 4294901760
    %451 = vmatmul.mubr.f32.gmra.mrb[0].mxu0 %v450
    %v452 = vpop.f32.mrb[0].mxu0
    %v453 = vadd.f32 %v144, %v452
    %v454 = vpop.f32.mrb[0].mxu0
    %v455 = vadd.f32 %v148, %v454
    %456 = vmatprep.mubr.f32.mxu0 0.0
    %v457 = vand.u32 %v62, 4294901760
    %v458 = vsub.f32 %v62, %v457
    %v459 = vand.u32 %v458, 4294901760
    %v460 = vsub.f32 %v458, %v459
    %v461 = vand.u32 %v460, 4294901760
    %462 = vmatmul.mubr.f32.gmra.mrb[0].mxu0 %v461
    %v463 = vpop.f32.mrb[0].mxu0
    %v464 = vadd.f32 %v144, %v463
    %v465 = vpop.f32.mrb[0].mxu0
    %v466 = vadd.f32 %v148, %v465
    %467 = vmatprep.mubr.f32.mxu0 0.0
    %v468 = vand.u32 %v63, 4294901760
    %v469 = vsub.f32 %v63, %v468
    %v470 = vand.u32 %v469, 4294901760
    %v471 = vsub.f32 %v469, %v470
    %v472 = vand.u32 %v471, 4294901760
    %473 = vmatmul.mubr.f32.gmra.mrb[0].mxu0 %v472
    %v474 = vpop.f32.mrb[0].mxu0
    %v475 = vadd.f32 %v144, %v474
    %v476 = vpop.f32.mrb[0].mxu0
    %v477 = vadd.f32 %v148, %v476
    %478 = vmatprep.mubr.f32.mxu0 0.0
    %v479 = vand.u32 %v64, 4294901760
    %v480 = vsub.f32 %v64, %v479
    %v481 = vand.u32 %v480, 4294901760
    %v482 = vsub.f32 %v480, %v481
    %v483 = vand.u32 %v482, 4294901760
    %484 = vmatmul.mubr.f32.gmra.mrb[0].mxu0 %v483
    %v485 = vpop.f32.mrb[0].mxu0
    %v486 = vadd.f32 %v144, %v485
    %v487 = vpop.f32.mrb[0].mxu0
    %v488 = vadd.f32 %v148, %v487
    %489 = vmatprep.mubr.f32.mxu0 0.0
    %v490 = vand.u32 %v65, 4294901760
    %v491 = vsub.f32 %v65, %v490
    %v492 = vand.u32 %v491, 4294901760
    %v493 = vsub.f32 %v491, %v492
    %v494 = vand.u32 %v493, 4294901760
    %495 = vmatmul.mubr.f32.gmra.mrb[0].mxu0 %v494
    %v496 = vpop.f32.mrb[0].mxu0
    %v497 = vadd.f32 %v144, %v496
    %v498 = vpop.f32.mrb[0].mxu0
    %v499 = vadd.f32 %v148, %v498
    %500 = vmatprep.mubr.f32.mxu0 0.0
    %v501 = vand.u32 %v66, 4294901760
    %v502 = vsub.f32 %v66, %v501
    %v503 = vand.u32 %v502, 4294901760
    %v504 = vsub.f32 %v502, %v503
    %v505 = vand.u32 %v504, 4294901760
    %506 = vmatmul.mubr.f32.gmra.mrb[0].mxu0 %v505
    %v507 = vpop.f32.mrb[0].mxu0
    %v508 = vadd.f32 %v144, %v507
    %v509 = vpop.f32.mrb[0].mxu0
    %v510 = vadd.f32 %v148, %v509
    %511 = vmatprep.mubr.f32.mxu0 0.0
    %v512 = vand.u32 %v67, 4294901760
    %v513 = vsub.f32 %v67, %v512
    %v514 = vand.u32 %v513, 4294901760
    %v515 = vsub.f32 %v513, %v514
    %v516 = vand.u32 %v515, 4294901760
    %517 = vmatmul.mubr.f32.gmra.mrb[0].mxu0 %v516
    %v518 = vpop.f32.mrb[0].mxu0
    %v519 = vadd.f32 %v144, %v518
    %v520 = vpop.f32.mrb[0].mxu0
    %v521 = vadd.f32 %v148, %v520
    %522 = vmatprep.mubr.f32.mxu0 0.0
    %v523 = vand.u32 %v68, 4294901760
    %v524 = vsub.f32 %v68, %v523
    %v525 = vand.u32 %v524, 4294901760
    %v526 = vsub.f32 %v524, %v525
    %v527 = vand.u32 %v526, 4294901760
    %528 = vmatmul.mubr.f32.gmra.mrb[0].mxu0 %v527
    %v529 = vpop.f32.mrb[0].mxu0
    %v530 = vadd.f32 %v144, %v529
    %v531 = vpop.f32.mrb[0].mxu0
    %v532 = vadd.f32 %v148, %v531
    %533 = vmatprep.mubr.f32.mxu0 0.0
    %v534 = vand.u32 %v69, 4294901760
    %v535 = vsub.f32 %v69, %v534
    %v536 = vand.u32 %v535, 4294901760
    %v537 = vsub.f32 %v535, %v536
    %v538 = vand.u32 %v537, 4294901760
    %539 = vmatmul.mubr.f32.gmra.mrb[0].mxu0 %v538
    %v540 = vpop.f32.mrb[0].mxu0
    %v541 = vadd.f32 %v144, %v540
    %v542 = vpop.f32.mrb[0].mxu0
    %v543 = vadd.f32 %v148, %v542
    %544 = vmatprep.mubr.f32.mxu0 0.0
    %v545 = vand.u32 %v70, 4294901760
    %v546 = vsub.f32 %v70, %v545
    %v547 = vand.u32 %v546, 4294901760
    %v548 = vsub.f32 %v546, %v547
    %v549 = vand.u32 %v548, 4294901760
    %550 = vmatmul.mubr.f32.gmra.mrb[0].mxu0 %v549
    %v551 = vpop.f32.mrb[0].mxu0
    %v552 = vadd.f32 %v144, %v551
    %v553 = vpop.f32.mrb[0].mxu0
    %v554 = vadd.f32 %v148, %v553
    %555 = vmatprep.mubr.f32.mxu0 0.0
    %v556 = vand.u32 %v71, 4294901760
    %v557 = vsub.f32 %v71, %v556
    %v558 = vand.u32 %v557, 4294901760
    %v559 = vsub.f32 %v557, %v558
    %v560 = vand.u32 %v559, 4294901760
    %561 = vmatmul.mubr.f32.gmra.mrb[0].mxu0 %v560
    %v562 = vpop.f32.mrb[0].mxu0
    %v563 = vadd.f32 %v144, %v562
    %v564 = vpop.f32.mrb[0].mxu0
    %v565 = vadd.f32 %v148, %v564
    %566 = vmatprep.mubr.f32.mxu0 0.0
    %v567 = vand.u32 %v72, 4294901760
    %v568 = vsub.f32 %v72, %v567
    %v569 = vand.u32 %v568, 4294901760
    %v570 = vsub.f32 %v568, %v569
    %v571 = vand.u32 %v570, 4294901760
    %572 = vmatmul.mubr.f32.gmra.mrb[0].mxu0 %v571
    %v573 = vpop.f32.mrb[0].mxu0
    %v574 = vadd.f32 %v144, %v573
    %v575 = vpop.f32.mrb[0].mxu0
    %v576 = vadd.f32 %v148, %v575
    %577 = vmatprep.mubr.f32.mxu0 0.0
    %v578 = vand.u32 %v73, 4294901760
    %v579 = vsub.f32 %v73, %v578
    %v580 = vand.u32 %v579, 4294901760
    %v581 = vsub.f32 %v579, %v580
    %v582 = vand.u32 %v581, 4294901760
    %583 = vmatmul.mubr.f32.gmra.mrb[0].mxu0 %v582
    %v584 = vpop.f32.mrb[0].mxu0
    %v585 = vadd.f32 %v144, %v584
    %v586 = vpop.f32.mrb[0].mxu0
    %v587 = vadd.f32 %v148, %v586
    %588 = vmatprep.mubr.f32.mxu0 0.0
    %v589 = vand.u32 %v74, 4294901760
    %v590 = vsub.f32 %v74, %v589
    %v591 = vand.u32 %v590, 4294901760
    %v592 = vsub.f32 %v590, %v591
    %v593 = vand.u32 %v592, 4294901760
    %594 = vmatmul.mubr.f32.gmra.mrb[0].mxu0 %v593
    %v595 = vpop.f32.mrb[0].mxu0
    %v596 = vadd.f32 %v144, %v595
    %v597 = vpop.f32.mrb[0].mxu0
    %v598 = vadd.f32 %v148, %v597
    %599 = vmatprep.mubr.f32.mxu0 0.0
    %v600 = vand.u32 %v75, 4294901760
    %v601 = vsub.f32 %v75, %v600
    %v602 = vand.u32 %v601, 4294901760
    %v603 = vsub.f32 %v601, %v602
    %v604 = vand.u32 %v603, 4294901760
    %605 = vmatmul.mubr.f32.gmra.mrb[0].mxu0 %v604
    %v606 = vpop.f32.mrb[0].mxu0
    %v607 = vadd.f32 %v144, %v606
    %v608 = vpop.f32.mrb[0].mxu0
    %v609 = vadd.f32 %v148, %v608
    %610 = vmatprep.mubr.f32.mxu0 0.0
    %v611 = vand.u32 %v76, 4294901760
    %v612 = vsub.f32 %v76, %v611
    %v613 = vand.u32 %v612, 4294901760
    %v614 = vsub.f32 %v612, %v613
    %v615 = vand.u32 %v614, 4294901760
    %616 = vmatmul.mubr.f32.gmra.mrb[0].mxu0 %v615
    %v617 = vpop.f32.mrb[0].mxu0
    %v618 = vadd.f32 %v144, %v617
    %v619 = vpop.f32.mrb[0].mxu0
    %v620 = vadd.f32 %v148, %v619
    %621 = vmatprep.mubr.f32.mxu0 0.0
    %v622 = vand.u32 %v77, 4294901760
    %v623 = vsub.f32 %v77, %v622
    %v624 = vand.u32 %v623, 4294901760
    %v625 = vsub.f32 %v623, %v624
    %v626 = vand.u32 %v625, 4294901760
    %627 = vmatmul.mubr.f32.gmra.mrb[0].mxu0 %v626
    %v628 = vpop.f32.mrb[0].mxu0
    %v629 = vadd.f32 %v144, %v628
    %v630 = vpop.f32.mrb[0].mxu0
    %v631 = vadd.f32 %v148, %v630
    %632 = vmatprep.mubr.f32.mxu0 0.0
    %v633 = vand.u32 %v78, 4294901760
    %v634 = vsub.f32 %v78, %v633
    %v635 = vand.u32 %v634, 4294901760
    %v636 = vsub.f32 %v634, %v635
    %v637 = vand.u32 %v636, 4294901760
    %638 = vmatmul.mubr.f32.gmra.mrb[0].mxu0 %v637
    %v639 = vpop.f32.mrb[0].mxu0
    %v640 = vadd.f32 %v144, %v639
    %v641 = vpop.f32.mrb[0].mxu0
    %v642 = vadd.f32 %v148, %v641
    %643 = vmatprep.mubr.f32.mxu0 0.0
    %v644 = vand.u32 %v79, 4294901760
    %v645 = vsub.f32 %v79, %v644
    %v646 = vand.u32 %v645, 4294901760
    %v647 = vsub.f32 %v645, %v646
    %v648 = vand.u32 %v647, 4294901760
    %649 = vmatmul.mubr.f32.gmra.mrb[0].mxu0 %v648
    %v650 = vpop.f32.mrb[0].mxu0
    %v651 = vadd.f32 %v144, %v650
    %v652 = vpop.f32.mrb[0].mxu0
    %v653 = vadd.f32 %v148, %v652
    %654 = vmatprep.mubr.f32.mxu0 0.0
    %v655 = vand.u32 %v80, 4294901760
    %v656 = vsub.f32 %v80, %v655
    %v657 = vand.u32 %v656, 4294901760
    %v658 = vsub.f32 %v656, %v657
    %v659 = vand.u32 %v658, 4294901760
    %660 = vmatmul.mubr.f32.gmra.mrb[0].mxu0 %v659
    %v661 = vpop.f32.mrb[0].mxu0
    %v662 = vadd.f32 %v144, %v661
    %v663 = vpop.f32.mrb[0].mxu0
    %v664 = vadd.f32 %v148, %v663
    %665 = vmatprep.mubr.f32.mxu0 0.0
    %v666 = vand.u32 %v81, 4294901760
    %v667 = vsub.f32 %v81, %v666
    %v668 = vand.u32 %v667, 4294901760
    %v669 = vsub.f32 %v667, %v668
    %v670 = vand.u32 %v669, 4294901760
    %671 = vmatmul.mubr.f32.gmra.mrb[0].mxu0 %v670
    %v672 = vpop.f32.mrb[0].mxu0
    %v673 = vadd.f32 %v144, %v672
    %v674 = vpop.f32.mrb[0].mxu0
    %v675 = vadd.f32 %v148, %v674
    %676 = vmatprep.mubr.f32.mxu0 0.0
    %v677 = vand.u32 %v82, 4294901760
    %v678 = vsub.f32 %v82, %v677
    %v679 = vand.u32 %v678, 4294901760
    %v680 = vsub.f32 %v678, %v679
    %v681 = vand.u32 %v680, 4294901760
    %682 = vmatmul.mubr.f32.gmra.mrb[0].mxu0 %v681
    %v683 = vpop.f32.mrb[0].mxu0
    %v684 = vadd.f32 %v144, %v683
    %v685 = vpop.f32.mrb[0].mxu0
    %v686 = vadd.f32 %v148, %v685
    %687 = vmatprep.mubr.f32.mxu0 0.0
    %v688 = vand.u32 %v83, 4294901760
    %v689 = vsub.f32 %v83, %v688
    %v690 = vand.u32 %v689, 4294901760
    %v691 = vsub.f32 %v689, %v690
    %v692 = vand.u32 %v691, 4294901760
    %693 = vmatmul.mubr.f32.gmra.mrb[0].mxu0 %v692
    %v694 = vpop.f32.mrb[0].mxu0
    %v695 = vadd.f32 %v144, %v694
    %v696 = vpop.f32.mrb[0].mxu0
    %v697 = vadd.f32 %v148, %v696
    %698 = vmatprep.mubr.f32.mxu0 0.0
    %v699 = vand.u32 %v84, 4294901760
    %v700 = vsub.f32 %v84, %v699
    %v701 = vand.u32 %v700, 4294901760
    %v702 = vsub.f32 %v700, %v701
    %v703 = vand.u32 %v702, 4294901760
    %704 = vmatmul.mubr.f32.gmra.mrb[0].mxu0 %v703
    %v705 = vpop.f32.mrb[0].mxu0
    %v706 = vadd.f32 %v144, %v705
    %v707 = vpop.f32.mrb[0].mxu0
    %v708 = vadd.f32 %v148, %v707
    %709 = vmatprep.mubr.f32.mxu0 0.0
    %v710 = vand.u32 %v85, 4294901760
    %v711 = vsub.f32 %v85, %v710
    %v712 = vand.u32 %v711, 4294901760
    %v713 = vsub.f32 %v711, %v712
    %v714 = vand.u32 %v713, 4294901760
    %715 = vmatmul.mubr.f32.gmra.mrb[0].mxu0 %v714
    %v716 = vpop.f32.mrb[0].mxu0
    %v717 = vadd.f32 %v144, %v716
    %v718 = vpop.f32.mrb[0].mxu0
    %v719 = vadd.f32 %v148, %v718
    %720 = vmatprep.mubr.f32.mxu0 0.0
    %v721 = vand.u32 %v86, 4294901760
    %v722 = vsub.f32 %v86, %v721
    %v723 = vand.u32 %v722, 4294901760
    %v724 = vsub.f32 %v722, %v723
    %v725 = vand.u32 %v724, 4294901760
    %726 = vmatmul.mubr.f32.gmra.mrb[0].mxu0 %v725
    %v727 = vpop.f32.mrb[0].mxu0
    %v728 = vadd.f32 %v144, %v727
    %v729 = vpop.f32.mrb[0].mxu0
    %v730 = vadd.f32 %v148, %v729
    %731 = vmatprep.mubr.f32.mxu0 0.0
    %v732 = vand.u32 %v87, 4294901760
    %v733 = vsub.f32 %v87, %v732
    %v734 = vand.u32 %v733, 4294901760
    %v735 = vsub.f32 %v733, %v734
    %v736 = vand.u32 %v735, 4294901760
    %737 = vmatmul.mubr.f32.gmra.mrb[0].mxu0 %v736
    %v738 = vpop.f32.mrb[0].mxu0
    %v739 = vadd.f32 %v144, %v738
    %v740 = vpop.f32.mrb[0].mxu0
    %v741 = vadd.f32 %v148, %v740
    %742 = vmatprep.mubr.f32.mxu0 0.0
    %v743 = vand.u32 %v88, 4294901760
    %v744 = vsub.f32 %v88, %v743
    %v745 = vand.u32 %v744, 4294901760
    %v746 = vsub.f32 %v744, %v745
    %v747 = vand.u32 %v746, 4294901760
    %748 = vmatmul.mubr.f32.gmra.mrb[0].mxu0 %v747
    %v749 = vpop.f32.mrb[0].mxu0
    %v750 = vadd.f32 %v144, %v749
    %v751 = vpop.f32.mrb[0].mxu0
    %v752 = vadd.f32 %v148, %v751
    %753 = vmatprep.mubr.f32.mxu0 0.0
    %v754 = vand.u32 %v89, 4294901760
    %v755 = vsub.f32 %v89, %v754
    %v756 = vand.u32 %v755, 4294901760
    %v757 = vsub.f32 %v755, %v756
    %v758 = vand.u32 %v757, 4294901760
    %759 = vmatmul.mubr.f32.gmra.mrb[0].mxu0 %v758
    %v760 = vpop.f32.mrb[0].mxu0
    %v761 = vadd.f32 %v144, %v760
    %v762 = vpop.f32.mrb[0].mxu0
    %v763 = vadd.f32 %v148, %v762
    %764 = vmatprep.mubr.f32.mxu0 0.0
    %v765 = vand.u32 %v90, 4294901760
    %v766 = vsub.f32 %v90, %v765
    %v767 = vand.u32 %v766, 4294901760
    %v768 = vsub.f32 %v766, %v767
    %v769 = vand.u32 %v768, 4294901760
    %770 = vmatmul.mubr.f32.gmra.mrb[0].mxu0 %v769
    %v771 = vpop.f32.mrb[0].mxu0
    %v772 = vadd.f32 %v144, %v771
    %v773 = vpop.f32.mrb[0].mxu0
    %v774 = vadd.f32 %v148, %v773
    %775 = vmatprep.mubr.f32.mxu0 0.0
    %v776 = vand.u32 %v91, 4294901760
    %v777 = vsub.f32 %v91, %v776
    %v778 = vand.u32 %v777, 4294901760
    %v779 = vsub.f32 %v777, %v778
    %v780 = vand.u32 %v779, 4294901760
    %781 = vmatmul.mubr.f32.gmra.mrb[0].mxu0 %v780
    %v782 = vpop.f32.mrb[0].mxu0
    %v783 = vadd.f32 %v144, %v782
    %v784 = vpop.f32.mrb[0].mxu0
    %v785 = vadd.f32 %v148, %v784
    %786 = vmatprep.mubr.f32.mxu0 0.0
    %v787 = vand.u32 %v92, 4294901760
    %v788 = vsub.f32 %v92, %v787
    %v789 = vand.u32 %v788, 4294901760
    %v790 = vsub.f32 %v788, %v789
    %v791 = vand.u32 %v790, 4294901760
    %792 = vmatmul.mubr.f32.gmra.mrb[0].mxu0 %v791
    %v793 = vpop.f32.mrb[0].mxu0
    %v794 = vadd.f32 %v144, %v793
    %v795 = vpop.f32.mrb[0].mxu0
    %v796 = vadd.f32 %v148, %v795
    %797 = vmatprep.mubr.f32.mxu0 0.0
    %v798 = vand.u32 %v93, 4294901760
    %v799 = vsub.f32 %v93, %v798
    %v800 = vand.u32 %v799, 4294901760
    %v801 = vsub.f32 %v799, %v800
    %v802 = vand.u32 %v801, 4294901760
    %803 = vmatmul.mubr.f32.gmra.mrb[0].mxu0 %v802
    %v804 = vpop.f32.mrb[0].mxu0
    %v805 = vadd.f32 %v144, %v804
    %v806 = vpop.f32.mrb[0].mxu0
    %v807 = vadd.f32 %v148, %v806
    %808 = vmatprep.mubr.f32.mxu0 0.0
    %v809 = vand.u32 %v94, 4294901760
    %v810 = vsub.f32 %v94, %v809
    %v811 = vand.u32 %v810, 4294901760
    %v812 = vsub.f32 %v810, %v811
    %v813 = vand.u32 %v812, 4294901760
    %814 = vmatmul.mubr.f32.gmra.mrb[0].mxu0 %v813
    %v815 = vpop.f32.mrb[0].mxu0
    %v816 = vadd.f32 %v144, %v815
    %v817 = vpop.f32.mrb[0].mxu0
    %v818 = vadd.f32 %v148, %v817
    %819 = vmatprep.mubr.f32.mxu0 0.0
    %v820 = vand.u32 %v95, 4294901760
    %v821 = vsub.f32 %v95, %v820
    %v822 = vand.u32 %v821, 4294901760
    %v823 = vsub.f32 %v821, %v822
    %v824 = vand.u32 %v823, 4294901760
    %825 = vmatmul.mubr.f32.gmra.mrb[0].mxu0 %v824
    %v826 = vpop.f32.mrb[0].mxu0
    %v827 = vadd.f32 %v144, %v826
    %v828 = vpop.f32.mrb[0].mxu0
    %v829 = vadd.f32 %v148, %v828
    %830 = vmatprep.mubr.f32.mxu0 0.0
    %v831 = vand.u32 %v96, 4294901760
    %v832 = vsub.f32 %v96, %v831
    %v833 = vand.u32 %v832, 4294901760
    %v834 = vsub.f32 %v832, %v833
    %v835 = vand.u32 %v834, 4294901760
    %836 = vmatmul.mubr.f32.gmra.mrb[0].mxu0 %v835
    %v837 = vpop.f32.mrb[0].mxu0
    %v838 = vadd.f32 %v144, %v837
    %v839 = vpop.f32.mrb[0].mxu0
    %v840 = vadd.f32 %v148, %v839
    %841 = vmatprep.mubr.f32.mxu0 0.0
    %v842 = vand.u32 %v97, 4294901760
    %v843 = vsub.f32 %v97, %v842
    %v844 = vand.u32 %v843, 4294901760
    %v845 = vsub.f32 %v843, %v844
    %v846 = vand.u32 %v845, 4294901760
    %847 = vmatmul.mubr.f32.gmra.mrb[0].mxu0 %v846
    %v848 = vpop.f32.mrb[0].mxu0
    %v849 = vadd.f32 %v144, %v848
    %v850 = vpop.f32.mrb[0].mxu0
    %v851 = vadd.f32 %v148, %v850
    %852 = vmatprep.mubr.f32.mxu0 0.0
    %v853 = vand.u32 %v98, 4294901760
    %v854 = vsub.f32 %v98, %v853
    %v855 = vand.u32 %v854, 4294901760
    %v856 = vsub.f32 %v854, %v855
    %v857 = vand.u32 %v856, 4294901760
    %858 = vmatmul.mubr.f32.gmra.mrb[0].mxu0 %v857
    %v859 = vpop.f32.mrb[0].mxu0
    %v860 = vadd.f32 %v144, %v859
    %v861 = vpop.f32.mrb[0].mxu0
    %v862 = vadd.f32 %v148, %v861
    %863 = vmatprep.mubr.f32.mxu0 0.0
    %v864 = vand.u32 %v99, 4294901760
    %v865 = vsub.f32 %v99, %v864
    %v866 = vand.u32 %v865, 4294901760
    %v867 = vsub.f32 %v865, %v866
    %v868 = vand.u32 %v867, 4294901760
    %869 = vmatmul.mubr.f32.gmra.mrb[0].mxu0 %v868
    %v870 = vpop.f32.mrb[0].mxu0
    %v871 = vadd.f32 %v144, %v870
    %v872 = vpop.f32.mrb[0].mxu0
    %v873 = vadd.f32 %v148, %v872
    %874 = vmatprep.mubr.f32.mxu0 0.0
    %v875 = vand.u32 %v100, 4294901760
    %v876 = vsub.f32 %v100, %v875
    %v877 = vand.u32 %v876, 4294901760
    %v878 = vsub.f32 %v876, %v877
    %v879 = vand.u32 %v878, 4294901760
    %880 = vmatmul.mubr.f32.gmra.mrb[0].mxu0 %v879
    %v881 = vpop.f32.mrb[0].mxu0
    %v882 = vadd.f32 %v144, %v881
    %v883 = vpop.f32.mrb[0].mxu0
    %v884 = vadd.f32 %v148, %v883
    %885 = vmatprep.mubr.f32.mxu0 0.0
    %v886 = vand.u32 %v101, 4294901760
    %v887 = vsub.f32 %v101, %v886
    %v888 = vand.u32 %v887, 4294901760
    %v889 = vsub.f32 %v887, %v888
    %v890 = vand.u32 %v889, 4294901760
    %891 = vmatmul.mubr.f32.gmra.mrb[0].mxu0 %v890
    %v892 = vpop.f32.mrb[0].mxu0
    %v893 = vadd.f32 %v144, %v892
    %v894 = vpop.f32.mrb[0].mxu0
    %v895 = vadd.f32 %v148, %v894
    %896 = vmatprep.mubr.f32.mxu0 0.0
    %v897 = vand.u32 %v102, 4294901760
    %v898 = vsub.f32 %v102, %v897
    %v899 = vand.u32 %v898, 4294901760
    %v900 = vsub.f32 %v898, %v899
    %v901 = vand.u32 %v900, 4294901760
    %902 = vmatmul.mubr.f32.gmra.mrb[0].mxu0 %v901
    %v903 = vpop.f32.mrb[0].mxu0
    %v904 = vadd.f32 %v144, %v903
    %v905 = vpop.f32.mrb[0].mxu0
    %v906 = vadd.f32 %v148, %v905
    %907 = vmatprep.mubr.f32.mxu0 0.0
    %v908 = vand.u32 %v103, 4294901760
    %v909 = vsub.f32 %v103, %v908
    %v910 = vand.u32 %v909, 4294901760
    %v911 = vsub.f32 %v909, %v910
    %v912 = vand.u32 %v911, 4294901760
    %913 = vmatmul.mubr.f32.gmra.mrb[0].mxu0 %v912
    %v914 = vpop.f32.mrb[0].mxu0
    %v915 = vadd.f32 %v144, %v914
    %v916 = vpop.f32.mrb[0].mxu0
    %v917 = vadd.f32 %v148, %v916
    %918 = vmatprep.mubr.f32.mxu0 0.0
    %v919 = vand.u32 %v104, 4294901760
    %v920 = vsub.f32 %v104, %v919
    %v921 = vand.u32 %v920, 4294901760
    %v922 = vsub.f32 %v920, %v921
    %v923 = vand.u32 %v922, 4294901760
    %924 = vmatmul.mubr.f32.gmra.mrb[0].mxu0 %v923
    %v925 = vpop.f32.mrb[0].mxu0
    %v926 = vadd.f32 %v144, %v925
    %v927 = vpop.f32.mrb[0].mxu0
    %v928 = vadd.f32 %v148, %v927
    %929 = vmatprep.mubr.f32.mxu0 0.0
    %v930 = vand.u32 %v105, 4294901760
    %v931 = vsub.f32 %v105, %v930
    %v932 = vand.u32 %v931, 4294901760
    %v933 = vsub.f32 %v931, %v932
    %v934 = vand.u32 %v933, 4294901760
    %935 = vmatmul.mubr.f32.gmra.mrb[0].mxu0 %v934
    %v936 = vpop.f32.mrb[0].mxu0
    %v937 = vadd.f32 %v144, %v936
    %v938 = vpop.f32.mrb[0].mxu0
    %v939 = vadd.f32 %v148, %v938
    %940 = vmatprep.mubr.f32.mxu0 0.0
    %v941 = vand.u32 %v106, 4294901760
    %v942 = vsub.f32 %v106, %v941
    %v943 = vand.u32 %v942, 4294901760
    %v944 = vsub.f32 %v942, %v943
    %v945 = vand.u32 %v944, 4294901760
    %946 = vmatmul.mubr.f32.gmra.mrb[0].mxu0 %v945
    %v947 = vpop.f32.mrb[0].mxu0
    %v948 = vadd.f32 %v144, %v947
    %v949 = vpop.f32.mrb[0].mxu0
    %v950 = vadd.f32 %v148, %v949
    %951 = vdwg.mxu0
    %v952 = vand.u32 %v108, 4294901760
    %v953 = vsub.f32 %v108, %v952
    %v954 = vand.u32 %v953, 4294901760
    %v955 = vsub.f32 %v953, %v954
    %v956 = vand.u32 %v955, 4294901760
    %957 = vmatprep.subr.mxu0 %v956
    %v958 = vand.u32 %v107, 4294901760
    %v959 = vsub.f32 %v107, %v958
    %v960 = vand.u32 %v959, 4294901760
    %v961 = vsub.f32 %v959, %v960
    %v962 = vand.u32 %v961, 4294901760
    %963 = vmatpush1.msra.mxu0 %v962
    %v964 = vand.u32 %v110, 4294901760
    %v965 = vsub.f32 %v110, %v964
    %v966 = vand.u32 %v965, 4294901760
    %v967 = vsub.f32 %v965, %v966
    %v968 = vand.u32 %v967, 4294901760
    %969 = vmatprep.subr.mxu0 %v968
    %v970 = vand.u32 %v109, 4294901760
    %v971 = vsub.f32 %v109, %v970
    %v972 = vand.u32 %v971, 4294901760
    %v973 = vsub.f32 %v971, %v972
    %v974 = vand.u32 %v973, 4294901760
    %975 = vmatpush1.msra.mxu0 %v974
    %v976 = vand.u32 %v112, 4294901760
    %v977 = vsub.f32 %v112, %v976
    %v978 = vand.u32 %v977, 4294901760
    %v979 = vsub.f32 %v977, %v978
    %v980 = vand.u32 %v979, 4294901760
    %981 = vmatprep.subr.mxu0 %v980
    %v982 = vand.u32 %v111, 4294901760
    %v983 = vsub.f32 %v111, %v982
    %v984 = vand.u32 %v983, 4294901760
    %v985 = vsub.f32 %v983, %v984
    %v986 = vand.u32 %v985, 4294901760
    %987 = vmatpush1.msra.mxu0 %v986
    %v988 = vand.u32 %v114, 4294901760
    %v989 = vsub.f32 %v114, %v988
    %v990 = vand.u32 %v989, 4294901760
    %v991 = vsub.f32 %v989, %v990
    %v992 = vand.u32 %v991, 4294901760
    %993 = vmatprep.subr.mxu0 %v992
    %v994 = vand.u32 %v113, 4294901760
    %v995 = vsub.f32 %v113, %v994
    %v996 = vand.u32 %v995, 4294901760
    %v997 = vsub.f32 %v995, %v996
    %v998 = vand.u32 %v997, 4294901760
    %999 = vmatpush1.msra.mxu0 %v998
    %v1000 = vand.u32 %v116, 4294901760
    %v1001 = vsub.f32 %v116, %v1000
    %v1002 = vand.u32 %v1001, 4294901760
    %v1003 = vsub.f32 %v1001, %v1002
    %v1004 = vand.u32 %v1003, 4294901760
    %1005 = vmatprep.subr.mxu0 %v1004
    %v1006 = vand.u32 %v115, 4294901760
    %v1007 = vsub.f32 %v115, %v1006
    %v1008 = vand.u32 %v1007, 4294901760
    %v1009 = vsub.f32 %v1007, %v1008
    %v1010 = vand.u32 %v1009, 4294901760
    %1011 = vmatpush1.msra.mxu0 %v1010
    %v1012 = vand.u32 %v118, 4294901760
    %v1013 = vsub.f32 %v118, %v1012
    %v1014 = vand.u32 %v1013, 4294901760
    %v1015 = vsub.f32 %v1013, %v1014
    %v1016 = vand.u32 %v1015, 4294901760
    %1017 = vmatprep.subr.mxu0 %v1016
    %v1018 = vand.u32 %v117, 4294901760
    %v1019 = vsub.f32 %v117, %v1018
    %v1020 = vand.u32 %v1019, 4294901760
    %v1021 = vsub.f32 %v1019, %v1020
    %v1022 = vand.u32 %v1021, 4294901760
    %1023 = vmatpush1.msra.mxu0 %v1022
    %v1024 = vand.u32 %v120, 4294901760
    %v1025 = vsub.f32 %v120, %v1024
    %v1026 = vand.u32 %v1025, 4294901760
    %v1027 = vsub.f32 %v1025, %v1026
    %v1028 = vand.u32 %v1027, 4294901760
    %1029 = vmatprep.subr.mxu0 %v1028
    %v1030 = vand.u32 %v119, 4294901760
    %v1031 = vsub.f32 %v119, %v1030
    %v1032 = vand.u32 %v1031, 4294901760
    %v1033 = vsub.f32 %v1031, %v1032
    %v1034 = vand.u32 %v1033, 4294901760
    %1035 = vmatpush1.msra.mxu0 %v1034
    %v1036 = vand.u32 %v122, 4294901760
    %v1037 = vsub.f32 %v122, %v1036
    %v1038 = vand.u32 %v1037, 4294901760
    %v1039 = vsub.f32 %v1037, %v1038
    %v1040 = vand.u32 %v1039, 4294901760
    %1041 = vmatprep.subr.mxu0 %v1040
    %v1042 = vand.u32 %v121, 4294901760
    %v1043 = vsub.f32 %v121, %v1042
    %v1044 = vand.u32 %v1043, 4294901760
    %v1045 = vsub.f32 %v1043, %v1044
    %v1046 = vand.u32 %v1045, 4294901760
    %1047 = vmatpush1.msra.mxu0 %v1046
    %v1048 = vand.u32 %v124, 4294901760
    %v1049 = vsub.f32 %v124, %v1048
    %v1050 = vand.u32 %v1049, 4294901760
    %v1051 = vsub.f32 %v1049, %v1050
    %v1052 = vand.u32 %v1051, 4294901760
    %1053 = vmatprep.subr.mxu0 %v1052
    %v1054 = vand.u32 %v123, 4294901760
    %v1055 = vsub.f32 %v123, %v1054
    %v1056 = vand.u32 %v1055, 4294901760
    %v1057 = vsub.f32 %v1055, %v1056
    %v1058 = vand.u32 %v1057, 4294901760
    %1059 = vmatpush1.msra.mxu0 %v1058
    %v1060 = vand.u32 %v126, 4294901760
    %v1061 = vsub.f32 %v126, %v1060
    %v1062 = vand.u32 %v1061, 4294901760
    %v1063 = vsub.f32 %v1061, %v1062
    %v1064 = vand.u32 %v1063, 4294901760
    %1065 = vmatprep.subr.mxu0 %v1064
    %v1066 = vand.u32 %v125, 4294901760
    %v1067 = vsub.f32 %v125, %v1066
    %v1068 = vand.u32 %v1067, 4294901760
    %v1069 = vsub.f32 %v1067, %v1068
    %v1070 = vand.u32 %v1069, 4294901760
    %1071 = vmatpush1.msra.mxu0 %v1070
    %v1072 = vand.u32 %v128, 4294901760
    %v1073 = vsub.f32 %v128, %v1072
    %v1074 = vand.u32 %v1073, 4294901760
    %v1075 = vsub.f32 %v1073, %v1074
    %v1076 = vand.u32 %v1075, 4294901760
    %1077 = vmatprep.subr.mxu0 %v1076
    %v1078 = vand.u32 %v127, 4294901760
    %v1079 = vsub.f32 %v127, %v1078
    %v1080 = vand.u32 %v1079, 4294901760
    %v1081 = vsub.f32 %v1079, %v1080
    %v1082 = vand.u32 %v1081, 4294901760
    %1083 = vmatpush1.msra.mxu0 %v1082
    %v1084 = vand.u32 %v130, 4294901760
    %v1085 = vsub.f32 %v130, %v1084
    %v1086 = vand.u32 %v1085, 4294901760
    %v1087 = vsub.f32 %v1085, %v1086
    %v1088 = vand.u32 %v1087, 4294901760
    %1089 = vmatprep.subr.mxu0 %v1088
    %v1090 = vand.u32 %v129, 4294901760
    %v1091 = vsub.f32 %v129, %v1090
    %v1092 = vand.u32 %v1091, 4294901760
    %v1093 = vsub.f32 %v1091, %v1092
    %v1094 = vand.u32 %v1093, 4294901760
    %1095 = vmatpush1.msra.mxu0 %v1094
    %v1096 = vand.u32 %v132, 4294901760
    %v1097 = vsub.f32 %v132, %v1096
    %v1098 = vand.u32 %v1097, 4294901760
    %v1099 = vsub.f32 %v1097, %v1098
    %v1100 = vand.u32 %v1099, 4294901760
    %1101 = vmatprep.subr.mxu0 %v1100
    %v1102 = vand.u32 %v131, 4294901760
    %v1103 = vsub.f32 %v131, %v1102
    %v1104 = vand.u32 %v1103, 4294901760
    %v1105 = vsub.f32 %v1103, %v1104
    %v1106 = vand.u32 %v1105, 4294901760
    %1107 = vmatpush1.msra.mxu0 %v1106
    %v1108 = vand.u32 %v134, 4294901760
    %v1109 = vsub.f32 %v134, %v1108
    %v1110 = vand.u32 %v1109, 4294901760
    %v1111 = vsub.f32 %v1109, %v1110
    %v1112 = vand.u32 %v1111, 4294901760
    %1113 = vmatprep.subr.mxu0 %v1112
    %v1114 = vand.u32 %v133, 4294901760
    %v1115 = vsub.f32 %v133, %v1114
    %v1116 = vand.u32 %v1115, 4294901760
    %v1117 = vsub.f32 %v1115, %v1116
    %v1118 = vand.u32 %v1117, 4294901760
    %1119 = vmatpush1.msra.mxu0 %v1118
    %v1120 = vand.u32 %v136, 4294901760
    %v1121 = vsub.f32 %v136, %v1120
    %v1122 = vand.u32 %v1121, 4294901760
    %v1123 = vsub.f32 %v1121, %v1122
    %v1124 = vand.u32 %v1123, 4294901760
    %1125 = vmatprep.subr.mxu0 %v1124
    %v1126 = vand.u32 %v135, 4294901760
    %v1127 = vsub.f32 %v135, %v1126
    %v1128 = vand.u32 %v1127, 4294901760
    %v1129 = vsub.f32 %v1127, %v1128
    %v1130 = vand.u32 %v1129, 4294901760
    %1131 = vmatpush1.msra.mxu0 %v1130
    %v1132 = vand.u32 %v138, 4294901760
    %v1133 = vsub.f32 %v138, %v1132
    %v1134 = vand.u32 %v1133, 4294901760
    %v1135 = vsub.f32 %v1133, %v1134
    %v1136 = vand.u32 %v1135, 4294901760
    %1137 = vmatprep.subr.mxu0 %v1136
    %v1138 = vand.u32 %v137, 4294901760
    %v1139 = vsub.f32 %v137, %v1138
    %v1140 = vand.u32 %v1139, 4294901760
    %v1141 = vsub.f32 %v1139, %v1140
    %v1142 = vand.u32 %v1141, 4294901760
    %1143 = vmatpush1.msra.mxu0 %v1142
    %1144 = vmatprep.subr.mxu0 0.0
    %1145 = vmatpush1.msra.mxu0 0.0
    %1146 = vmatprep.subr.mxu0 0.0
    %1147 = vmatpush1.msra.mxu0 0.0
    %1148 = vmatprep.subr.mxu0 0.0
    %1149 = vmatpush1.msra.mxu0 0.0
    %1150 = vmatprep.subr.mxu0 0.0
    %1151 = vmatpush1.msra.mxu0 0.0
    %1152 = vmatprep.subr.mxu0 0.0
    %1153 = vmatpush1.msra.mxu0 0.0
    %1154 = vmatprep.subr.mxu0 0.0
    %1155 = vmatpush1.msra.mxu0 0.0
    %1156 = vmatprep.subr.mxu0 0.0
    %1157 = vmatpush1.msra.mxu0 0.0
    %1158 = vmatprep.subr.mxu0 0.0
    %1159 = vmatpush1.msra.mxu0 0.0
    %1160 = vmatprep.subr.mxu0 0.0
    %1161 = vmatpush1.msra.mxu0 0.0
    %1162 = vmatprep.subr.mxu0 0.0
    %1163 = vmatpush1.msra.mxu0 0.0
    %1164 = vmatprep.subr.mxu0 0.0
    %1165 = vmatpush1.msra.mxu0 0.0
    %1166 = vmatprep.subr.mxu0 0.0
    %1167 = vmatpush1.msra.mxu0 0.0
    %1168 = vmatprep.subr.mxu0 0.0
    %1169 = vmatpush1.msra.mxu0 0.0
    %1170 = vmatprep.subr.mxu0 0.0
    %1171 = vmatpush1.msra.mxu0 0.0
    %1172 = vmatprep.subr.mxu0 0.0
    %1173 = vmatpush1.msra.mxu0 0.0
    %1174 = vmatprep.subr.mxu0 0.0
    %1175 = vmatpush1.msra.mxu0 0.0
    %1176 = vmatprep.mubr.f32.mxu0 0.0
    %v1177 = vand.u32 %v43, 4294901760
    %1178 = vmatmul.mubr.f32.gmra.mrb[0].mxu0 %v1177
    %v1179 = vpop.f32.mrb[0].mxu0
    %v1180 = vadd.f32 %v255, %v1179
    %v1181 = vpop.f32.mrb[0].mxu0
    %v1182 = vadd.f32 %v257, %v1181
    %1183 = vmatprep.mubr.f32.mxu0 0.0
    %v1184 = vand.u32 %v44, 4294901760
    %1185 = vmatmul.mubr.f32.gmra.mrb[0].mxu0 %v1184
    %v1186 = vpop.f32.mrb[0].mxu0
    %v1187 = vadd.f32 %v266, %v1186
    %v1188 = vpop.f32.mrb[0].mxu0
    %v1189 = vadd.f32 %v268, %v1188
    %1190 = vmatprep.mubr.f32.mxu0 0.0
    %v1191 = vand.u32 %v45, 4294901760
    %1192 = vmatmul.mubr.f32.gmra.mrb[0].mxu0 %v1191
    %v1193 = vpop.f32.mrb[0].mxu0
    %v1194 = vadd.f32 %v277, %v1193
    %v1195 = vpop.f32.mrb[0].mxu0
    %v1196 = vadd.f32 %v279, %v1195
    %1197 = vmatprep.mubr.f32.mxu0 0.0
    %v1198 = vand.u32 %v46, 4294901760
    %1199 = vmatmul.mubr.f32.gmra.mrb[0].mxu0 %v1198
    %v1200 = vpop.f32.mrb[0].mxu0
    %v1201 = vadd.f32 %v288, %v1200
    %v1202 = vpop.f32.mrb[0].mxu0
    %v1203 = vadd.f32 %v290, %v1202
    %1204 = vmatprep.mubr.f32.mxu0 0.0
    %v1205 = vand.u32 %v47, 4294901760
    %1206 = vmatmul.mubr.f32.gmra.mrb[0].mxu0 %v1205
    %v1207 = vpop.f32.mrb[0].mxu0
    %v1208 = vadd.f32 %v299, %v1207
    %v1209 = vpop.f32.mrb[0].mxu0
    %v1210 = vadd.f32 %v301, %v1209
    %1211 = vmatprep.mubr.f32.mxu0 0.0
    %v1212 = vand.u32 %v48, 4294901760
    %1213 = vmatmul.mubr.f32.gmra.mrb[0].mxu0 %v1212
    %v1214 = vpop.f32.mrb[0].mxu0
    %v1215 = vadd.f32 %v310, %v1214
    %v1216 = vpop.f32.mrb[0].mxu0
    %v1217 = vadd.f32 %v312, %v1216
    %1218 = vmatprep.mubr.f32.mxu0 0.0
    %v1219 = vand.u32 %v49, 4294901760
    %1220 = vmatmul.mubr.f32.gmra.mrb[0].mxu0 %v1219
    %v1221 = vpop.f32.mrb[0].mxu0
    %v1222 = vadd.f32 %v321, %v1221
    %v1223 = vpop.f32.mrb[0].mxu0
    %v1224 = vadd.f32 %v323, %v1223
    %1225 = vmatprep.mubr.f32.mxu0 0.0
    %v1226 = vand.u32 %v50, 4294901760
    %1227 = vmatmul.mubr.f32.gmra.mrb[0].mxu0 %v1226
    %v1228 = vpop.f32.mrb[0].mxu0
    %v1229 = vadd.f32 %v332, %v1228
    %v1230 = vpop.f32.mrb[0].mxu0
    %v1231 = vadd.f32 %v334, %v1230
    %1232 = vmatprep.mubr.f32.mxu0 0.0
    %v1233 = vand.u32 %v51, 4294901760
    %1234 = vmatmul.mubr.f32.gmra.mrb[0].mxu0 %v1233
    %v1235 = vpop.f32.mrb[0].mxu0
    %v1236 = vadd.f32 %v343, %v1235
    %v1237 = vpop.f32.mrb[0].mxu0
    %v1238 = vadd.f32 %v345, %v1237
    %1239 = vmatprep.mubr.f32.mxu0 0.0
    %v1240 = vand.u32 %v52, 4294901760
    %1241 = vmatmul.mubr.f32.gmra.mrb[0].mxu0 %v1240
    %v1242 = vpop.f32.mrb[0].mxu0
    %v1243 = vadd.f32 %v354, %v1242
    %v1244 = vpop.f32.mrb[0].mxu0
    %v1245 = vadd.f32 %v356, %v1244
    %1246 = vmatprep.mubr.f32.mxu0 0.0
    %v1247 = vand.u32 %v53, 4294901760
    %1248 = vmatmul.mubr.f32.gmra.mrb[0].mxu0 %v1247
    %v1249 = vpop.f32.mrb[0].mxu0
    %v1250 = vadd.f32 %v365, %v1249
    %v1251 = vpop.f32.mrb[0].mxu0
    %v1252 = vadd.f32 %v367, %v1251
    %1253 = vmatprep.mubr.f32.mxu0 0.0
    %v1254 = vand.u32 %v54, 4294901760
    %1255 = vmatmul.mubr.f32.gmra.mrb[0].mxu0 %v1254
    %v1256 = vpop.f32.mrb[0].mxu0
    %v1257 = vadd.f32 %v376, %v1256
    %v1258 = vpop.f32.mrb[0].mxu0
    %v1259 = vadd.f32 %v378, %v1258
    %1260 = vmatprep.mubr.f32.mxu0 0.0
    %v1261 = vand.u32 %v55, 4294901760
    %1262 = vmatmul.mubr.f32.gmra.mrb[0].mxu0 %v1261
    %v1263 = vpop.f32.mrb[0].mxu0
    %v1264 = vadd.f32 %v387, %v1263
    %v1265 = vpop.f32.mrb[0].mxu0
    %v1266 = vadd.f32 %v389, %v1265
    %1267 = vmatprep.mubr.f32.mxu0 0.0
    %v1268 = vand.u32 %v56, 4294901760
    %1269 = vmatmul.mubr.f32.gmra.mrb[0].mxu0 %v1268
    %v1270 = vpop.f32.mrb[0].mxu0
    %v1271 = vadd.f32 %v398, %v1270
    %v1272 = vpop.f32.mrb[0].mxu0
    %v1273 = vadd.f32 %v400, %v1272
    %1274 = vmatprep.mubr.f32.mxu0 0.0
    %v1275 = vand.u32 %v57, 4294901760
    %1276 = vmatmul.mubr.f32.gmra.mrb[0].mxu0 %v1275
    %v1277 = vpop.f32.mrb[0].mxu0
    %v1278 = vadd.f32 %v409, %v1277
    %v1279 = vpop.f32.mrb[0].mxu0
    %v1280 = vadd.f32 %v411, %v1279
    %1281 = vmatprep.mubr.f32.mxu0 0.0
    %v1282 = vand.u32 %v58, 4294901760
    %1283 = vmatmul.mubr.f32.gmra.mrb[0].mxu0 %v1282
    %v1284 = vpop.f32.mrb[0].mxu0
    %v1285 = vadd.f32 %v420, %v1284
    %v1286 = vpop.f32.mrb[0].mxu0
    %v1287 = vadd.f32 %v422, %v1286
    %1288 = vmatprep.mubr.f32.mxu0 0.0
    %v1289 = vand.u32 %v59, 4294901760
    %1290 = vmatmul.mubr.f32.gmra.mrb[0].mxu0 %v1289
    %v1291 = vpop.f32.mrb[0].mxu0
    %v1292 = vadd.f32 %v431, %v1291
    %v1293 = vpop.f32.mrb[0].mxu0
    %v1294 = vadd.f32 %v433, %v1293
    %1295 = vmatprep.mubr.f32.mxu0 0.0
    %v1296 = vand.u32 %v60, 4294901760
    %1297 = vmatmul.mubr.f32.gmra.mrb[0].mxu0 %v1296
    %v1298 = vpop.f32.mrb[0].mxu0
    %v1299 = vadd.f32 %v442, %v1298
    %v1300 = vpop.f32.mrb[0].mxu0
    %v1301 = vadd.f32 %v444, %v1300
    %1302 = vmatprep.mubr.f32.mxu0 0.0
    %v1303 = vand.u32 %v61, 4294901760
    %1304 = vmatmul.mubr.f32.gmra.mrb[0].mxu0 %v1303
    %v1305 = vpop.f32.mrb[0].mxu0
    %v1306 = vadd.f32 %v453, %v1305
    %v1307 = vpop.f32.mrb[0].mxu0
    %v1308 = vadd.f32 %v455, %v1307
    %1309 = vmatprep.mubr.f32.mxu0 0.0
    %v1310 = vand.u32 %v62, 4294901760
    %1311 = vmatmul.mubr.f32.gmra.mrb[0].mxu0 %v1310
    %v1312 = vpop.f32.mrb[0].mxu0
    %v1313 = vadd.f32 %v464, %v1312
    %v1314 = vpop.f32.mrb[0].mxu0
    %v1315 = vadd.f32 %v466, %v1314
    %1316 = vmatprep.mubr.f32.mxu0 0.0
    %v1317 = vand.u32 %v63, 4294901760
    %1318 = vmatmul.mubr.f32.gmra.mrb[0].mxu0 %v1317
    %v1319 = vpop.f32.mrb[0].mxu0
    %v1320 = vadd.f32 %v475, %v1319
    %v1321 = vpop.f32.mrb[0].mxu0
    %v1322 = vadd.f32 %v477, %v1321
    %1323 = vmatprep.mubr.f32.mxu0 0.0
    %v1324 = vand.u32 %v64, 4294901760
    %1325 = vmatmul.mubr.f32.gmra.mrb[0].mxu0 %v1324
    %v1326 = vpop.f32.mrb[0].mxu0
    %v1327 = vadd.f32 %v486, %v1326
    %v1328 = vpop.f32.mrb[0].mxu0
    %v1329 = vadd.f32 %v488, %v1328
    %1330 = vmatprep.mubr.f32.mxu0 0.0
    %v1331 = vand.u32 %v65, 4294901760
    %1332 = vmatmul.mubr.f32.gmra.mrb[0].mxu0 %v1331
    %v1333 = vpop.f32.mrb[0].mxu0
    %v1334 = vadd.f32 %v497, %v1333
    %v1335 = vpop.f32.mrb[0].mxu0
    %v1336 = vadd.f32 %v499, %v1335
    %1337 = vmatprep.mubr.f32.mxu0 0.0
    %v1338 = vand.u32 %v66, 4294901760
    %1339 = vmatmul.mubr.f32.gmra.mrb[0].mxu0 %v1338
    %v1340 = vpop.f32.mrb[0].mxu0
    %v1341 = vadd.f32 %v508, %v1340
    %v1342 = vpop.f32.mrb[0].mxu0
    %v1343 = vadd.f32 %v510, %v1342
    %1344 = vmatprep.mubr.f32.mxu0 0.0
    %v1345 = vand.u32 %v67, 4294901760
    %1346 = vmatmul.mubr.f32.gmra.mrb[0].mxu0 %v1345
    %v1347 = vpop.f32.mrb[0].mxu0
    %v1348 = vadd.f32 %v519, %v1347
    %v1349 = vpop.f32.mrb[0].mxu0
    %v1350 = vadd.f32 %v521, %v1349
    %1351 = vmatprep.mubr.f32.mxu0 0.0
    %v1352 = vand.u32 %v68, 4294901760
    %1353 = vmatmul.mubr.f32.gmra.mrb[0].mxu0 %v1352
    %v1354 = vpop.f32.mrb[0].mxu0
    %v1355 = vadd.f32 %v530, %v1354
    %v1356 = vpop.f32.mrb[0].mxu0
    %v1357 = vadd.f32 %v532, %v1356
    %1358 = vmatprep.mubr.f32.mxu0 0.0
    %v1359 = vand.u32 %v69, 4294901760
    %1360 = vmatmul.mubr.f32.gmra.mrb[0].mxu0 %v1359
    %v1361 = vpop.f32.mrb[0].mxu0
    %v1362 = vadd.f32 %v541, %v1361
    %v1363 = vpop.f32.mrb[0].mxu0
    %v1364 = vadd.f32 %v543, %v1363
    %1365 = vmatprep.mubr.f32.mxu0 0.0
    %v1366 = vand.u32 %v70, 4294901760
    %1367 = vmatmul.mubr.f32.gmra.mrb[0].mxu0 %v1366
    %v1368 = vpop.f32.mrb[0].mxu0
    %v1369 = vadd.f32 %v552, %v1368
    %v1370 = vpop.f32.mrb[0].mxu0
    %v1371 = vadd.f32 %v554, %v1370
    %1372 = vmatprep.mubr.f32.mxu0 0.0
    %v1373 = vand.u32 %v71, 4294901760
    %1374 = vmatmul.mubr.f32.gmra.mrb[0].mxu0 %v1373
    %v1375 = vpop.f32.mrb[0].mxu0
    %v1376 = vadd.f32 %v563, %v1375
    %v1377 = vpop.f32.mrb[0].mxu0
    %v1378 = vadd.f32 %v565, %v1377
    %1379 = vmatprep.mubr.f32.mxu0 0.0
    %v1380 = vand.u32 %v72, 4294901760
    %1381 = vmatmul.mubr.f32.gmra.mrb[0].mxu0 %v1380
    %v1382 = vpop.f32.mrb[0].mxu0
    %v1383 = vadd.f32 %v574, %v1382
    %v1384 = vpop.f32.mrb[0].mxu0
    %v1385 = vadd.f32 %v576, %v1384
    %1386 = vmatprep.mubr.f32.mxu0 0.0
    %v1387 = vand.u32 %v73, 4294901760
    %1388 = vmatmul.mubr.f32.gmra.mrb[0].mxu0 %v1387
    %v1389 = vpop.f32.mrb[0].mxu0
    %v1390 = vadd.f32 %v585, %v1389
    %v1391 = vpop.f32.mrb[0].mxu0
    %v1392 = vadd.f32 %v587, %v1391
    %1393 = vmatprep.mubr.f32.mxu0 0.0
    %v1394 = vand.u32 %v74, 4294901760
    %1395 = vmatmul.mubr.f32.gmra.mrb[0].mxu0 %v1394
    %v1396 = vpop.f32.mrb[0].mxu0
    %v1397 = vadd.f32 %v596, %v1396
    %v1398 = vpop.f32.mrb[0].mxu0
    %v1399 = vadd.f32 %v598, %v1398
    %1400 = vmatprep.mubr.f32.mxu0 0.0
    %v1401 = vand.u32 %v75, 4294901760
    %1402 = vmatmul.mubr.f32.gmra.mrb[0].mxu0 %v1401
    %v1403 = vpop.f32.mrb[0].mxu0
    %v1404 = vadd.f32 %v607, %v1403
    %v1405 = vpop.f32.mrb[0].mxu0
    %v1406 = vadd.f32 %v609, %v1405
    %1407 = vmatprep.mubr.f32.mxu0 0.0
    %v1408 = vand.u32 %v76, 4294901760
    %1409 = vmatmul.mubr.f32.gmra.mrb[0].mxu0 %v1408
    %v1410 = vpop.f32.mrb[0].mxu0
    %v1411 = vadd.f32 %v618, %v1410
    %v1412 = vpop.f32.mrb[0].mxu0
    %v1413 = vadd.f32 %v620, %v1412
    %1414 = vmatprep.mubr.f32.mxu0 0.0
    %v1415 = vand.u32 %v77, 4294901760
    %1416 = vmatmul.mubr.f32.gmra.mrb[0].mxu0 %v1415
    %v1417 = vpop.f32.mrb[0].mxu0
    %v1418 = vadd.f32 %v629, %v1417
    %v1419 = vpop.f32.mrb[0].mxu0
    %v1420 = vadd.f32 %v631, %v1419
    %1421 = vmatprep.mubr.f32.mxu0 0.0
    %v1422 = vand.u32 %v78, 4294901760
    %1423 = vmatmul.mubr.f32.gmra.mrb[0].mxu0 %v1422
    %v1424 = vpop.f32.mrb[0].mxu0
    %v1425 = vadd.f32 %v640, %v1424
    %v1426 = vpop.f32.mrb[0].mxu0
    %v1427 = vadd.f32 %v642, %v1426
    %1428 = vmatprep.mubr.f32.mxu0 0.0
    %v1429 = vand.u32 %v79, 4294901760
    %1430 = vmatmul.mubr.f32.gmra.mrb[0].mxu0 %v1429
    %v1431 = vpop.f32.mrb[0].mxu0
    %v1432 = vadd.f32 %v651, %v1431
    %v1433 = vpop.f32.mrb[0].mxu0
    %v1434 = vadd.f32 %v653, %v1433
    %1435 = vmatprep.mubr.f32.mxu0 0.0
    %v1436 = vand.u32 %v80, 4294901760
    %1437 = vmatmul.mubr.f32.gmra.mrb[0].mxu0 %v1436
    %v1438 = vpop.f32.mrb[0].mxu0
    %v1439 = vadd.f32 %v662, %v1438
    %v1440 = vpop.f32.mrb[0].mxu0
    %v1441 = vadd.f32 %v664, %v1440
    %1442 = vmatprep.mubr.f32.mxu0 0.0
    %v1443 = vand.u32 %v81, 4294901760
    %1444 = vmatmul.mubr.f32.gmra.mrb[0].mxu0 %v1443
    %v1445 = vpop.f32.mrb[0].mxu0
    %v1446 = vadd.f32 %v673, %v1445
    %v1447 = vpop.f32.mrb[0].mxu0
    %v1448 = vadd.f32 %v675, %v1447
    %1449 = vmatprep.mubr.f32.mxu0 0.0
    %v1450 = vand.u32 %v82, 4294901760
    %1451 = vmatmul.mubr.f32.gmra.mrb[0].mxu0 %v1450
    %v1452 = vpop.f32.mrb[0].mxu0
    %v1453 = vadd.f32 %v684, %v1452
    %v1454 = vpop.f32.mrb[0].mxu0
    %v1455 = vadd.f32 %v686, %v1454
    %1456 = vmatprep.mubr.f32.mxu0 0.0
    %v1457 = vand.u32 %v83, 4294901760
    %1458 = vmatmul.mubr.f32.gmra.mrb[0].mxu0 %v1457
    %v1459 = vpop.f32.mrb[0].mxu0
    %v1460 = vadd.f32 %v695, %v1459
    %v1461 = vpop.f32.mrb[0].mxu0
    %v1462 = vadd.f32 %v697, %v1461
    %1463 = vmatprep.mubr.f32.mxu0 0.0
    %v1464 = vand.u32 %v84, 4294901760
    %1465 = vmatmul.mubr.f32.gmra.mrb[0].mxu0 %v1464
    %v1466 = vpop.f32.mrb[0].mxu0
    %v1467 = vadd.f32 %v706, %v1466
    %v1468 = vpop.f32.mrb[0].mxu0
    %v1469 = vadd.f32 %v708, %v1468
    %1470 = vmatprep.mubr.f32.mxu0 0.0
    %v1471 = vand.u32 %v85, 4294901760
    %1472 = vmatmul.mubr.f32.gmra.mrb[0].mxu0 %v1471
    %v1473 = vpop.f32.mrb[0].mxu0
    %v1474 = vadd.f32 %v717, %v1473
    %v1475 = vpop.f32.mrb[0].mxu0
    %v1476 = vadd.f32 %v719, %v1475
    %1477 = vmatprep.mubr.f32.mxu0 0.0
    %v1478 = vand.u32 %v86, 4294901760
    %1479 = vmatmul.mubr.f32.gmra.mrb[0].mxu0 %v1478
    %v1480 = vpop.f32.mrb[0].mxu0
    %v1481 = vadd.f32 %v728, %v1480
    %v1482 = vpop.f32.mrb[0].mxu0
    %v1483 = vadd.f32 %v730, %v1482
    %1484 = vmatprep.mubr.f32.mxu0 0.0
    %v1485 = vand.u32 %v87, 4294901760
    %1486 = vmatmul.mubr.f32.gmra.mrb[0].mxu0 %v1485
    %v1487 = vpop.f32.mrb[0].mxu0
    %v1488 = vadd.f32 %v739, %v1487
    %v1489 = vpop.f32.mrb[0].mxu0
    %v1490 = vadd.f32 %v741, %v1489
    %1491 = vmatprep.mubr.f32.mxu0 0.0
    %v1492 = vand.u32 %v88, 4294901760
    %1493 = vmatmul.mubr.f32.gmra.mrb[0].mxu0 %v1492
    %v1494 = vpop.f32.mrb[0].mxu0
    %v1495 = vadd.f32 %v750, %v1494
    %v1496 = vpop.f32.mrb[0].mxu0
    %v1497 = vadd.f32 %v752, %v1496
    %1498 = vmatprep.mubr.f32.mxu0 0.0
    %v1499 = vand.u32 %v89, 4294901760
    %1500 = vmatmul.mubr.f32.gmra.mrb[0].mxu0 %v1499
    %v1501 = vpop.f32.mrb[0].mxu0
    %v1502 = vadd.f32 %v761, %v1501
    %v1503 = vpop.f32.mrb[0].mxu0
    %v1504 = vadd.f32 %v763, %v1503
    %1505 = vmatprep.mubr.f32.mxu0 0.0
    %v1506 = vand.u32 %v90, 4294901760
    %1507 = vmatmul.mubr.f32.gmra.mrb[0].mxu0 %v1506
    %v1508 = vpop.f32.mrb[0].mxu0
    %v1509 = vadd.f32 %v772, %v1508
    %v1510 = vpop.f32.mrb[0].mxu0
    %v1511 = vadd.f32 %v774, %v1510
    %1512 = vmatprep.mubr.f32.mxu0 0.0
    %v1513 = vand.u32 %v91, 4294901760
    %1514 = vmatmul.mubr.f32.gmra.mrb[0].mxu0 %v1513
    %v1515 = vpop.f32.mrb[0].mxu0
    %v1516 = vadd.f32 %v783, %v1515
    %v1517 = vpop.f32.mrb[0].mxu0
    %v1518 = vadd.f32 %v785, %v1517
    %1519 = vmatprep.mubr.f32.mxu0 0.0
    %v1520 = vand.u32 %v92, 4294901760
    %1521 = vmatmul.mubr.f32.gmra.mrb[0].mxu0 %v1520
    %v1522 = vpop.f32.mrb[0].mxu0
    %v1523 = vadd.f32 %v794, %v1522
    %v1524 = vpop.f32.mrb[0].mxu0
    %v1525 = vadd.f32 %v796, %v1524
    %1526 = vmatprep.mubr.f32.mxu0 0.0
    %v1527 = vand.u32 %v93, 4294901760
    %1528 = vmatmul.mubr.f32.gmra.mrb[0].mxu0 %v1527
    %v1529 = vpop.f32.mrb[0].mxu0
    %v1530 = vadd.f32 %v805, %v1529
    %v1531 = vpop.f32.mrb[0].mxu0
    %v1532 = vadd.f32 %v807, %v1531
    %1533 = vmatprep.mubr.f32.mxu0 0.0
    %v1534 = vand.u32 %v94, 4294901760
    %1535 = vmatmul.mubr.f32.gmra.mrb[0].mxu0 %v1534
    %v1536 = vpop.f32.mrb[0].mxu0
    %v1537 = vadd.f32 %v816, %v1536
    %v1538 = vpop.f32.mrb[0].mxu0
    %v1539 = vadd.f32 %v818, %v1538
    %1540 = vmatprep.mubr.f32.mxu0 0.0
    %v1541 = vand.u32 %v95, 4294901760
    %1542 = vmatmul.mubr.f32.gmra.mrb[0].mxu0 %v1541
    %v1543 = vpop.f32.mrb[0].mxu0
    %v1544 = vadd.f32 %v827, %v1543
    %v1545 = vpop.f32.mrb[0].mxu0
    %v1546 = vadd.f32 %v829, %v1545
    %1547 = vmatprep.mubr.f32.mxu0 0.0
    %v1548 = vand.u32 %v96, 4294901760
    %1549 = vmatmul.mubr.f32.gmra.mrb[0].mxu0 %v1548
    %v1550 = vpop.f32.mrb[0].mxu0
    %v1551 = vadd.f32 %v838, %v1550
    %v1552 = vpop.f32.mrb[0].mxu0
    %v1553 = vadd.f32 %v840, %v1552
    %1554 = vmatprep.mubr.f32.mxu0 0.0
    %v1555 = vand.u32 %v97, 4294901760
    %1556 = vmatmul.mubr.f32.gmra.mrb[0].mxu0 %v1555
    %v1557 = vpop.f32.mrb[0].mxu0
    %v1558 = vadd.f32 %v849, %v1557
    %v1559 = vpop.f32.mrb[0].mxu0
    %v1560 = vadd.f32 %v851, %v1559
    %1561 = vmatprep.mubr.f32.mxu0 0.0
    %v1562 = vand.u32 %v98, 4294901760
    %1563 = vmatmul.mubr.f32.gmra.mrb[0].mxu0 %v1562
    %v1564 = vpop.f32.mrb[0].mxu0
    %v1565 = vadd.f32 %v860, %v1564
    %v1566 = vpop.f32.mrb[0].mxu0
    %v1567 = vadd.f32 %v862, %v1566
    %1568 = vmatprep.mubr.f32.mxu0 0.0
    %v1569 = vand.u32 %v99, 4294901760
    %1570 = vmatmul.mubr.f32.gmra.mrb[0].mxu0 %v1569
    %v1571 = vpop.f32.mrb[0].mxu0
    %v1572 = vadd.f32 %v871, %v1571
    %v1573 = vpop.f32.mrb[0].mxu0
    %v1574 = vadd.f32 %v873, %v1573
    %1575 = vmatprep.mubr.f32.mxu0 0.0
    %v1576 = vand.u32 %v100, 4294901760
    %1577 = vmatmul.mubr.f32.gmra.mrb[0].mxu0 %v1576
    %v1578 = vpop.f32.mrb[0].mxu0
    %v1579 = vadd.f32 %v882, %v1578
    %v1580 = vpop.f32.mrb[0].mxu0
    %v1581 = vadd.f32 %v884, %v1580
    %1582 = vmatprep.mubr.f32.mxu0 0.0
    %v1583 = vand.u32 %v101, 4294901760
    %1584 = vmatmul.mubr.f32.gmra.mrb[0].mxu0 %v1583
    %v1585 = vpop.f32.mrb[0].mxu0
    %v1586 = vadd.f32 %v893, %v1585
    %v1587 = vpop.f32.mrb[0].mxu0
    %v1588 = vadd.f32 %v895, %v1587
    %1589 = vmatprep.mubr.f32.mxu0 0.0
    %v1590 = vand.u32 %v102, 4294901760
    %1591 = vmatmul.mubr.f32.gmra.mrb[0].mxu0 %v1590
    %v1592 = vpop.f32.mrb[0].mxu0
    %v1593 = vadd.f32 %v904, %v1592
    %v1594 = vpop.f32.mrb[0].mxu0
    %v1595 = vadd.f32 %v906, %v1594
    %1596 = vmatprep.mubr.f32.mxu0 0.0
    %v1597 = vand.u32 %v103, 4294901760
    %1598 = vmatmul.mubr.f32.gmra.mrb[0].mxu0 %v1597
    %v1599 = vpop.f32.mrb[0].mxu0
    %v1600 = vadd.f32 %v915, %v1599
    %v1601 = vpop.f32.mrb[0].mxu0
    %v1602 = vadd.f32 %v917, %v1601
    %1603 = vmatprep.mubr.f32.mxu0 0.0
    %v1604 = vand.u32 %v104, 4294901760
    %1605 = vmatmul.mubr.f32.gmra.mrb[0].mxu0 %v1604
    %v1606 = vpop.f32.mrb[0].mxu0
    %v1607 = vadd.f32 %v926, %v1606
    %v1608 = vpop.f32.mrb[0].mxu0
    %v1609 = vadd.f32 %v928, %v1608
    %1610 = vmatprep.mubr.f32.mxu0 0.0
    %v1611 = vand.u32 %v105, 4294901760
    %1612 = vmatmul.mubr.f32.gmra.mrb[0].mxu0 %v1611
    %v1613 = vpop.f32.mrb[0].mxu0
    %v1614 = vadd.f32 %v937, %v1613
    %v1615 = vpop.f32.mrb[0].mxu0
    %v1616 = vadd.f32 %v939, %v1615
    %1617 = vmatprep.mubr.f32.mxu0 0.0
    %v1618 = vand.u32 %v106, 4294901760
    %1619 = vmatmul.mubr.f32.gmra.mrb[0].mxu0 %v1618
    %v1620 = vpop.f32.mrb[0].mxu0
    %v1621 = vadd.f32 %v948, %v1620
    %v1622 = vpop.f32.mrb[0].mxu0
    %v1623 = vadd.f32 %v950, %v1622
    %1624 = vdwg.mxu0
    %v1625 = vand.u32 %v108, 4294901760
    %v1626 = vsub.f32 %v108, %v1625
    %1627 = vmatprep.subr.mxu0 %v1626
    %v1628 = vand.u32 %v107, 4294901760
    %v1629 = vsub.f32 %v107, %v1628
    %1630 = vmatpush1.msra.mxu0 %v1629
    %v1631 = vand.u32 %v110, 4294901760
    %v1632 = vsub.f32 %v110, %v1631
    %1633 = vmatprep.subr.mxu0 %v1632
    %v1634 = vand.u32 %v109, 4294901760
    %v1635 = vsub.f32 %v109, %v1634
    %1636 = vmatpush1.msra.mxu0 %v1635
    %v1637 = vand.u32 %v112, 4294901760
    %v1638 = vsub.f32 %v112, %v1637
    %1639 = vmatprep.subr.mxu0 %v1638
    %v1640 = vand.u32 %v111, 4294901760
    %v1641 = vsub.f32 %v111, %v1640
    %1642 = vmatpush1.msra.mxu0 %v1641
    %v1643 = vand.u32 %v114, 4294901760
    %v1644 = vsub.f32 %v114, %v1643
    %1645 = vmatprep.subr.mxu0 %v1644
    %v1646 = vand.u32 %v113, 4294901760
    %v1647 = vsub.f32 %v113, %v1646
    %1648 = vmatpush1.msra.mxu0 %v1647
    %v1649 = vand.u32 %v116, 4294901760
    %v1650 = vsub.f32 %v116, %v1649
    %1651 = vmatprep.subr.mxu0 %v1650
    %v1652 = vand.u32 %v115, 4294901760
    %v1653 = vsub.f32 %v115, %v1652
    %1654 = vmatpush1.msra.mxu0 %v1653
    %v1655 = vand.u32 %v118, 4294901760
    %v1656 = vsub.f32 %v118, %v1655
    %1657 = vmatprep.subr.mxu0 %v1656
    %v1658 = vand.u32 %v117, 4294901760
    %v1659 = vsub.f32 %v117, %v1658
    %1660 = vmatpush1.msra.mxu0 %v1659
    %v1661 = vand.u32 %v120, 4294901760
    %v1662 = vsub.f32 %v120, %v1661
    %1663 = vmatprep.subr.mxu0 %v1662
    %v1664 = vand.u32 %v119, 4294901760
    %v1665 = vsub.f32 %v119, %v1664
    %1666 = vmatpush1.msra.mxu0 %v1665
    %v1667 = vand.u32 %v122, 4294901760
    %v1668 = vsub.f32 %v122, %v1667
    %1669 = vmatprep.subr.mxu0 %v1668
    %v1670 = vand.u32 %v121, 4294901760
    %v1671 = vsub.f32 %v121, %v1670
    %1672 = vmatpush1.msra.mxu0 %v1671
    %v1673 = vand.u32 %v124, 4294901760
    %v1674 = vsub.f32 %v124, %v1673
    %1675 = vmatprep.subr.mxu0 %v1674
    %v1676 = vand.u32 %v123, 4294901760
    %v1677 = vsub.f32 %v123, %v1676
    %1678 = vmatpush1.msra.mxu0 %v1677
    %v1679 = vand.u32 %v126, 4294901760
    %v1680 = vsub.f32 %v126, %v1679
    %1681 = vmatprep.subr.mxu0 %v1680
    %v1682 = vand.u32 %v125, 4294901760
    %v1683 = vsub.f32 %v125, %v1682
    %1684 = vmatpush1.msra.mxu0 %v1683
    %v1685 = vand.u32 %v128, 4294901760
    %v1686 = vsub.f32 %v128, %v1685
    %1687 = vmatprep.subr.mxu0 %v1686
    %v1688 = vand.u32 %v127, 4294901760
    %v1689 = vsub.f32 %v127, %v1688
    %1690 = vmatpush1.msra.mxu0 %v1689
    %v1691 = vand.u32 %v130, 4294901760
    %v1692 = vsub.f32 %v130, %v1691
    %1693 = vmatprep.subr.mxu0 %v1692
    %v1694 = vand.u32 %v129, 4294901760
    %v1695 = vsub.f32 %v129, %v1694
    %1696 = vmatpush1.msra.mxu0 %v1695
    %v1697 = vand.u32 %v132, 4294901760
    %v1698 = vsub.f32 %v132, %v1697
    %1699 = vmatprep.subr.mxu0 %v1698
    %v1700 = vand.u32 %v131, 4294901760
    %v1701 = vsub.f32 %v131, %v1700
    %1702 = vmatpush1.msra.mxu0 %v1701
    %v1703 = vand.u32 %v134, 4294901760
    %v1704 = vsub.f32 %v134, %v1703
    %1705 = vmatprep.subr.mxu0 %v1704
    %v1706 = vand.u32 %v133, 4294901760
    %v1707 = vsub.f32 %v133, %v1706
    %1708 = vmatpush1.msra.mxu0 %v1707
    %v1709 = vand.u32 %v136, 4294901760
    %v1710 = vsub.f32 %v136, %v1709
    %1711 = vmatprep.subr.mxu0 %v1710
    %v1712 = vand.u32 %v135, 4294901760
    %v1713 = vsub.f32 %v135, %v1712
    %1714 = vmatpush1.msra.mxu0 %v1713
    %v1715 = vand.u32 %v138, 4294901760
    %v1716 = vsub.f32 %v138, %v1715
    %1717 = vmatprep.subr.mxu0 %v1716
    %v1718 = vand.u32 %v137, 4294901760
    %v1719 = vsub.f32 %v137, %v1718
    %1720 = vmatpush1.msra.mxu0 %v1719
    %1721 = vmatprep.subr.mxu0 0.0
    %1722 = vmatpush1.msra.mxu0 0.0
    %1723 = vmatprep.subr.mxu0 0.0
    %1724 = vmatpush1.msra.mxu0 0.0
    %1725 = vmatprep.subr.mxu0 0.0
    %1726 = vmatpush1.msra.mxu0 0.0
    %1727 = vmatprep.subr.mxu0 0.0
    %1728 = vmatpush1.msra.mxu0 0.0
    %1729 = vmatprep.subr.mxu0 0.0
    %1730 = vmatpush1.msra.mxu0 0.0
    %1731 = vmatprep.subr.mxu0 0.0
    %1732 = vmatpush1.msra.mxu0 0.0
    %1733 = vmatprep.subr.mxu0 0.0
    %1734 = vmatpush1.msra.mxu0 0.0
    %1735 = vmatprep.subr.mxu0 0.0
    %1736 = vmatpush1.msra.mxu0 0.0
    %1737 = vmatprep.subr.mxu0 0.0
    %1738 = vmatpush1.msra.mxu0 0.0
    %1739 = vmatprep.subr.mxu0 0.0
    %1740 = vmatpush1.msra.mxu0 0.0
    %1741 = vmatprep.subr.mxu0 0.0
    %1742 = vmatpush1.msra.mxu0 0.0
    %1743 = vmatprep.subr.mxu0 0.0
    %1744 = vmatpush1.msra.mxu0 0.0
    %1745 = vmatprep.subr.mxu0 0.0
    %1746 = vmatpush1.msra.mxu0 0.0
    %1747 = vmatprep.subr.mxu0 0.0
    %1748 = vmatpush1.msra.mxu0 0.0
    %1749 = vmatprep.subr.mxu0 0.0
    %1750 = vmatpush1.msra.mxu0 0.0
    %1751 = vmatprep.subr.mxu0 0.0
    %1752 = vmatpush1.msra.mxu0 0.0
    %1753 = vmatprep.mubr.f32.mxu0 0.0
    %v1754 = vand.u32 %v43, 4294901760
    %v1755 = vsub.f32 %v43, %v1754
    %1756 = vmatmul.mubr.f32.gmra.mrb[0].mxu0 %v1755
    %v1757 = vpop.f32.mrb[0].mxu0
    %v1758 = vadd.f32 %v1180, %v1757
    %v1759 = vpop.f32.mrb[0].mxu0
    %v1760 = vadd.f32 %v1182, %v1759
    %1761 = vmatprep.mubr.f32.mxu0 0.0
    %v1762 = vand.u32 %v44, 4294901760
    %v1763 = vsub.f32 %v44, %v1762
    %1764 = vmatmul.mubr.f32.gmra.mrb[0].mxu0 %v1763
    %v1765 = vpop.f32.mrb[0].mxu0
    %v1766 = vadd.f32 %v1187, %v1765
    %v1767 = vpop.f32.mrb[0].mxu0
    %v1768 = vadd.f32 %v1189, %v1767
    %1769 = vmatprep.mubr.f32.mxu0 0.0
    %v1770 = vand.u32 %v45, 4294901760
    %v1771 = vsub.f32 %v45, %v1770
    %1772 = vmatmul.mubr.f32.gmra.mrb[0].mxu0 %v1771
    %v1773 = vpop.f32.mrb[0].mxu0
    %v1774 = vadd.f32 %v1194, %v1773
    %v1775 = vpop.f32.mrb[0].mxu0
    %v1776 = vadd.f32 %v1196, %v1775
    %1777 = vmatprep.mubr.f32.mxu0 0.0
    %v1778 = vand.u32 %v46, 4294901760
    %v1779 = vsub.f32 %v46, %v1778
    %1780 = vmatmul.mubr.f32.gmra.mrb[0].mxu0 %v1779
    %v1781 = vpop.f32.mrb[0].mxu0
    %v1782 = vadd.f32 %v1201, %v1781
    %v1783 = vpop.f32.mrb[0].mxu0
    %v1784 = vadd.f32 %v1203, %v1783
    %1785 = vmatprep.mubr.f32.mxu0 0.0
    %v1786 = vand.u32 %v47, 4294901760
    %v1787 = vsub.f32 %v47, %v1786
    %1788 = vmatmul.mubr.f32.gmra.mrb[0].mxu0 %v1787
    %v1789 = vpop.f32.mrb[0].mxu0
    %v1790 = vadd.f32 %v1208, %v1789
    %v1791 = vpop.f32.mrb[0].mxu0
    %v1792 = vadd.f32 %v1210, %v1791
    %1793 = vmatprep.mubr.f32.mxu0 0.0
    %v1794 = vand.u32 %v48, 4294901760
    %v1795 = vsub.f32 %v48, %v1794
    %1796 = vmatmul.mubr.f32.gmra.mrb[0].mxu0 %v1795
    %v1797 = vpop.f32.mrb[0].mxu0
    %v1798 = vadd.f32 %v1215, %v1797
    %v1799 = vpop.f32.mrb[0].mxu0
    %v1800 = vadd.f32 %v1217, %v1799
    %1801 = vmatprep.mubr.f32.mxu0 0.0
    %v1802 = vand.u32 %v49, 4294901760
    %v1803 = vsub.f32 %v49, %v1802
    %1804 = vmatmul.mubr.f32.gmra.mrb[0].mxu0 %v1803
    %v1805 = vpop.f32.mrb[0].mxu0
    %v1806 = vadd.f32 %v1222, %v1805
    %v1807 = vpop.f32.mrb[0].mxu0
    %v1808 = vadd.f32 %v1224, %v1807
    %1809 = vmatprep.mubr.f32.mxu0 0.0
    %v1810 = vand.u32 %v50, 4294901760
    %v1811 = vsub.f32 %v50, %v1810
    %1812 = vmatmul.mubr.f32.gmra.mrb[0].mxu0 %v1811
    %v1813 = vpop.f32.mrb[0].mxu0
    %v1814 = vadd.f32 %v1229, %v1813
    %v1815 = vpop.f32.mrb[0].mxu0
    %v1816 = vadd.f32 %v1231, %v1815
    %1817 = vmatprep.mubr.f32.mxu0 0.0
    %v1818 = vand.u32 %v51, 4294901760
    %v1819 = vsub.f32 %v51, %v1818
    %1820 = vmatmul.mubr.f32.gmra.mrb[0].mxu0 %v1819
    %v1821 = vpop.f32.mrb[0].mxu0
    %v1822 = vadd.f32 %v1236, %v1821
    %v1823 = vpop.f32.mrb[0].mxu0
    %v1824 = vadd.f32 %v1238, %v1823
    %1825 = vmatprep.mubr.f32.mxu0 0.0
    %v1826 = vand.u32 %v52, 4294901760
    %v1827 = vsub.f32 %v52, %v1826
    %1828 = vmatmul.mubr.f32.gmra.mrb[0].mxu0 %v1827
    %v1829 = vpop.f32.mrb[0].mxu0
    %v1830 = vadd.f32 %v1243, %v1829
    %v1831 = vpop.f32.mrb[0].mxu0
    %v1832 = vadd.f32 %v1245, %v1831
    %1833 = vmatprep.mubr.f32.mxu0 0.0
    %v1834 = vand.u32 %v53, 4294901760
    %v1835 = vsub.f32 %v53, %v1834
    %1836 = vmatmul.mubr.f32.gmra.mrb[0].mxu0 %v1835
    %v1837 = vpop.f32.mrb[0].mxu0
    %v1838 = vadd.f32 %v1250, %v1837
    %v1839 = vpop.f32.mrb[0].mxu0
    %v1840 = vadd.f32 %v1252, %v1839
    %1841 = vmatprep.mubr.f32.mxu0 0.0
    %v1842 = vand.u32 %v54, 4294901760
    %v1843 = vsub.f32 %v54, %v1842
    %1844 = vmatmul.mubr.f32.gmra.mrb[0].mxu0 %v1843
    %v1845 = vpop.f32.mrb[0].mxu0
    %v1846 = vadd.f32 %v1257, %v1845
    %v1847 = vpop.f32.mrb[0].mxu0
    %v1848 = vadd.f32 %v1259, %v1847
    %1849 = vmatprep.mubr.f32.mxu0 0.0
    %v1850 = vand.u32 %v55, 4294901760
    %v1851 = vsub.f32 %v55, %v1850
    %1852 = vmatmul.mubr.f32.gmra.mrb[0].mxu0 %v1851
    %v1853 = vpop.f32.mrb[0].mxu0
    %v1854 = vadd.f32 %v1264, %v1853
    %v1855 = vpop.f32.mrb[0].mxu0
    %v1856 = vadd.f32 %v1266, %v1855
    %1857 = vmatprep.mubr.f32.mxu0 0.0
    %v1858 = vand.u32 %v56, 4294901760
    %v1859 = vsub.f32 %v56, %v1858
    %1860 = vmatmul.mubr.f32.gmra.mrb[0].mxu0 %v1859
    %v1861 = vpop.f32.mrb[0].mxu0
    %v1862 = vadd.f32 %v1271, %v1861
    %v1863 = vpop.f32.mrb[0].mxu0
    %v1864 = vadd.f32 %v1273, %v1863
    %1865 = vmatprep.mubr.f32.mxu0 0.0
    %v1866 = vand.u32 %v57, 4294901760
    %v1867 = vsub.f32 %v57, %v1866
    %1868 = vmatmul.mubr.f32.gmra.mrb[0].mxu0 %v1867
    %v1869 = vpop.f32.mrb[0].mxu0
    %v1870 = vadd.f32 %v1278, %v1869
    %v1871 = vpop.f32.mrb[0].mxu0
    %v1872 = vadd.f32 %v1280, %v1871
    %1873 = vmatprep.mubr.f32.mxu0 0.0
    %v1874 = vand.u32 %v58, 4294901760
    %v1875 = vsub.f32 %v58, %v1874
    %1876 = vmatmul.mubr.f32.gmra.mrb[0].mxu0 %v1875
    %v1877 = vpop.f32.mrb[0].mxu0
    %v1878 = vadd.f32 %v1285, %v1877
    %v1879 = vpop.f32.mrb[0].mxu0
    %v1880 = vadd.f32 %v1287, %v1879
    %1881 = vmatprep.mubr.f32.mxu0 0.0
    %v1882 = vand.u32 %v59, 4294901760
    %v1883 = vsub.f32 %v59, %v1882
    %1884 = vmatmul.mubr.f32.gmra.mrb[0].mxu0 %v1883
    %v1885 = vpop.f32.mrb[0].mxu0
    %v1886 = vadd.f32 %v1292, %v1885
    %v1887 = vpop.f32.mrb[0].mxu0
    %v1888 = vadd.f32 %v1294, %v1887
    %1889 = vmatprep.mubr.f32.mxu0 0.0
    %v1890 = vand.u32 %v60, 4294901760
    %v1891 = vsub.f32 %v60, %v1890
    %1892 = vmatmul.mubr.f32.gmra.mrb[0].mxu0 %v1891
    %v1893 = vpop.f32.mrb[0].mxu0
    %v1894 = vadd.f32 %v1299, %v1893
    %v1895 = vpop.f32.mrb[0].mxu0
    %v1896 = vadd.f32 %v1301, %v1895
    %1897 = vmatprep.mubr.f32.mxu0 0.0
    %v1898 = vand.u32 %v61, 4294901760
    %v1899 = vsub.f32 %v61, %v1898
    %1900 = vmatmul.mubr.f32.gmra.mrb[0].mxu0 %v1899
    %v1901 = vpop.f32.mrb[0].mxu0
    %v1902 = vadd.f32 %v1306, %v1901
    %v1903 = vpop.f32.mrb[0].mxu0
    %v1904 = vadd.f32 %v1308, %v1903
    %1905 = vmatprep.mubr.f32.mxu0 0.0
    %v1906 = vand.u32 %v62, 4294901760
    %v1907 = vsub.f32 %v62, %v1906
    %1908 = vmatmul.mubr.f32.gmra.mrb[0].mxu0 %v1907
    %v1909 = vpop.f32.mrb[0].mxu0
    %v1910 = vadd.f32 %v1313, %v1909
    %v1911 = vpop.f32.mrb[0].mxu0
    %v1912 = vadd.f32 %v1315, %v1911
    %1913 = vmatprep.mubr.f32.mxu0 0.0
    %v1914 = vand.u32 %v63, 4294901760
    %v1915 = vsub.f32 %v63, %v1914
    %1916 = vmatmul.mubr.f32.gmra.mrb[0].mxu0 %v1915
    %v1917 = vpop.f32.mrb[0].mxu0
    %v1918 = vadd.f32 %v1320, %v1917
    %v1919 = vpop.f32.mrb[0].mxu0
    %v1920 = vadd.f32 %v1322, %v1919
    %1921 = vmatprep.mubr.f32.mxu0 0.0
    %v1922 = vand.u32 %v64, 4294901760
    %v1923 = vsub.f32 %v64, %v1922
    %1924 = vmatmul.mubr.f32.gmra.mrb[0].mxu0 %v1923
    %v1925 = vpop.f32.mrb[0].mxu0
    %v1926 = vadd.f32 %v1327, %v1925
    %v1927 = vpop.f32.mrb[0].mxu0
    %v1928 = vadd.f32 %v1329, %v1927
    %1929 = vmatprep.mubr.f32.mxu0 0.0
    %v1930 = vand.u32 %v65, 4294901760
    %v1931 = vsub.f32 %v65, %v1930
    %1932 = vmatmul.mubr.f32.gmra.mrb[0].mxu0 %v1931
    %v1933 = vpop.f32.mrb[0].mxu0
    %v1934 = vadd.f32 %v1334, %v1933
    %v1935 = vpop.f32.mrb[0].mxu0
    %v1936 = vadd.f32 %v1336, %v1935
    %1937 = vmatprep.mubr.f32.mxu0 0.0
    %v1938 = vand.u32 %v66, 4294901760
    %v1939 = vsub.f32 %v66, %v1938
    %1940 = vmatmul.mubr.f32.gmra.mrb[0].mxu0 %v1939
    %v1941 = vpop.f32.mrb[0].mxu0
    %v1942 = vadd.f32 %v1341, %v1941
    %v1943 = vpop.f32.mrb[0].mxu0
    %v1944 = vadd.f32 %v1343, %v1943
    %1945 = vmatprep.mubr.f32.mxu0 0.0
    %v1946 = vand.u32 %v67, 4294901760
    %v1947 = vsub.f32 %v67, %v1946
    %1948 = vmatmul.mubr.f32.gmra.mrb[0].mxu0 %v1947
    %v1949 = vpop.f32.mrb[0].mxu0
    %v1950 = vadd.f32 %v1348, %v1949
    %v1951 = vpop.f32.mrb[0].mxu0
    %v1952 = vadd.f32 %v1350, %v1951
    %1953 = vmatprep.mubr.f32.mxu0 0.0
    %v1954 = vand.u32 %v68, 4294901760
    %v1955 = vsub.f32 %v68, %v1954
    %1956 = vmatmul.mubr.f32.gmra.mrb[0].mxu0 %v1955
    %v1957 = vpop.f32.mrb[0].mxu0
    %v1958 = vadd.f32 %v1355, %v1957
    %v1959 = vpop.f32.mrb[0].mxu0
    %v1960 = vadd.f32 %v1357, %v1959
    %1961 = vmatprep.mubr.f32.mxu0 0.0
    %v1962 = vand.u32 %v69, 4294901760
    %v1963 = vsub.f32 %v69, %v1962
    %1964 = vmatmul.mubr.f32.gmra.mrb[0].mxu0 %v1963
    %v1965 = vpop.f32.mrb[0].mxu0
    %v1966 = vadd.f32 %v1362, %v1965
    %v1967 = vpop.f32.mrb[0].mxu0
    %v1968 = vadd.f32 %v1364, %v1967
    %1969 = vmatprep.mubr.f32.mxu0 0.0
    %v1970 = vand.u32 %v70, 4294901760
    %v1971 = vsub.f32 %v70, %v1970
    %1972 = vmatmul.mubr.f32.gmra.mrb[0].mxu0 %v1971
    %v1973 = vpop.f32.mrb[0].mxu0
    %v1974 = vadd.f32 %v1369, %v1973
    %v1975 = vpop.f32.mrb[0].mxu0
    %v1976 = vadd.f32 %v1371, %v1975
    %1977 = vmatprep.mubr.f32.mxu0 0.0
    %v1978 = vand.u32 %v71, 4294901760
    %v1979 = vsub.f32 %v71, %v1978
    %1980 = vmatmul.mubr.f32.gmra.mrb[0].mxu0 %v1979
    %v1981 = vpop.f32.mrb[0].mxu0
    %v1982 = vadd.f32 %v1376, %v1981
    %v1983 = vpop.f32.mrb[0].mxu0
    %v1984 = vadd.f32 %v1378, %v1983
    %1985 = vmatprep.mubr.f32.mxu0 0.0
    %v1986 = vand.u32 %v72, 4294901760
    %v1987 = vsub.f32 %v72, %v1986
    %1988 = vmatmul.mubr.f32.gmra.mrb[0].mxu0 %v1987
    %v1989 = vpop.f32.mrb[0].mxu0
    %v1990 = vadd.f32 %v1383, %v1989
    %v1991 = vpop.f32.mrb[0].mxu0
    %v1992 = vadd.f32 %v1385, %v1991
    %1993 = vmatprep.mubr.f32.mxu0 0.0
    %v1994 = vand.u32 %v73, 4294901760
    %v1995 = vsub.f32 %v73, %v1994
    %1996 = vmatmul.mubr.f32.gmra.mrb[0].mxu0 %v1995
    %v1997 = vpop.f32.mrb[0].mxu0
    %v1998 = vadd.f32 %v1390, %v1997
    %v1999 = vpop.f32.mrb[0].mxu0
    %v2000 = vadd.f32 %v1392, %v1999
    %2001 = vmatprep.mubr.f32.mxu0 0.0
    %v2002 = vand.u32 %v74, 4294901760
    %v2003 = vsub.f32 %v74, %v2002
    %2004 = vmatmul.mubr.f32.gmra.mrb[0].mxu0 %v2003
    %v2005 = vpop.f32.mrb[0].mxu0
    %v2006 = vadd.f32 %v1397, %v2005
    %v2007 = vpop.f32.mrb[0].mxu0
    %v2008 = vadd.f32 %v1399, %v2007
    %2009 = vmatprep.mubr.f32.mxu0 0.0
    %v2010 = vand.u32 %v75, 4294901760
    %v2011 = vsub.f32 %v75, %v2010
    %2012 = vmatmul.mubr.f32.gmra.mrb[0].mxu0 %v2011
    %v2013 = vpop.f32.mrb[0].mxu0
    %v2014 = vadd.f32 %v1404, %v2013
    %v2015 = vpop.f32.mrb[0].mxu0
    %v2016 = vadd.f32 %v1406, %v2015
    %2017 = vmatprep.mubr.f32.mxu0 0.0
    %v2018 = vand.u32 %v76, 4294901760
    %v2019 = vsub.f32 %v76, %v2018
    %2020 = vmatmul.mubr.f32.gmra.mrb[0].mxu0 %v2019
    %v2021 = vpop.f32.mrb[0].mxu0
    %v2022 = vadd.f32 %v1411, %v2021
    %v2023 = vpop.f32.mrb[0].mxu0
    %v2024 = vadd.f32 %v1413, %v2023
    %2025 = vmatprep.mubr.f32.mxu0 0.0
    %v2026 = vand.u32 %v77, 4294901760
    %v2027 = vsub.f32 %v77, %v2026
    %2028 = vmatmul.mubr.f32.gmra.mrb[0].mxu0 %v2027
    %v2029 = vpop.f32.mrb[0].mxu0
    %v2030 = vadd.f32 %v1418, %v2029
    %v2031 = vpop.f32.mrb[0].mxu0
    %v2032 = vadd.f32 %v1420, %v2031
    %2033 = vmatprep.mubr.f32.mxu0 0.0
    %v2034 = vand.u32 %v78, 4294901760
    %v2035 = vsub.f32 %v78, %v2034
    %2036 = vmatmul.mubr.f32.gmra.mrb[0].mxu0 %v2035
    %v2037 = vpop.f32.mrb[0].mxu0
    %v2038 = vadd.f32 %v1425, %v2037
    %v2039 = vpop.f32.mrb[0].mxu0
    %v2040 = vadd.f32 %v1427, %v2039
    %2041 = vmatprep.mubr.f32.mxu0 0.0
    %v2042 = vand.u32 %v79, 4294901760
    %v2043 = vsub.f32 %v79, %v2042
    %2044 = vmatmul.mubr.f32.gmra.mrb[0].mxu0 %v2043
    %v2045 = vpop.f32.mrb[0].mxu0
    %v2046 = vadd.f32 %v1432, %v2045
    %v2047 = vpop.f32.mrb[0].mxu0
    %v2048 = vadd.f32 %v1434, %v2047
    %2049 = vmatprep.mubr.f32.mxu0 0.0
    %v2050 = vand.u32 %v80, 4294901760
    %v2051 = vsub.f32 %v80, %v2050
    %2052 = vmatmul.mubr.f32.gmra.mrb[0].mxu0 %v2051
    %v2053 = vpop.f32.mrb[0].mxu0
    %v2054 = vadd.f32 %v1439, %v2053
    %v2055 = vpop.f32.mrb[0].mxu0
    %v2056 = vadd.f32 %v1441, %v2055
    %2057 = vmatprep.mubr.f32.mxu0 0.0
    %v2058 = vand.u32 %v81, 4294901760
    %v2059 = vsub.f32 %v81, %v2058
    %2060 = vmatmul.mubr.f32.gmra.mrb[0].mxu0 %v2059
    %v2061 = vpop.f32.mrb[0].mxu0
    %v2062 = vadd.f32 %v1446, %v2061
    %v2063 = vpop.f32.mrb[0].mxu0
    %v2064 = vadd.f32 %v1448, %v2063
    %2065 = vmatprep.mubr.f32.mxu0 0.0
    %v2066 = vand.u32 %v82, 4294901760
    %v2067 = vsub.f32 %v82, %v2066
    %2068 = vmatmul.mubr.f32.gmra.mrb[0].mxu0 %v2067
    %v2069 = vpop.f32.mrb[0].mxu0
    %v2070 = vadd.f32 %v1453, %v2069
    %v2071 = vpop.f32.mrb[0].mxu0
    %v2072 = vadd.f32 %v1455, %v2071
    %2073 = vmatprep.mubr.f32.mxu0 0.0
    %v2074 = vand.u32 %v83, 4294901760
    %v2075 = vsub.f32 %v83, %v2074
    %2076 = vmatmul.mubr.f32.gmra.mrb[0].mxu0 %v2075
    %v2077 = vpop.f32.mrb[0].mxu0
    %v2078 = vadd.f32 %v1460, %v2077
    %v2079 = vpop.f32.mrb[0].mxu0
    %v2080 = vadd.f32 %v1462, %v2079
    %2081 = vmatprep.mubr.f32.mxu0 0.0
    %v2082 = vand.u32 %v84, 4294901760
    %v2083 = vsub.f32 %v84, %v2082
    %2084 = vmatmul.mubr.f32.gmra.mrb[0].mxu0 %v2083
    %v2085 = vpop.f32.mrb[0].mxu0
    %v2086 = vadd.f32 %v1467, %v2085
    %v2087 = vpop.f32.mrb[0].mxu0
    %v2088 = vadd.f32 %v1469, %v2087
    %2089 = vmatprep.mubr.f32.mxu0 0.0
    %v2090 = vand.u32 %v85, 4294901760
    %v2091 = vsub.f32 %v85, %v2090
    %2092 = vmatmul.mubr.f32.gmra.mrb[0].mxu0 %v2091
    %v2093 = vpop.f32.mrb[0].mxu0
    %v2094 = vadd.f32 %v1474, %v2093
    %v2095 = vpop.f32.mrb[0].mxu0
    %v2096 = vadd.f32 %v1476, %v2095
    %2097 = vmatprep.mubr.f32.mxu0 0.0
    %v2098 = vand.u32 %v86, 4294901760
    %v2099 = vsub.f32 %v86, %v2098
    %2100 = vmatmul.mubr.f32.gmra.mrb[0].mxu0 %v2099
    %v2101 = vpop.f32.mrb[0].mxu0
    %v2102 = vadd.f32 %v1481, %v2101
    %v2103 = vpop.f32.mrb[0].mxu0
    %v2104 = vadd.f32 %v1483, %v2103
    %2105 = vmatprep.mubr.f32.mxu0 0.0
    %v2106 = vand.u32 %v87, 4294901760
    %v2107 = vsub.f32 %v87, %v2106
    %2108 = vmatmul.mubr.f32.gmra.mrb[0].mxu0 %v2107
    %v2109 = vpop.f32.mrb[0].mxu0
    %v2110 = vadd.f32 %v1488, %v2109
    %v2111 = vpop.f32.mrb[0].mxu0
    %v2112 = vadd.f32 %v1490, %v2111
    %2113 = vmatprep.mubr.f32.mxu0 0.0
    %v2114 = vand.u32 %v88, 4294901760
    %v2115 = vsub.f32 %v88, %v2114
    %2116 = vmatmul.mubr.f32.gmra.mrb[0].mxu0 %v2115
    %v2117 = vpop.f32.mrb[0].mxu0
    %v2118 = vadd.f32 %v1495, %v2117
    %v2119 = vpop.f32.mrb[0].mxu0
    %v2120 = vadd.f32 %v1497, %v2119
    %2121 = vmatprep.mubr.f32.mxu0 0.0
    %v2122 = vand.u32 %v89, 4294901760
    %v2123 = vsub.f32 %v89, %v2122
    %2124 = vmatmul.mubr.f32.gmra.mrb[0].mxu0 %v2123
    %v2125 = vpop.f32.mrb[0].mxu0
    %v2126 = vadd.f32 %v1502, %v2125
    %v2127 = vpop.f32.mrb[0].mxu0
    %v2128 = vadd.f32 %v1504, %v2127
    %2129 = vmatprep.mubr.f32.mxu0 0.0
    %v2130 = vand.u32 %v90, 4294901760
    %v2131 = vsub.f32 %v90, %v2130
    %2132 = vmatmul.mubr.f32.gmra.mrb[0].mxu0 %v2131
    %v2133 = vpop.f32.mrb[0].mxu0
    %v2134 = vadd.f32 %v1509, %v2133
    %v2135 = vpop.f32.mrb[0].mxu0
    %v2136 = vadd.f32 %v1511, %v2135
    %2137 = vmatprep.mubr.f32.mxu0 0.0
    %v2138 = vand.u32 %v91, 4294901760
    %v2139 = vsub.f32 %v91, %v2138
    %2140 = vmatmul.mubr.f32.gmra.mrb[0].mxu0 %v2139
    %v2141 = vpop.f32.mrb[0].mxu0
    %v2142 = vadd.f32 %v1516, %v2141
    %v2143 = vpop.f32.mrb[0].mxu0
    %v2144 = vadd.f32 %v1518, %v2143
    %2145 = vmatprep.mubr.f32.mxu0 0.0
    %v2146 = vand.u32 %v92, 4294901760
    %v2147 = vsub.f32 %v92, %v2146
    %2148 = vmatmul.mubr.f32.gmra.mrb[0].mxu0 %v2147
    %v2149 = vpop.f32.mrb[0].mxu0
    %v2150 = vadd.f32 %v1523, %v2149
    %v2151 = vpop.f32.mrb[0].mxu0
    %v2152 = vadd.f32 %v1525, %v2151
    %2153 = vmatprep.mubr.f32.mxu0 0.0
    %v2154 = vand.u32 %v93, 4294901760
    %v2155 = vsub.f32 %v93, %v2154
    %2156 = vmatmul.mubr.f32.gmra.mrb[0].mxu0 %v2155
    %v2157 = vpop.f32.mrb[0].mxu0
    %v2158 = vadd.f32 %v1530, %v2157
    %v2159 = vpop.f32.mrb[0].mxu0
    %v2160 = vadd.f32 %v1532, %v2159
    %2161 = vmatprep.mubr.f32.mxu0 0.0
    %v2162 = vand.u32 %v94, 4294901760
    %v2163 = vsub.f32 %v94, %v2162
    %2164 = vmatmul.mubr.f32.gmra.mrb[0].mxu0 %v2163
    %v2165 = vpop.f32.mrb[0].mxu0
    %v2166 = vadd.f32 %v1537, %v2165
    %v2167 = vpop.f32.mrb[0].mxu0
    %v2168 = vadd.f32 %v1539, %v2167
    %2169 = vmatprep.mubr.f32.mxu0 0.0
    %v2170 = vand.u32 %v95, 4294901760
    %v2171 = vsub.f32 %v95, %v2170
    %2172 = vmatmul.mubr.f32.gmra.mrb[0].mxu0 %v2171
    %v2173 = vpop.f32.mrb[0].mxu0
    %v2174 = vadd.f32 %v1544, %v2173
    %v2175 = vpop.f32.mrb[0].mxu0
    %v2176 = vadd.f32 %v1546, %v2175
    %2177 = vmatprep.mubr.f32.mxu0 0.0
    %v2178 = vand.u32 %v96, 4294901760
    %v2179 = vsub.f32 %v96, %v2178
    %2180 = vmatmul.mubr.f32.gmra.mrb[0].mxu0 %v2179
    %v2181 = vpop.f32.mrb[0].mxu0
    %v2182 = vadd.f32 %v1551, %v2181
    %v2183 = vpop.f32.mrb[0].mxu0
    %v2184 = vadd.f32 %v1553, %v2183
    %2185 = vmatprep.mubr.f32.mxu0 0.0
    %v2186 = vand.u32 %v97, 4294901760
    %v2187 = vsub.f32 %v97, %v2186
    %2188 = vmatmul.mubr.f32.gmra.mrb[0].mxu0 %v2187
    %v2189 = vpop.f32.mrb[0].mxu0
    %v2190 = vadd.f32 %v1558, %v2189
    %v2191 = vpop.f32.mrb[0].mxu0
    %v2192 = vadd.f32 %v1560, %v2191
    %2193 = vmatprep.mubr.f32.mxu0 0.0
    %v2194 = vand.u32 %v98, 4294901760
    %v2195 = vsub.f32 %v98, %v2194
    %2196 = vmatmul.mubr.f32.gmra.mrb[0].mxu0 %v2195
    %v2197 = vpop.f32.mrb[0].mxu0
    %v2198 = vadd.f32 %v1565, %v2197
    %v2199 = vpop.f32.mrb[0].mxu0
    %v2200 = vadd.f32 %v1567, %v2199
    %2201 = vmatprep.mubr.f32.mxu0 0.0
    %v2202 = vand.u32 %v99, 4294901760
    %v2203 = vsub.f32 %v99, %v2202
    %2204 = vmatmul.mubr.f32.gmra.mrb[0].mxu0 %v2203
    %v2205 = vpop.f32.mrb[0].mxu0
    %v2206 = vadd.f32 %v1572, %v2205
    %v2207 = vpop.f32.mrb[0].mxu0
    %v2208 = vadd.f32 %v1574, %v2207
    %2209 = vmatprep.mubr.f32.mxu0 0.0
    %v2210 = vand.u32 %v100, 4294901760
    %v2211 = vsub.f32 %v100, %v2210
    %2212 = vmatmul.mubr.f32.gmra.mrb[0].mxu0 %v2211
    %v2213 = vpop.f32.mrb[0].mxu0
    %v2214 = vadd.f32 %v1579, %v2213
    %v2215 = vpop.f32.mrb[0].mxu0
    %v2216 = vadd.f32 %v1581, %v2215
    %2217 = vmatprep.mubr.f32.mxu0 0.0
    %v2218 = vand.u32 %v101, 4294901760
    %v2219 = vsub.f32 %v101, %v2218
    %2220 = vmatmul.mubr.f32.gmra.mrb[0].mxu0 %v2219
    %v2221 = vpop.f32.mrb[0].mxu0
    %v2222 = vadd.f32 %v1586, %v2221
    %v2223 = vpop.f32.mrb[0].mxu0
    %v2224 = vadd.f32 %v1588, %v2223
    %2225 = vmatprep.mubr.f32.mxu0 0.0
    %v2226 = vand.u32 %v102, 4294901760
    %v2227 = vsub.f32 %v102, %v2226
    %2228 = vmatmul.mubr.f32.gmra.mrb[0].mxu0 %v2227
    %v2229 = vpop.f32.mrb[0].mxu0
    %v2230 = vadd.f32 %v1593, %v2229
    %v2231 = vpop.f32.mrb[0].mxu0
    %v2232 = vadd.f32 %v1595, %v2231
    %2233 = vmatprep.mubr.f32.mxu0 0.0
    %v2234 = vand.u32 %v103, 4294901760
    %v2235 = vsub.f32 %v103, %v2234
    %2236 = vmatmul.mubr.f32.gmra.mrb[0].mxu0 %v2235
    %v2237 = vpop.f32.mrb[0].mxu0
    %v2238 = vadd.f32 %v1600, %v2237
    %v2239 = vpop.f32.mrb[0].mxu0
    %v2240 = vadd.f32 %v1602, %v2239
    %2241 = vmatprep.mubr.f32.mxu0 0.0
    %v2242 = vand.u32 %v104, 4294901760
    %v2243 = vsub.f32 %v104, %v2242
    %2244 = vmatmul.mubr.f32.gmra.mrb[0].mxu0 %v2243
    %v2245 = vpop.f32.mrb[0].mxu0
    %v2246 = vadd.f32 %v1607, %v2245
    %v2247 = vpop.f32.mrb[0].mxu0
    %v2248 = vadd.f32 %v1609, %v2247
    %2249 = vmatprep.mubr.f32.mxu0 0.0
    %v2250 = vand.u32 %v105, 4294901760
    %v2251 = vsub.f32 %v105, %v2250
    %2252 = vmatmul.mubr.f32.gmra.mrb[0].mxu0 %v2251
    %v2253 = vpop.f32.mrb[0].mxu0
    %v2254 = vadd.f32 %v1614, %v2253
    %v2255 = vpop.f32.mrb[0].mxu0
    %v2256 = vadd.f32 %v1616, %v2255
    %2257 = vmatprep.mubr.f32.mxu0 0.0
    %v2258 = vand.u32 %v106, 4294901760
    %v2259 = vsub.f32 %v106, %v2258
    %2260 = vmatmul.mubr.f32.gmra.mrb[0].mxu0 %v2259
    %v2261 = vpop.f32.mrb[0].mxu0
    %v2262 = vadd.f32 %v1621, %v2261
    %v2263 = vpop.f32.mrb[0].mxu0
    %v2264 = vadd.f32 %v1623, %v2263
    %2265 = vdwg.mxu0
    %v2266 = vand.u32 %v108, 4294901760
    %2267 = vmatprep.subr.mxu0 %v2266
    %v2268 = vand.u32 %v107, 4294901760
    %2269 = vmatpush1.msra.mxu0 %v2268
    %v2270 = vand.u32 %v110, 4294901760
    %2271 = vmatprep.subr.mxu0 %v2270
    %v2272 = vand.u32 %v109, 4294901760
    %2273 = vmatpush1.msra.mxu0 %v2272
    %v2274 = vand.u32 %v112, 4294901760
    %2275 = vmatprep.subr.mxu0 %v2274
    %v2276 = vand.u32 %v111, 4294901760
    %2277 = vmatpush1.msra.mxu0 %v2276
    %v2278 = vand.u32 %v114, 4294901760
    %2279 = vmatprep.subr.mxu0 %v2278
    %v2280 = vand.u32 %v113, 4294901760
    %2281 = vmatpush1.msra.mxu0 %v2280
    %v2282 = vand.u32 %v116, 4294901760
    %2283 = vmatprep.subr.mxu0 %v2282
    %v2284 = vand.u32 %v115, 4294901760
    %2285 = vmatpush1.msra.mxu0 %v2284
    %v2286 = vand.u32 %v118, 4294901760
    %2287 = vmatprep.subr.mxu0 %v2286
    %v2288 = vand.u32 %v117, 4294901760
    %2289 = vmatpush1.msra.mxu0 %v2288
    %v2290 = vand.u32 %v120, 4294901760
    %2291 = vmatprep.subr.mxu0 %v2290
    %v2292 = vand.u32 %v119, 4294901760
    %2293 = vmatpush1.msra.mxu0 %v2292
    %v2294 = vand.u32 %v122, 4294901760
    %2295 = vmatprep.subr.mxu0 %v2294
    %v2296 = vand.u32 %v121, 4294901760
    %2297 = vmatpush1.msra.mxu0 %v2296
    %v2298 = vand.u32 %v124, 4294901760
    %2299 = vmatprep.subr.mxu0 %v2298
    %v2300 = vand.u32 %v123, 4294901760
    %2301 = vmatpush1.msra.mxu0 %v2300
    %v2302 = vand.u32 %v126, 4294901760
    %2303 = vmatprep.subr.mxu0 %v2302
    %v2304 = vand.u32 %v125, 4294901760
    %2305 = vmatpush1.msra.mxu0 %v2304
    %v2306 = vand.u32 %v128, 4294901760
    %2307 = vmatprep.subr.mxu0 %v2306
    %v2308 = vand.u32 %v127, 4294901760
    %2309 = vmatpush1.msra.mxu0 %v2308
    %v2310 = vand.u32 %v130, 4294901760
    %2311 = vmatprep.subr.mxu0 %v2310
    %v2312 = vand.u32 %v129, 4294901760
    %2313 = vmatpush1.msra.mxu0 %v2312
    %v2314 = vand.u32 %v132, 4294901760
    %2315 = vmatprep.subr.mxu0 %v2314
    %v2316 = vand.u32 %v131, 4294901760
    %2317 = vmatpush1.msra.mxu0 %v2316
    %v2318 = vand.u32 %v134, 4294901760
    %2319 = vmatprep.subr.mxu0 %v2318
    %v2320 = vand.u32 %v133, 4294901760
    %2321 = vmatpush1.msra.mxu0 %v2320
    %v2322 = vand.u32 %v136, 4294901760
    %2323 = vmatprep.subr.mxu0 %v2322
    %v2324 = vand.u32 %v135, 4294901760
    %2325 = vmatpush1.msra.mxu0 %v2324
    %v2326 = vand.u32 %v138, 4294901760
    %2327 = vmatprep.subr.mxu0 %v2326
    %v2328 = vand.u32 %v137, 4294901760
    %2329 = vmatpush1.msra.mxu0 %v2328
    %2330 = vmatprep.subr.mxu0 0.0
    %2331 = vmatpush1.msra.mxu0 0.0
    %2332 = vmatprep.subr.mxu0 0.0
    %2333 = vmatpush1.msra.mxu0 0.0
    %2334 = vmatprep.subr.mxu0 0.0
    %2335 = vmatpush1.msra.mxu0 0.0
    %2336 = vmatprep.subr.mxu0 0.0
    %2337 = vmatpush1.msra.mxu0 0.0
    %2338 = vmatprep.subr.mxu0 0.0
    %2339 = vmatpush1.msra.mxu0 0.0
    %2340 = vmatprep.subr.mxu0 0.0
    %2341 = vmatpush1.msra.mxu0 0.0
    %2342 = vmatprep.subr.mxu0 0.0
    %2343 = vmatpush1.msra.mxu0 0.0
    %2344 = vmatprep.subr.mxu0 0.0
    %2345 = vmatpush1.msra.mxu0 0.0
    %2346 = vmatprep.subr.mxu0 0.0
    %2347 = vmatpush1.msra.mxu0 0.0
    %2348 = vmatprep.subr.mxu0 0.0
    %2349 = vmatpush1.msra.mxu0 0.0
    %2350 = vmatprep.subr.mxu0 0.0
    %2351 = vmatpush1.msra.mxu0 0.0
    %2352 = vmatprep.subr.mxu0 0.0
    %2353 = vmatpush1.msra.mxu0 0.0
    %2354 = vmatprep.subr.mxu0 0.0
    %2355 = vmatpush1.msra.mxu0 0.0
    %2356 = vmatprep.subr.mxu0 0.0
    %2357 = vmatpush1.msra.mxu0 0.0
    %2358 = vmatprep.subr.mxu0 0.0
    %2359 = vmatpush1.msra.mxu0 0.0
    %2360 = vmatprep.subr.mxu0 0.0
    %2361 = vmatpush1.msra.mxu0 0.0
    %2362 = vmatprep.mubr.f32.mxu0 0.0
    %v2363 = vand.u32 %v43, 4294901760
    %v2364 = vsub.f32 %v43, %v2363
    %v2365 = vand.u32 %v2364, 4294901760
    %2366 = vmatmul.mubr.f32.gmra.mrb[0].mxu0 %v2365
    %v2367 = vpop.f32.mrb[0].mxu0
    %v2368 = vadd.f32 %v1758, %v2367
    %v2369 = vpop.f32.mrb[0].mxu0
    %v2370 = vadd.f32 %v1760, %v2369
    %2371 = vmatprep.mubr.f32.mxu0 0.0
    %v2372 = vand.u32 %v44, 4294901760
    %v2373 = vsub.f32 %v44, %v2372
    %v2374 = vand.u32 %v2373, 4294901760
    %2375 = vmatmul.mubr.f32.gmra.mrb[0].mxu0 %v2374
    %v2376 = vpop.f32.mrb[0].mxu0
    %v2377 = vadd.f32 %v1766, %v2376
    %v2378 = vpop.f32.mrb[0].mxu0
    %v2379 = vadd.f32 %v1768, %v2378
    %2380 = vmatprep.mubr.f32.mxu0 0.0
    %v2381 = vand.u32 %v45, 4294901760
    %v2382 = vsub.f32 %v45, %v2381
    %v2383 = vand.u32 %v2382, 4294901760
    %2384 = vmatmul.mubr.f32.gmra.mrb[0].mxu0 %v2383
    %v2385 = vpop.f32.mrb[0].mxu0
    %v2386 = vadd.f32 %v1774, %v2385
    %v2387 = vpop.f32.mrb[0].mxu0
    %v2388 = vadd.f32 %v1776, %v2387
    %2389 = vmatprep.mubr.f32.mxu0 0.0
    %v2390 = vand.u32 %v46, 4294901760
    %v2391 = vsub.f32 %v46, %v2390
    %v2392 = vand.u32 %v2391, 4294901760
    %2393 = vmatmul.mubr.f32.gmra.mrb[0].mxu0 %v2392
    %v2394 = vpop.f32.mrb[0].mxu0
    %v2395 = vadd.f32 %v1782, %v2394
    %v2396 = vpop.f32.mrb[0].mxu0
    %v2397 = vadd.f32 %v1784, %v2396
    %2398 = vmatprep.mubr.f32.mxu0 0.0
    %v2399 = vand.u32 %v47, 4294901760
    %v2400 = vsub.f32 %v47, %v2399
    %v2401 = vand.u32 %v2400, 4294901760
    %2402 = vmatmul.mubr.f32.gmra.mrb[0].mxu0 %v2401
    %v2403 = vpop.f32.mrb[0].mxu0
    %v2404 = vadd.f32 %v1790, %v2403
    %v2405 = vpop.f32.mrb[0].mxu0
    %v2406 = vadd.f32 %v1792, %v2405
    %2407 = vmatprep.mubr.f32.mxu0 0.0
    %v2408 = vand.u32 %v48, 4294901760
    %v2409 = vsub.f32 %v48, %v2408
    %v2410 = vand.u32 %v2409, 4294901760
    %2411 = vmatmul.mubr.f32.gmra.mrb[0].mxu0 %v2410
    %v2412 = vpop.f32.mrb[0].mxu0
    %v2413 = vadd.f32 %v1798, %v2412
    %v2414 = vpop.f32.mrb[0].mxu0
    %v2415 = vadd.f32 %v1800, %v2414
    %2416 = vmatprep.mubr.f32.mxu0 0.0
    %v2417 = vand.u32 %v49, 4294901760
    %v2418 = vsub.f32 %v49, %v2417
    %v2419 = vand.u32 %v2418, 4294901760
    %2420 = vmatmul.mubr.f32.gmra.mrb[0].mxu0 %v2419
    %v2421 = vpop.f32.mrb[0].mxu0
    %v2422 = vadd.f32 %v1806, %v2421
    %v2423 = vpop.f32.mrb[0].mxu0
    %v2424 = vadd.f32 %v1808, %v2423
    %2425 = vmatprep.mubr.f32.mxu0 0.0
    %v2426 = vand.u32 %v50, 4294901760
    %v2427 = vsub.f32 %v50, %v2426
    %v2428 = vand.u32 %v2427, 4294901760
    %2429 = vmatmul.mubr.f32.gmra.mrb[0].mxu0 %v2428
    %v2430 = vpop.f32.mrb[0].mxu0
    %v2431 = vadd.f32 %v1814, %v2430
    %v2432 = vpop.f32.mrb[0].mxu0
    %v2433 = vadd.f32 %v1816, %v2432
    %2434 = vmatprep.mubr.f32.mxu0 0.0
    %v2435 = vand.u32 %v51, 4294901760
    %v2436 = vsub.f32 %v51, %v2435
    %v2437 = vand.u32 %v2436, 4294901760
    %2438 = vmatmul.mubr.f32.gmra.mrb[0].mxu0 %v2437
    %v2439 = vpop.f32.mrb[0].mxu0
    %v2440 = vadd.f32 %v1822, %v2439
    %v2441 = vpop.f32.mrb[0].mxu0
    %v2442 = vadd.f32 %v1824, %v2441
    %2443 = vmatprep.mubr.f32.mxu0 0.0
    %v2444 = vand.u32 %v52, 4294901760
    %v2445 = vsub.f32 %v52, %v2444
    %v2446 = vand.u32 %v2445, 4294901760
    %2447 = vmatmul.mubr.f32.gmra.mrb[0].mxu0 %v2446
    %v2448 = vpop.f32.mrb[0].mxu0
    %v2449 = vadd.f32 %v1830, %v2448
    %v2450 = vpop.f32.mrb[0].mxu0
    %v2451 = vadd.f32 %v1832, %v2450
    %2452 = vmatprep.mubr.f32.mxu0 0.0
    %v2453 = vand.u32 %v53, 4294901760
    %v2454 = vsub.f32 %v53, %v2453
    %v2455 = vand.u32 %v2454, 4294901760
    %2456 = vmatmul.mubr.f32.gmra.mrb[0].mxu0 %v2455
    %v2457 = vpop.f32.mrb[0].mxu0
    %v2458 = vadd.f32 %v1838, %v2457
    %v2459 = vpop.f32.mrb[0].mxu0
    %v2460 = vadd.f32 %v1840, %v2459
    %2461 = vmatprep.mubr.f32.mxu0 0.0
    %v2462 = vand.u32 %v54, 4294901760
    %v2463 = vsub.f32 %v54, %v2462
    %v2464 = vand.u32 %v2463, 4294901760
    %2465 = vmatmul.mubr.f32.gmra.mrb[0].mxu0 %v2464
    %v2466 = vpop.f32.mrb[0].mxu0
    %v2467 = vadd.f32 %v1846, %v2466
    %v2468 = vpop.f32.mrb[0].mxu0
    %v2469 = vadd.f32 %v1848, %v2468
    %2470 = vmatprep.mubr.f32.mxu0 0.0
    %v2471 = vand.u32 %v55, 4294901760
    %v2472 = vsub.f32 %v55, %v2471
    %v2473 = vand.u32 %v2472, 4294901760
    %2474 = vmatmul.mubr.f32.gmra.mrb[0].mxu0 %v2473
    %v2475 = vpop.f32.mrb[0].mxu0
    %v2476 = vadd.f32 %v1854, %v2475
    %v2477 = vpop.f32.mrb[0].mxu0
    %v2478 = vadd.f32 %v1856, %v2477
    %2479 = vmatprep.mubr.f32.mxu0 0.0
    %v2480 = vand.u32 %v56, 4294901760
    %v2481 = vsub.f32 %v56, %v2480
    %v2482 = vand.u32 %v2481, 4294901760
    %2483 = vmatmul.mubr.f32.gmra.mrb[0].mxu0 %v2482
    %v2484 = vpop.f32.mrb[0].mxu0
    %v2485 = vadd.f32 %v1862, %v2484
    %v2486 = vpop.f32.mrb[0].mxu0
    %v2487 = vadd.f32 %v1864, %v2486
    %2488 = vmatprep.mubr.f32.mxu0 0.0
    %v2489 = vand.u32 %v57, 4294901760
    %v2490 = vsub.f32 %v57, %v2489
    %v2491 = vand.u32 %v2490, 4294901760
    %2492 = vmatmul.mubr.f32.gmra.mrb[0].mxu0 %v2491
    %v2493 = vpop.f32.mrb[0].mxu0
    %v2494 = vadd.f32 %v1870, %v2493
    %v2495 = vpop.f32.mrb[0].mxu0
    %v2496 = vadd.f32 %v1872, %v2495
    %2497 = vmatprep.mubr.f32.mxu0 0.0
    %v2498 = vand.u32 %v58, 4294901760
    %v2499 = vsub.f32 %v58, %v2498
    %v2500 = vand.u32 %v2499, 4294901760
    %2501 = vmatmul.mubr.f32.gmra.mrb[0].mxu0 %v2500
    %v2502 = vpop.f32.mrb[0].mxu0
    %v2503 = vadd.f32 %v1878, %v2502
    %v2504 = vpop.f32.mrb[0].mxu0
    %v2505 = vadd.f32 %v1880, %v2504
    %2506 = vmatprep.mubr.f32.mxu0 0.0
    %v2507 = vand.u32 %v59, 4294901760
    %v2508 = vsub.f32 %v59, %v2507
    %v2509 = vand.u32 %v2508, 4294901760
    %2510 = vmatmul.mubr.f32.gmra.mrb[0].mxu0 %v2509
    %v2511 = vpop.f32.mrb[0].mxu0
    %v2512 = vadd.f32 %v1886, %v2511
    %v2513 = vpop.f32.mrb[0].mxu0
    %v2514 = vadd.f32 %v1888, %v2513
    %2515 = vmatprep.mubr.f32.mxu0 0.0
    %v2516 = vand.u32 %v60, 4294901760
    %v2517 = vsub.f32 %v60, %v2516
    %v2518 = vand.u32 %v2517, 4294901760
    %2519 = vmatmul.mubr.f32.gmra.mrb[0].mxu0 %v2518
    %v2520 = vpop.f32.mrb[0].mxu0
    %v2521 = vadd.f32 %v1894, %v2520
    %v2522 = vpop.f32.mrb[0].mxu0
    %v2523 = vadd.f32 %v1896, %v2522
    %2524 = vmatprep.mubr.f32.mxu0 0.0
    %v2525 = vand.u32 %v61, 4294901760
    %v2526 = vsub.f32 %v61, %v2525
    %v2527 = vand.u32 %v2526, 4294901760
    %2528 = vmatmul.mubr.f32.gmra.mrb[0].mxu0 %v2527
    %v2529 = vpop.f32.mrb[0].mxu0
    %v2530 = vadd.f32 %v1902, %v2529
    %v2531 = vpop.f32.mrb[0].mxu0
    %v2532 = vadd.f32 %v1904, %v2531
    %2533 = vmatprep.mubr.f32.mxu0 0.0
    %v2534 = vand.u32 %v62, 4294901760
    %v2535 = vsub.f32 %v62, %v2534
    %v2536 = vand.u32 %v2535, 4294901760
    %2537 = vmatmul.mubr.f32.gmra.mrb[0].mxu0 %v2536
    %v2538 = vpop.f32.mrb[0].mxu0
    %v2539 = vadd.f32 %v1910, %v2538
    %v2540 = vpop.f32.mrb[0].mxu0
    %v2541 = vadd.f32 %v1912, %v2540
    %2542 = vmatprep.mubr.f32.mxu0 0.0
    %v2543 = vand.u32 %v63, 4294901760
    %v2544 = vsub.f32 %v63, %v2543
    %v2545 = vand.u32 %v2544, 4294901760
    %2546 = vmatmul.mubr.f32.gmra.mrb[0].mxu0 %v2545
    %v2547 = vpop.f32.mrb[0].mxu0
    %v2548 = vadd.f32 %v1918, %v2547
    %v2549 = vpop.f32.mrb[0].mxu0
    %v2550 = vadd.f32 %v1920, %v2549
    %2551 = vmatprep.mubr.f32.mxu0 0.0
    %v2552 = vand.u32 %v64, 4294901760
    %v2553 = vsub.f32 %v64, %v2552
    %v2554 = vand.u32 %v2553, 4294901760
    %2555 = vmatmul.mubr.f32.gmra.mrb[0].mxu0 %v2554
    %v2556 = vpop.f32.mrb[0].mxu0
    %v2557 = vadd.f32 %v1926, %v2556
    %v2558 = vpop.f32.mrb[0].mxu0
    %v2559 = vadd.f32 %v1928, %v2558
    %2560 = vmatprep.mubr.f32.mxu0 0.0
    %v2561 = vand.u32 %v65, 4294901760
    %v2562 = vsub.f32 %v65, %v2561
    %v2563 = vand.u32 %v2562, 4294901760
    %2564 = vmatmul.mubr.f32.gmra.mrb[0].mxu0 %v2563
    %v2565 = vpop.f32.mrb[0].mxu0
    %v2566 = vadd.f32 %v1934, %v2565
    %v2567 = vpop.f32.mrb[0].mxu0
    %v2568 = vadd.f32 %v1936, %v2567
    %2569 = vmatprep.mubr.f32.mxu0 0.0
    %v2570 = vand.u32 %v66, 4294901760
    %v2571 = vsub.f32 %v66, %v2570
    %v2572 = vand.u32 %v2571, 4294901760
    %2573 = vmatmul.mubr.f32.gmra.mrb[0].mxu0 %v2572
    %v2574 = vpop.f32.mrb[0].mxu0
    %v2575 = vadd.f32 %v1942, %v2574
    %v2576 = vpop.f32.mrb[0].mxu0
    %v2577 = vadd.f32 %v1944, %v2576
    %2578 = vmatprep.mubr.f32.mxu0 0.0
    %v2579 = vand.u32 %v67, 4294901760
    %v2580 = vsub.f32 %v67, %v2579
    %v2581 = vand.u32 %v2580, 4294901760
    %2582 = vmatmul.mubr.f32.gmra.mrb[0].mxu0 %v2581
    %v2583 = vpop.f32.mrb[0].mxu0
    %v2584 = vadd.f32 %v1950, %v2583
    %v2585 = vpop.f32.mrb[0].mxu0
    %v2586 = vadd.f32 %v1952, %v2585
    %2587 = vmatprep.mubr.f32.mxu0 0.0
    %v2588 = vand.u32 %v68, 4294901760
    %v2589 = vsub.f32 %v68, %v2588
    %v2590 = vand.u32 %v2589, 4294901760
    %2591 = vmatmul.mubr.f32.gmra.mrb[0].mxu0 %v2590
    %v2592 = vpop.f32.mrb[0].mxu0
    %v2593 = vadd.f32 %v1958, %v2592
    %v2594 = vpop.f32.mrb[0].mxu0
    %v2595 = vadd.f32 %v1960, %v2594
    %2596 = vmatprep.mubr.f32.mxu0 0.0
    %v2597 = vand.u32 %v69, 4294901760
    %v2598 = vsub.f32 %v69, %v2597
    %v2599 = vand.u32 %v2598, 4294901760
    %2600 = vmatmul.mubr.f32.gmra.mrb[0].mxu0 %v2599
    %v2601 = vpop.f32.mrb[0].mxu0
    %v2602 = vadd.f32 %v1966, %v2601
    %v2603 = vpop.f32.mrb[0].mxu0
    %v2604 = vadd.f32 %v1968, %v2603
    %2605 = vmatprep.mubr.f32.mxu0 0.0
    %v2606 = vand.u32 %v70, 4294901760
    %v2607 = vsub.f32 %v70, %v2606
    %v2608 = vand.u32 %v2607, 4294901760
    %2609 = vmatmul.mubr.f32.gmra.mrb[0].mxu0 %v2608
    %v2610 = vpop.f32.mrb[0].mxu0
    %v2611 = vadd.f32 %v1974, %v2610
    %v2612 = vpop.f32.mrb[0].mxu0
    %v2613 = vadd.f32 %v1976, %v2612
    %2614 = vmatprep.mubr.f32.mxu0 0.0
    %v2615 = vand.u32 %v71, 4294901760
    %v2616 = vsub.f32 %v71, %v2615
    %v2617 = vand.u32 %v2616, 4294901760
    %2618 = vmatmul.mubr.f32.gmra.mrb[0].mxu0 %v2617
    %v2619 = vpop.f32.mrb[0].mxu0
    %v2620 = vadd.f32 %v1982, %v2619
    %v2621 = vpop.f32.mrb[0].mxu0
    %v2622 = vadd.f32 %v1984, %v2621
    %2623 = vmatprep.mubr.f32.mxu0 0.0
    %v2624 = vand.u32 %v72, 4294901760
    %v2625 = vsub.f32 %v72, %v2624
    %v2626 = vand.u32 %v2625, 4294901760
    %2627 = vmatmul.mubr.f32.gmra.mrb[0].mxu0 %v2626
    %v2628 = vpop.f32.mrb[0].mxu0
    %v2629 = vadd.f32 %v1990, %v2628
    %v2630 = vpop.f32.mrb[0].mxu0
    %v2631 = vadd.f32 %v1992, %v2630
    %2632 = vmatprep.mubr.f32.mxu0 0.0
    %v2633 = vand.u32 %v73, 4294901760
    %v2634 = vsub.f32 %v73, %v2633
    %v2635 = vand.u32 %v2634, 4294901760
    %2636 = vmatmul.mubr.f32.gmra.mrb[0].mxu0 %v2635
    %v2637 = vpop.f32.mrb[0].mxu0
    %v2638 = vadd.f32 %v1998, %v2637
    %v2639 = vpop.f32.mrb[0].mxu0
    %v2640 = vadd.f32 %v2000, %v2639
    %2641 = vmatprep.mubr.f32.mxu0 0.0
    %v2642 = vand.u32 %v74, 4294901760
    %v2643 = vsub.f32 %v74, %v2642
    %v2644 = vand.u32 %v2643, 4294901760
    %2645 = vmatmul.mubr.f32.gmra.mrb[0].mxu0 %v2644
    %v2646 = vpop.f32.mrb[0].mxu0
    %v2647 = vadd.f32 %v2006, %v2646
    %v2648 = vpop.f32.mrb[0].mxu0
    %v2649 = vadd.f32 %v2008, %v2648
    %2650 = vmatprep.mubr.f32.mxu0 0.0
    %v2651 = vand.u32 %v75, 4294901760
    %v2652 = vsub.f32 %v75, %v2651
    %v2653 = vand.u32 %v2652, 4294901760
    %2654 = vmatmul.mubr.f32.gmra.mrb[0].mxu0 %v2653
    %v2655 = vpop.f32.mrb[0].mxu0
    %v2656 = vadd.f32 %v2014, %v2655
    %v2657 = vpop.f32.mrb[0].mxu0
    %v2658 = vadd.f32 %v2016, %v2657
    %2659 = vmatprep.mubr.f32.mxu0 0.0
    %v2660 = vand.u32 %v76, 4294901760
    %v2661 = vsub.f32 %v76, %v2660
    %v2662 = vand.u32 %v2661, 4294901760
    %2663 = vmatmul.mubr.f32.gmra.mrb[0].mxu0 %v2662
    %v2664 = vpop.f32.mrb[0].mxu0
    %v2665 = vadd.f32 %v2022, %v2664
    %v2666 = vpop.f32.mrb[0].mxu0
    %v2667 = vadd.f32 %v2024, %v2666
    %2668 = vmatprep.mubr.f32.mxu0 0.0
    %v2669 = vand.u32 %v77, 4294901760
    %v2670 = vsub.f32 %v77, %v2669
    %v2671 = vand.u32 %v2670, 4294901760
    %2672 = vmatmul.mubr.f32.gmra.mrb[0].mxu0 %v2671
    %v2673 = vpop.f32.mrb[0].mxu0
    %v2674 = vadd.f32 %v2030, %v2673
    %v2675 = vpop.f32.mrb[0].mxu0
    %v2676 = vadd.f32 %v2032, %v2675
    %2677 = vmatprep.mubr.f32.mxu0 0.0
    %v2678 = vand.u32 %v78, 4294901760
    %v2679 = vsub.f32 %v78, %v2678
    %v2680 = vand.u32 %v2679, 4294901760
    %2681 = vmatmul.mubr.f32.gmra.mrb[0].mxu0 %v2680
    %v2682 = vpop.f32.mrb[0].mxu0
    %v2683 = vadd.f32 %v2038, %v2682
    %v2684 = vpop.f32.mrb[0].mxu0
    %v2685 = vadd.f32 %v2040, %v2684
    %2686 = vmatprep.mubr.f32.mxu0 0.0
    %v2687 = vand.u32 %v79, 4294901760
    %v2688 = vsub.f32 %v79, %v2687
    %v2689 = vand.u32 %v2688, 4294901760
    %2690 = vmatmul.mubr.f32.gmra.mrb[0].mxu0 %v2689
    %v2691 = vpop.f32.mrb[0].mxu0
    %v2692 = vadd.f32 %v2046, %v2691
    %v2693 = vpop.f32.mrb[0].mxu0
    %v2694 = vadd.f32 %v2048, %v2693
    %2695 = vmatprep.mubr.f32.mxu0 0.0
    %v2696 = vand.u32 %v80, 4294901760
    %v2697 = vsub.f32 %v80, %v2696
    %v2698 = vand.u32 %v2697, 4294901760
    %2699 = vmatmul.mubr.f32.gmra.mrb[0].mxu0 %v2698
    %v2700 = vpop.f32.mrb[0].mxu0
    %v2701 = vadd.f32 %v2054, %v2700
    %v2702 = vpop.f32.mrb[0].mxu0
    %v2703 = vadd.f32 %v2056, %v2702
    %2704 = vmatprep.mubr.f32.mxu0 0.0
    %v2705 = vand.u32 %v81, 4294901760
    %v2706 = vsub.f32 %v81, %v2705
    %v2707 = vand.u32 %v2706, 4294901760
    %2708 = vmatmul.mubr.f32.gmra.mrb[0].mxu0 %v2707
    %v2709 = vpop.f32.mrb[0].mxu0
    %v2710 = vadd.f32 %v2062, %v2709
    %v2711 = vpop.f32.mrb[0].mxu0
    %v2712 = vadd.f32 %v2064, %v2711
    %2713 = vmatprep.mubr.f32.mxu0 0.0
    %v2714 = vand.u32 %v82, 4294901760
    %v2715 = vsub.f32 %v82, %v2714
    %v2716 = vand.u32 %v2715, 4294901760
    %2717 = vmatmul.mubr.f32.gmra.mrb[0].mxu0 %v2716
    %v2718 = vpop.f32.mrb[0].mxu0
    %v2719 = vadd.f32 %v2070, %v2718
    %v2720 = vpop.f32.mrb[0].mxu0
    %v2721 = vadd.f32 %v2072, %v2720
    %2722 = vmatprep.mubr.f32.mxu0 0.0
    %v2723 = vand.u32 %v83, 4294901760
    %v2724 = vsub.f32 %v83, %v2723
    %v2725 = vand.u32 %v2724, 4294901760
    %2726 = vmatmul.mubr.f32.gmra.mrb[0].mxu0 %v2725
    %v2727 = vpop.f32.mrb[0].mxu0
    %v2728 = vadd.f32 %v2078, %v2727
    %v2729 = vpop.f32.mrb[0].mxu0
    %v2730 = vadd.f32 %v2080, %v2729
    %2731 = vmatprep.mubr.f32.mxu0 0.0
    %v2732 = vand.u32 %v84, 4294901760
    %v2733 = vsub.f32 %v84, %v2732
    %v2734 = vand.u32 %v2733, 4294901760
    %2735 = vmatmul.mubr.f32.gmra.mrb[0].mxu0 %v2734
    %v2736 = vpop.f32.mrb[0].mxu0
    %v2737 = vadd.f32 %v2086, %v2736
    %v2738 = vpop.f32.mrb[0].mxu0
    %v2739 = vadd.f32 %v2088, %v2738
    %2740 = vmatprep.mubr.f32.mxu0 0.0
    %v2741 = vand.u32 %v85, 4294901760
    %v2742 = vsub.f32 %v85, %v2741
    %v2743 = vand.u32 %v2742, 4294901760
    %2744 = vmatmul.mubr.f32.gmra.mrb[0].mxu0 %v2743
    %v2745 = vpop.f32.mrb[0].mxu0
    %v2746 = vadd.f32 %v2094, %v2745
    %v2747 = vpop.f32.mrb[0].mxu0
    %v2748 = vadd.f32 %v2096, %v2747
    %2749 = vmatprep.mubr.f32.mxu0 0.0
    %v2750 = vand.u32 %v86, 4294901760
    %v2751 = vsub.f32 %v86, %v2750
    %v2752 = vand.u32 %v2751, 4294901760
    %2753 = vmatmul.mubr.f32.gmra.mrb[0].mxu0 %v2752
    %v2754 = vpop.f32.mrb[0].mxu0
    %v2755 = vadd.f32 %v2102, %v2754
    %v2756 = vpop.f32.mrb[0].mxu0
    %v2757 = vadd.f32 %v2104, %v2756
    %2758 = vmatprep.mubr.f32.mxu0 0.0
    %v2759 = vand.u32 %v87, 4294901760
    %v2760 = vsub.f32 %v87, %v2759
    %v2761 = vand.u32 %v2760, 4294901760
    %2762 = vmatmul.mubr.f32.gmra.mrb[0].mxu0 %v2761
    %v2763 = vpop.f32.mrb[0].mxu0
    %v2764 = vadd.f32 %v2110, %v2763
    %v2765 = vpop.f32.mrb[0].mxu0
    %v2766 = vadd.f32 %v2112, %v2765
    %2767 = vmatprep.mubr.f32.mxu0 0.0
    %v2768 = vand.u32 %v88, 4294901760
    %v2769 = vsub.f32 %v88, %v2768
    %v2770 = vand.u32 %v2769, 4294901760
    %2771 = vmatmul.mubr.f32.gmra.mrb[0].mxu0 %v2770
    %v2772 = vpop.f32.mrb[0].mxu0
    %v2773 = vadd.f32 %v2118, %v2772
    %v2774 = vpop.f32.mrb[0].mxu0
    %v2775 = vadd.f32 %v2120, %v2774
    %2776 = vmatprep.mubr.f32.mxu0 0.0
    %v2777 = vand.u32 %v89, 4294901760
    %v2778 = vsub.f32 %v89, %v2777
    %v2779 = vand.u32 %v2778, 4294901760
    %2780 = vmatmul.mubr.f32.gmra.mrb[0].mxu0 %v2779
    %v2781 = vpop.f32.mrb[0].mxu0
    %v2782 = vadd.f32 %v2126, %v2781
    %v2783 = vpop.f32.mrb[0].mxu0
    %v2784 = vadd.f32 %v2128, %v2783
    %2785 = vmatprep.mubr.f32.mxu0 0.0
    %v2786 = vand.u32 %v90, 4294901760
    %v2787 = vsub.f32 %v90, %v2786
    %v2788 = vand.u32 %v2787, 4294901760
    %2789 = vmatmul.mubr.f32.gmra.mrb[0].mxu0 %v2788
    %v2790 = vpop.f32.mrb[0].mxu0
    %v2791 = vadd.f32 %v2134, %v2790
    %v2792 = vpop.f32.mrb[0].mxu0
    %v2793 = vadd.f32 %v2136, %v2792
    %2794 = vmatprep.mubr.f32.mxu0 0.0
    %v2795 = vand.u32 %v91, 4294901760
    %v2796 = vsub.f32 %v91, %v2795
    %v2797 = vand.u32 %v2796, 4294901760
    %2798 = vmatmul.mubr.f32.gmra.mrb[0].mxu0 %v2797
    %v2799 = vpop.f32.mrb[0].mxu0
    %v2800 = vadd.f32 %v2142, %v2799
    %v2801 = vpop.f32.mrb[0].mxu0
    %v2802 = vadd.f32 %v2144, %v2801
    %2803 = vmatprep.mubr.f32.mxu0 0.0
    %v2804 = vand.u32 %v92, 4294901760
    %v2805 = vsub.f32 %v92, %v2804
    %v2806 = vand.u32 %v2805, 4294901760
    %2807 = vmatmul.mubr.f32.gmra.mrb[0].mxu0 %v2806
    %v2808 = vpop.f32.mrb[0].mxu0
    %v2809 = vadd.f32 %v2150, %v2808
    %v2810 = vpop.f32.mrb[0].mxu0
    %v2811 = vadd.f32 %v2152, %v2810
    %2812 = vmatprep.mubr.f32.mxu0 0.0
    %v2813 = vand.u32 %v93, 4294901760
    %v2814 = vsub.f32 %v93, %v2813
    %v2815 = vand.u32 %v2814, 4294901760
    %2816 = vmatmul.mubr.f32.gmra.mrb[0].mxu0 %v2815
    %v2817 = vpop.f32.mrb[0].mxu0
    %v2818 = vadd.f32 %v2158, %v2817
    %v2819 = vpop.f32.mrb[0].mxu0
    %v2820 = vadd.f32 %v2160, %v2819
    %2821 = vmatprep.mubr.f32.mxu0 0.0
    %v2822 = vand.u32 %v94, 4294901760
    %v2823 = vsub.f32 %v94, %v2822
    %v2824 = vand.u32 %v2823, 4294901760
    %2825 = vmatmul.mubr.f32.gmra.mrb[0].mxu0 %v2824
    %v2826 = vpop.f32.mrb[0].mxu0
    %v2827 = vadd.f32 %v2166, %v2826
    %v2828 = vpop.f32.mrb[0].mxu0
    %v2829 = vadd.f32 %v2168, %v2828
    %2830 = vmatprep.mubr.f32.mxu0 0.0
    %v2831 = vand.u32 %v95, 4294901760
    %v2832 = vsub.f32 %v95, %v2831
    %v2833 = vand.u32 %v2832, 4294901760
    %2834 = vmatmul.mubr.f32.gmra.mrb[0].mxu0 %v2833
    %v2835 = vpop.f32.mrb[0].mxu0
    %v2836 = vadd.f32 %v2174, %v2835
    %v2837 = vpop.f32.mrb[0].mxu0
    %v2838 = vadd.f32 %v2176, %v2837
    %2839 = vmatprep.mubr.f32.mxu0 0.0
    %v2840 = vand.u32 %v96, 4294901760
    %v2841 = vsub.f32 %v96, %v2840
    %v2842 = vand.u32 %v2841, 4294901760
    %2843 = vmatmul.mubr.f32.gmra.mrb[0].mxu0 %v2842
    %v2844 = vpop.f32.mrb[0].mxu0
    %v2845 = vadd.f32 %v2182, %v2844
    %v2846 = vpop.f32.mrb[0].mxu0
    %v2847 = vadd.f32 %v2184, %v2846
    %2848 = vmatprep.mubr.f32.mxu0 0.0
    %v2849 = vand.u32 %v97, 4294901760
    %v2850 = vsub.f32 %v97, %v2849
    %v2851 = vand.u32 %v2850, 4294901760
    %2852 = vmatmul.mubr.f32.gmra.mrb[0].mxu0 %v2851
    %v2853 = vpop.f32.mrb[0].mxu0
    %v2854 = vadd.f32 %v2190, %v2853
    %v2855 = vpop.f32.mrb[0].mxu0
    %v2856 = vadd.f32 %v2192, %v2855
    %2857 = vmatprep.mubr.f32.mxu0 0.0
    %v2858 = vand.u32 %v98, 4294901760
    %v2859 = vsub.f32 %v98, %v2858
    %v2860 = vand.u32 %v2859, 4294901760
    %2861 = vmatmul.mubr.f32.gmra.mrb[0].mxu0 %v2860
    %v2862 = vpop.f32.mrb[0].mxu0
    %v2863 = vadd.f32 %v2198, %v2862
    %v2864 = vpop.f32.mrb[0].mxu0
    %v2865 = vadd.f32 %v2200, %v2864
    %2866 = vmatprep.mubr.f32.mxu0 0.0
    %v2867 = vand.u32 %v99, 4294901760
    %v2868 = vsub.f32 %v99, %v2867
    %v2869 = vand.u32 %v2868, 4294901760
    %2870 = vmatmul.mubr.f32.gmra.mrb[0].mxu0 %v2869
    %v2871 = vpop.f32.mrb[0].mxu0
    %v2872 = vadd.f32 %v2206, %v2871
    %v2873 = vpop.f32.mrb[0].mxu0
    %v2874 = vadd.f32 %v2208, %v2873
    %2875 = vmatprep.mubr.f32.mxu0 0.0
    %v2876 = vand.u32 %v100, 4294901760
    %v2877 = vsub.f32 %v100, %v2876
    %v2878 = vand.u32 %v2877, 4294901760
    %2879 = vmatmul.mubr.f32.gmra.mrb[0].mxu0 %v2878
    %v2880 = vpop.f32.mrb[0].mxu0
    %v2881 = vadd.f32 %v2214, %v2880
    %v2882 = vpop.f32.mrb[0].mxu0
    %v2883 = vadd.f32 %v2216, %v2882
    %2884 = vmatprep.mubr.f32.mxu0 0.0
    %v2885 = vand.u32 %v101, 4294901760
    %v2886 = vsub.f32 %v101, %v2885
    %v2887 = vand.u32 %v2886, 4294901760
    %2888 = vmatmul.mubr.f32.gmra.mrb[0].mxu0 %v2887
    %v2889 = vpop.f32.mrb[0].mxu0
    %v2890 = vadd.f32 %v2222, %v2889
    %v2891 = vpop.f32.mrb[0].mxu0
    %v2892 = vadd.f32 %v2224, %v2891
    %2893 = vmatprep.mubr.f32.mxu0 0.0
    %v2894 = vand.u32 %v102, 4294901760
    %v2895 = vsub.f32 %v102, %v2894
    %v2896 = vand.u32 %v2895, 4294901760
    %2897 = vmatmul.mubr.f32.gmra.mrb[0].mxu0 %v2896
    %v2898 = vpop.f32.mrb[0].mxu0
    %v2899 = vadd.f32 %v2230, %v2898
    %v2900 = vpop.f32.mrb[0].mxu0
    %v2901 = vadd.f32 %v2232, %v2900
    %2902 = vmatprep.mubr.f32.mxu0 0.0
    %v2903 = vand.u32 %v103, 4294901760
    %v2904 = vsub.f32 %v103, %v2903
    %v2905 = vand.u32 %v2904, 4294901760
    %2906 = vmatmul.mubr.f32.gmra.mrb[0].mxu0 %v2905
    %v2907 = vpop.f32.mrb[0].mxu0
    %v2908 = vadd.f32 %v2238, %v2907
    %v2909 = vpop.f32.mrb[0].mxu0
    %v2910 = vadd.f32 %v2240, %v2909
    %2911 = vmatprep.mubr.f32.mxu0 0.0
    %v2912 = vand.u32 %v104, 4294901760
    %v2913 = vsub.f32 %v104, %v2912
    %v2914 = vand.u32 %v2913, 4294901760
    %2915 = vmatmul.mubr.f32.gmra.mrb[0].mxu0 %v2914
    %v2916 = vpop.f32.mrb[0].mxu0
    %v2917 = vadd.f32 %v2246, %v2916
    %v2918 = vpop.f32.mrb[0].mxu0
    %v2919 = vadd.f32 %v2248, %v2918
    %2920 = vmatprep.mubr.f32.mxu0 0.0
    %v2921 = vand.u32 %v105, 4294901760
    %v2922 = vsub.f32 %v105, %v2921
    %v2923 = vand.u32 %v2922, 4294901760
    %2924 = vmatmul.mubr.f32.gmra.mrb[0].mxu0 %v2923
    %v2925 = vpop.f32.mrb[0].mxu0
    %v2926 = vadd.f32 %v2254, %v2925
    %v2927 = vpop.f32.mrb[0].mxu0
    %v2928 = vadd.f32 %v2256, %v2927
    %2929 = vmatprep.mubr.f32.mxu0 0.0
    %v2930 = vand.u32 %v106, 4294901760
    %v2931 = vsub.f32 %v106, %v2930
    %v2932 = vand.u32 %v2931, 4294901760
    %2933 = vmatmul.mubr.f32.gmra.mrb[0].mxu0 %v2932
    %v2934 = vpop.f32.mrb[0].mxu0
    %v2935 = vadd.f32 %v2262, %v2934
    %v2936 = vpop.f32.mrb[0].mxu0
    %v2937 = vadd.f32 %v2264, %v2936
    %2938 = vdwg.mxu0
    %v2939 = vand.u32 %v108, 4294901760
    %v2940 = vsub.f32 %v108, %v2939
    %v2941 = vand.u32 %v2940, 4294901760
    %2942 = vmatprep.subr.mxu0 %v2941
    %v2943 = vand.u32 %v107, 4294901760
    %v2944 = vsub.f32 %v107, %v2943
    %v2945 = vand.u32 %v2944, 4294901760
    %2946 = vmatpush1.msra.mxu0 %v2945
    %v2947 = vand.u32 %v110, 4294901760
    %v2948 = vsub.f32 %v110, %v2947
    %v2949 = vand.u32 %v2948, 4294901760
    %2950 = vmatprep.subr.mxu0 %v2949
    %v2951 = vand.u32 %v109, 4294901760
    %v2952 = vsub.f32 %v109, %v2951
    %v2953 = vand.u32 %v2952, 4294901760
    %2954 = vmatpush1.msra.mxu0 %v2953
    %v2955 = vand.u32 %v112, 4294901760
    %v2956 = vsub.f32 %v112, %v2955
    %v2957 = vand.u32 %v2956, 4294901760
    %2958 = vmatprep.subr.mxu0 %v2957
    %v2959 = vand.u32 %v111, 4294901760
    %v2960 = vsub.f32 %v111, %v2959
    %v2961 = vand.u32 %v2960, 4294901760
    %2962 = vmatpush1.msra.mxu0 %v2961
    %v2963 = vand.u32 %v114, 4294901760
    %v2964 = vsub.f32 %v114, %v2963
    %v2965 = vand.u32 %v2964, 4294901760
    %2966 = vmatprep.subr.mxu0 %v2965
    %v2967 = vand.u32 %v113, 4294901760
    %v2968 = vsub.f32 %v113, %v2967
    %v2969 = vand.u32 %v2968, 4294901760
    %2970 = vmatpush1.msra.mxu0 %v2969
    %v2971 = vand.u32 %v116, 4294901760
    %v2972 = vsub.f32 %v116, %v2971
    %v2973 = vand.u32 %v2972, 4294901760
    %2974 = vmatprep.subr.mxu0 %v2973
    %v2975 = vand.u32 %v115, 4294901760
    %v2976 = vsub.f32 %v115, %v2975
    %v2977 = vand.u32 %v2976, 4294901760
    %2978 = vmatpush1.msra.mxu0 %v2977
    %v2979 = vand.u32 %v118, 4294901760
    %v2980 = vsub.f32 %v118, %v2979
    %v2981 = vand.u32 %v2980, 4294901760
    %2982 = vmatprep.subr.mxu0 %v2981
    %v2983 = vand.u32 %v117, 4294901760
    %v2984 = vsub.f32 %v117, %v2983
    %v2985 = vand.u32 %v2984, 4294901760
    %2986 = vmatpush1.msra.mxu0 %v2985
    %v2987 = vand.u32 %v120, 4294901760
    %v2988 = vsub.f32 %v120, %v2987
    %v2989 = vand.u32 %v2988, 4294901760
    %2990 = vmatprep.subr.mxu0 %v2989
    %v2991 = vand.u32 %v119, 4294901760
    %v2992 = vsub.f32 %v119, %v2991
    %v2993 = vand.u32 %v2992, 4294901760
    %2994 = vmatpush1.msra.mxu0 %v2993
    %v2995 = vand.u32 %v122, 4294901760
    %v2996 = vsub.f32 %v122, %v2995
    %v2997 = vand.u32 %v2996, 4294901760
    %2998 = vmatprep.subr.mxu0 %v2997
    %v2999 = vand.u32 %v121, 4294901760
    %v3000 = vsub.f32 %v121, %v2999
    %v3001 = vand.u32 %v3000, 4294901760
    %3002 = vmatpush1.msra.mxu0 %v3001
    %v3003 = vand.u32 %v124, 4294901760
    %v3004 = vsub.f32 %v124, %v3003
    %v3005 = vand.u32 %v3004, 4294901760
    %3006 = vmatprep.subr.mxu0 %v3005
    %v3007 = vand.u32 %v123, 4294901760
    %v3008 = vsub.f32 %v123, %v3007
    %v3009 = vand.u32 %v3008, 4294901760
    %3010 = vmatpush1.msra.mxu0 %v3009
    %v3011 = vand.u32 %v126, 4294901760
    %v3012 = vsub.f32 %v126, %v3011
    %v3013 = vand.u32 %v3012, 4294901760
    %3014 = vmatprep.subr.mxu0 %v3013
    %v3015 = vand.u32 %v125, 4294901760
    %v3016 = vsub.f32 %v125, %v3015
    %v3017 = vand.u32 %v3016, 4294901760
    %3018 = vmatpush1.msra.mxu0 %v3017
    %v3019 = vand.u32 %v128, 4294901760
    %v3020 = vsub.f32 %v128, %v3019
    %v3021 = vand.u32 %v3020, 4294901760
    %3022 = vmatprep.subr.mxu0 %v3021
    %v3023 = vand.u32 %v127, 4294901760
    %v3024 = vsub.f32 %v127, %v3023
    %v3025 = vand.u32 %v3024, 4294901760
    %3026 = vmatpush1.msra.mxu0 %v3025
    %v3027 = vand.u32 %v130, 4294901760
    %v3028 = vsub.f32 %v130, %v3027
    %v3029 = vand.u32 %v3028, 4294901760
    %3030 = vmatprep.subr.mxu0 %v3029
    %v3031 = vand.u32 %v129, 4294901760
    %v3032 = vsub.f32 %v129, %v3031
    %v3033 = vand.u32 %v3032, 4294901760
    %3034 = vmatpush1.msra.mxu0 %v3033
    %v3035 = vand.u32 %v132, 4294901760
    %v3036 = vsub.f32 %v132, %v3035
    %v3037 = vand.u32 %v3036, 4294901760
    %3038 = vmatprep.subr.mxu0 %v3037
    %v3039 = vand.u32 %v131, 4294901760
    %v3040 = vsub.f32 %v131, %v3039
    %v3041 = vand.u32 %v3040, 4294901760
    %3042 = vmatpush1.msra.mxu0 %v3041
    %v3043 = vand.u32 %v134, 4294901760
    %v3044 = vsub.f32 %v134, %v3043
    %v3045 = vand.u32 %v3044, 4294901760
    %3046 = vmatprep.subr.mxu0 %v3045
    %v3047 = vand.u32 %v133, 4294901760
    %v3048 = vsub.f32 %v133, %v3047
    %v3049 = vand.u32 %v3048, 4294901760
    %3050 = vmatpush1.msra.mxu0 %v3049
    %v3051 = vand.u32 %v136, 4294901760
    %v3052 = vsub.f32 %v136, %v3051
    %v3053 = vand.u32 %v3052, 4294901760
    %3054 = vmatprep.subr.mxu0 %v3053
    %v3055 = vand.u32 %v135, 4294901760
    %v3056 = vsub.f32 %v135, %v3055
    %v3057 = vand.u32 %v3056, 4294901760
    %3058 = vmatpush1.msra.mxu0 %v3057
    %v3059 = vand.u32 %v138, 4294901760
    %v3060 = vsub.f32 %v138, %v3059
    %v3061 = vand.u32 %v3060, 4294901760
    %3062 = vmatprep.subr.mxu0 %v3061
    %v3063 = vand.u32 %v137, 4294901760
    %v3064 = vsub.f32 %v137, %v3063
    %v3065 = vand.u32 %v3064, 4294901760
    %3066 = vmatpush1.msra.mxu0 %v3065
    %3067 = vmatprep.subr.mxu0 0.0
    %3068 = vmatpush1.msra.mxu0 0.0
    %3069 = vmatprep.subr.mxu0 0.0
    %3070 = vmatpush1.msra.mxu0 0.0
    %3071 = vmatprep.subr.mxu0 0.0
    %3072 = vmatpush1.msra.mxu0 0.0
    %3073 = vmatprep.subr.mxu0 0.0
    %3074 = vmatpush1.msra.mxu0 0.0
    %3075 = vmatprep.subr.mxu0 0.0
    %3076 = vmatpush1.msra.mxu0 0.0
    %3077 = vmatprep.subr.mxu0 0.0
    %3078 = vmatpush1.msra.mxu0 0.0
    %3079 = vmatprep.subr.mxu0 0.0
    %3080 = vmatpush1.msra.mxu0 0.0
    %3081 = vmatprep.subr.mxu0 0.0
    %3082 = vmatpush1.msra.mxu0 0.0
    %3083 = vmatprep.subr.mxu0 0.0
    %3084 = vmatpush1.msra.mxu0 0.0
    %3085 = vmatprep.subr.mxu0 0.0
    %3086 = vmatpush1.msra.mxu0 0.0
    %3087 = vmatprep.subr.mxu0 0.0
    %3088 = vmatpush1.msra.mxu0 0.0
    %3089 = vmatprep.subr.mxu0 0.0
    %3090 = vmatpush1.msra.mxu0 0.0
    %3091 = vmatprep.subr.mxu0 0.0
    %3092 = vmatpush1.msra.mxu0 0.0
    %3093 = vmatprep.subr.mxu0 0.0
    %3094 = vmatpush1.msra.mxu0 0.0
    %3095 = vmatprep.subr.mxu0 0.0
    %3096 = vmatpush1.msra.mxu0 0.0
    %3097 = vmatprep.subr.mxu0 0.0
    %3098 = vmatpush1.msra.mxu0 0.0
    %3099 = vmatprep.mubr.f32.mxu0 0.0
    %v3100 = vand.u32 %v43, 4294901760
    %3101 = vmatmul.mubr.f32.gmra.mrb[0].mxu0 %v3100
    %v3102 = vpop.f32.mrb[0].mxu0
    %v3103 = vadd.f32 %v2368, %v3102
    %v3104 = vpop.f32.mrb[0].mxu0
    %v3105 = vadd.f32 %v2370, %v3104
    %3106 = vmatprep.mubr.f32.mxu0 0.0
    %v3107 = vand.u32 %v44, 4294901760
    %3108 = vmatmul.mubr.f32.gmra.mrb[0].mxu0 %v3107
    %v3109 = vpop.f32.mrb[0].mxu0
    %v3110 = vadd.f32 %v2377, %v3109
    %v3111 = vpop.f32.mrb[0].mxu0
    %v3112 = vadd.f32 %v2379, %v3111
    %3113 = vmatprep.mubr.f32.mxu0 0.0
    %v3114 = vand.u32 %v45, 4294901760
    %3115 = vmatmul.mubr.f32.gmra.mrb[0].mxu0 %v3114
    %v3116 = vpop.f32.mrb[0].mxu0
    %v3117 = vadd.f32 %v2386, %v3116
    %v3118 = vpop.f32.mrb[0].mxu0
    %v3119 = vadd.f32 %v2388, %v3118
    %3120 = vmatprep.mubr.f32.mxu0 0.0
    %v3121 = vand.u32 %v46, 4294901760
    %3122 = vmatmul.mubr.f32.gmra.mrb[0].mxu0 %v3121
    %v3123 = vpop.f32.mrb[0].mxu0
    %v3124 = vadd.f32 %v2395, %v3123
    %v3125 = vpop.f32.mrb[0].mxu0
    %v3126 = vadd.f32 %v2397, %v3125
    %3127 = vmatprep.mubr.f32.mxu0 0.0
    %v3128 = vand.u32 %v47, 4294901760
    %3129 = vmatmul.mubr.f32.gmra.mrb[0].mxu0 %v3128
    %v3130 = vpop.f32.mrb[0].mxu0
    %v3131 = vadd.f32 %v2404, %v3130
    %v3132 = vpop.f32.mrb[0].mxu0
    %v3133 = vadd.f32 %v2406, %v3132
    %3134 = vmatprep.mubr.f32.mxu0 0.0
    %v3135 = vand.u32 %v48, 4294901760
    %3136 = vmatmul.mubr.f32.gmra.mrb[0].mxu0 %v3135
    %v3137 = vpop.f32.mrb[0].mxu0
    %v3138 = vadd.f32 %v2413, %v3137
    %v3139 = vpop.f32.mrb[0].mxu0
    %v3140 = vadd.f32 %v2415, %v3139
    %3141 = vmatprep.mubr.f32.mxu0 0.0
    %v3142 = vand.u32 %v49, 4294901760
    %3143 = vmatmul.mubr.f32.gmra.mrb[0].mxu0 %v3142
    %v3144 = vpop.f32.mrb[0].mxu0
    %v3145 = vadd.f32 %v2422, %v3144
    %v3146 = vpop.f32.mrb[0].mxu0
    %v3147 = vadd.f32 %v2424, %v3146
    %3148 = vmatprep.mubr.f32.mxu0 0.0
    %v3149 = vand.u32 %v50, 4294901760
    %3150 = vmatmul.mubr.f32.gmra.mrb[0].mxu0 %v3149
    %v3151 = vpop.f32.mrb[0].mxu0
    %v3152 = vadd.f32 %v2431, %v3151
    %v3153 = vpop.f32.mrb[0].mxu0
    %v3154 = vadd.f32 %v2433, %v3153
    %3155 = vmatprep.mubr.f32.mxu0 0.0
    %v3156 = vand.u32 %v51, 4294901760
    %3157 = vmatmul.mubr.f32.gmra.mrb[0].mxu0 %v3156
    %v3158 = vpop.f32.mrb[0].mxu0
    %v3159 = vadd.f32 %v2440, %v3158
    %v3160 = vpop.f32.mrb[0].mxu0
    %v3161 = vadd.f32 %v2442, %v3160
    %3162 = vmatprep.mubr.f32.mxu0 0.0
    %v3163 = vand.u32 %v52, 4294901760
    %3164 = vmatmul.mubr.f32.gmra.mrb[0].mxu0 %v3163
    %v3165 = vpop.f32.mrb[0].mxu0
    %v3166 = vadd.f32 %v2449, %v3165
    %v3167 = vpop.f32.mrb[0].mxu0
    %v3168 = vadd.f32 %v2451, %v3167
    %3169 = vmatprep.mubr.f32.mxu0 0.0
    %v3170 = vand.u32 %v53, 4294901760
    %3171 = vmatmul.mubr.f32.gmra.mrb[0].mxu0 %v3170
    %v3172 = vpop.f32.mrb[0].mxu0
    %v3173 = vadd.f32 %v2458, %v3172
    %v3174 = vpop.f32.mrb[0].mxu0
    %v3175 = vadd.f32 %v2460, %v3174
    %3176 = vmatprep.mubr.f32.mxu0 0.0
    %v3177 = vand.u32 %v54, 4294901760
    %3178 = vmatmul.mubr.f32.gmra.mrb[0].mxu0 %v3177
    %v3179 = vpop.f32.mrb[0].mxu0
    %v3180 = vadd.f32 %v2467, %v3179
    %v3181 = vpop.f32.mrb[0].mxu0
    %v3182 = vadd.f32 %v2469, %v3181
    %3183 = vmatprep.mubr.f32.mxu0 0.0
    %v3184 = vand.u32 %v55, 4294901760
    %3185 = vmatmul.mubr.f32.gmra.mrb[0].mxu0 %v3184
    %v3186 = vpop.f32.mrb[0].mxu0
    %v3187 = vadd.f32 %v2476, %v3186
    %v3188 = vpop.f32.mrb[0].mxu0
    %v3189 = vadd.f32 %v2478, %v3188
    %3190 = vmatprep.mubr.f32.mxu0 0.0
    %v3191 = vand.u32 %v56, 4294901760
    %3192 = vmatmul.mubr.f32.gmra.mrb[0].mxu0 %v3191
    %v3193 = vpop.f32.mrb[0].mxu0
    %v3194 = vadd.f32 %v2485, %v3193
    %v3195 = vpop.f32.mrb[0].mxu0
    %v3196 = vadd.f32 %v2487, %v3195
    %3197 = vmatprep.mubr.f32.mxu0 0.0
    %v3198 = vand.u32 %v57, 4294901760
    %3199 = vmatmul.mubr.f32.gmra.mrb[0].mxu0 %v3198
    %v3200 = vpop.f32.mrb[0].mxu0
    %v3201 = vadd.f32 %v2494, %v3200
    %v3202 = vpop.f32.mrb[0].mxu0
    %v3203 = vadd.f32 %v2496, %v3202
    %3204 = vmatprep.mubr.f32.mxu0 0.0
    %v3205 = vand.u32 %v58, 4294901760
    %3206 = vmatmul.mubr.f32.gmra.mrb[0].mxu0 %v3205
    %v3207 = vpop.f32.mrb[0].mxu0
    %v3208 = vadd.f32 %v2503, %v3207
    %v3209 = vpop.f32.mrb[0].mxu0
    %v3210 = vadd.f32 %v2505, %v3209
    %3211 = vmatprep.mubr.f32.mxu0 0.0
    %v3212 = vand.u32 %v59, 4294901760
    %3213 = vmatmul.mubr.f32.gmra.mrb[0].mxu0 %v3212
    %v3214 = vpop.f32.mrb[0].mxu0
    %v3215 = vadd.f32 %v2512, %v3214
    %v3216 = vpop.f32.mrb[0].mxu0
    %v3217 = vadd.f32 %v2514, %v3216
    %3218 = vmatprep.mubr.f32.mxu0 0.0
    %v3219 = vand.u32 %v60, 4294901760
    %3220 = vmatmul.mubr.f32.gmra.mrb[0].mxu0 %v3219
    %v3221 = vpop.f32.mrb[0].mxu0
    %v3222 = vadd.f32 %v2521, %v3221
    %v3223 = vpop.f32.mrb[0].mxu0
    %v3224 = vadd.f32 %v2523, %v3223
    %3225 = vmatprep.mubr.f32.mxu0 0.0
    %v3226 = vand.u32 %v61, 4294901760
    %3227 = vmatmul.mubr.f32.gmra.mrb[0].mxu0 %v3226
    %v3228 = vpop.f32.mrb[0].mxu0
    %v3229 = vadd.f32 %v2530, %v3228
    %v3230 = vpop.f32.mrb[0].mxu0
    %v3231 = vadd.f32 %v2532, %v3230
    %3232 = vmatprep.mubr.f32.mxu0 0.0
    %v3233 = vand.u32 %v62, 4294901760
    %3234 = vmatmul.mubr.f32.gmra.mrb[0].mxu0 %v3233
    %v3235 = vpop.f32.mrb[0].mxu0
    %v3236 = vadd.f32 %v2539, %v3235
    %v3237 = vpop.f32.mrb[0].mxu0
    %v3238 = vadd.f32 %v2541, %v3237
    %3239 = vmatprep.mubr.f32.mxu0 0.0
    %v3240 = vand.u32 %v63, 4294901760
    %3241 = vmatmul.mubr.f32.gmra.mrb[0].mxu0 %v3240
    %v3242 = vpop.f32.mrb[0].mxu0
    %v3243 = vadd.f32 %v2548, %v3242
    %v3244 = vpop.f32.mrb[0].mxu0
    %v3245 = vadd.f32 %v2550, %v3244
    %3246 = vmatprep.mubr.f32.mxu0 0.0
    %v3247 = vand.u32 %v64, 4294901760
    %3248 = vmatmul.mubr.f32.gmra.mrb[0].mxu0 %v3247
    %v3249 = vpop.f32.mrb[0].mxu0
    %v3250 = vadd.f32 %v2557, %v3249
    %v3251 = vpop.f32.mrb[0].mxu0
    %v3252 = vadd.f32 %v2559, %v3251
    %3253 = vmatprep.mubr.f32.mxu0 0.0
    %v3254 = vand.u32 %v65, 4294901760
    %3255 = vmatmul.mubr.f32.gmra.mrb[0].mxu0 %v3254
    %v3256 = vpop.f32.mrb[0].mxu0
    %v3257 = vadd.f32 %v2566, %v3256
    %v3258 = vpop.f32.mrb[0].mxu0
    %v3259 = vadd.f32 %v2568, %v3258
    %3260 = vmatprep.mubr.f32.mxu0 0.0
    %v3261 = vand.u32 %v66, 4294901760
    %3262 = vmatmul.mubr.f32.gmra.mrb[0].mxu0 %v3261
    %v3263 = vpop.f32.mrb[0].mxu0
    %v3264 = vadd.f32 %v2575, %v3263
    %v3265 = vpop.f32.mrb[0].mxu0
    %v3266 = vadd.f32 %v2577, %v3265
    %3267 = vmatprep.mubr.f32.mxu0 0.0
    %v3268 = vand.u32 %v67, 4294901760
    %3269 = vmatmul.mubr.f32.gmra.mrb[0].mxu0 %v3268
    %v3270 = vpop.f32.mrb[0].mxu0
    %v3271 = vadd.f32 %v2584, %v3270
    %v3272 = vpop.f32.mrb[0].mxu0
    %v3273 = vadd.f32 %v2586, %v3272
    %3274 = vmatprep.mubr.f32.mxu0 0.0
    %v3275 = vand.u32 %v68, 4294901760
    %3276 = vmatmul.mubr.f32.gmra.mrb[0].mxu0 %v3275
    %v3277 = vpop.f32.mrb[0].mxu0
    %v3278 = vadd.f32 %v2593, %v3277
    %v3279 = vpop.f32.mrb[0].mxu0
    %v3280 = vadd.f32 %v2595, %v3279
    %3281 = vmatprep.mubr.f32.mxu0 0.0
    %v3282 = vand.u32 %v69, 4294901760
    %3283 = vmatmul.mubr.f32.gmra.mrb[0].mxu0 %v3282
    %v3284 = vpop.f32.mrb[0].mxu0
    %v3285 = vadd.f32 %v2602, %v3284
    %v3286 = vpop.f32.mrb[0].mxu0
    %v3287 = vadd.f32 %v2604, %v3286
    %3288 = vmatprep.mubr.f32.mxu0 0.0
    %v3289 = vand.u32 %v70, 4294901760
    %3290 = vmatmul.mubr.f32.gmra.mrb[0].mxu0 %v3289
    %v3291 = vpop.f32.mrb[0].mxu0
    %v3292 = vadd.f32 %v2611, %v3291
    %v3293 = vpop.f32.mrb[0].mxu0
    %v3294 = vadd.f32 %v2613, %v3293
    %3295 = vmatprep.mubr.f32.mxu0 0.0
    %v3296 = vand.u32 %v71, 4294901760
    %3297 = vmatmul.mubr.f32.gmra.mrb[0].mxu0 %v3296
    %v3298 = vpop.f32.mrb[0].mxu0
    %v3299 = vadd.f32 %v2620, %v3298
    %v3300 = vpop.f32.mrb[0].mxu0
    %v3301 = vadd.f32 %v2622, %v3300
    %3302 = vmatprep.mubr.f32.mxu0 0.0
    %v3303 = vand.u32 %v72, 4294901760
    %3304 = vmatmul.mubr.f32.gmra.mrb[0].mxu0 %v3303
    %v3305 = vpop.f32.mrb[0].mxu0
    %v3306 = vadd.f32 %v2629, %v3305
    %v3307 = vpop.f32.mrb[0].mxu0
    %v3308 = vadd.f32 %v2631, %v3307
    %3309 = vmatprep.mubr.f32.mxu0 0.0
    %v3310 = vand.u32 %v73, 4294901760
    %3311 = vmatmul.mubr.f32.gmra.mrb[0].mxu0 %v3310
    %v3312 = vpop.f32.mrb[0].mxu0
    %v3313 = vadd.f32 %v2638, %v3312
    %v3314 = vpop.f32.mrb[0].mxu0
    %v3315 = vadd.f32 %v2640, %v3314
    %3316 = vmatprep.mubr.f32.mxu0 0.0
    %v3317 = vand.u32 %v74, 4294901760
    %3318 = vmatmul.mubr.f32.gmra.mrb[0].mxu0 %v3317
    %v3319 = vpop.f32.mrb[0].mxu0
    %v3320 = vadd.f32 %v2647, %v3319
    %v3321 = vpop.f32.mrb[0].mxu0
    %v3322 = vadd.f32 %v2649, %v3321
    %3323 = vmatprep.mubr.f32.mxu0 0.0
    %v3324 = vand.u32 %v75, 4294901760
    %3325 = vmatmul.mubr.f32.gmra.mrb[0].mxu0 %v3324
    %v3326 = vpop.f32.mrb[0].mxu0
    %v3327 = vadd.f32 %v2656, %v3326
    %v3328 = vpop.f32.mrb[0].mxu0
    %v3329 = vadd.f32 %v2658, %v3328
    %3330 = vmatprep.mubr.f32.mxu0 0.0
    %v3331 = vand.u32 %v76, 4294901760
    %3332 = vmatmul.mubr.f32.gmra.mrb[0].mxu0 %v3331
    %v3333 = vpop.f32.mrb[0].mxu0
    %v3334 = vadd.f32 %v2665, %v3333
    %v3335 = vpop.f32.mrb[0].mxu0
    %v3336 = vadd.f32 %v2667, %v3335
    %3337 = vmatprep.mubr.f32.mxu0 0.0
    %v3338 = vand.u32 %v77, 4294901760
    %3339 = vmatmul.mubr.f32.gmra.mrb[0].mxu0 %v3338
    %v3340 = vpop.f32.mrb[0].mxu0
    %v3341 = vadd.f32 %v2674, %v3340
    %v3342 = vpop.f32.mrb[0].mxu0
    %v3343 = vadd.f32 %v2676, %v3342
    %3344 = vmatprep.mubr.f32.mxu0 0.0
    %v3345 = vand.u32 %v78, 4294901760
    %3346 = vmatmul.mubr.f32.gmra.mrb[0].mxu0 %v3345
    %v3347 = vpop.f32.mrb[0].mxu0
    %v3348 = vadd.f32 %v2683, %v3347
    %v3349 = vpop.f32.mrb[0].mxu0
    %v3350 = vadd.f32 %v2685, %v3349
    %3351 = vmatprep.mubr.f32.mxu0 0.0
    %v3352 = vand.u32 %v79, 4294901760
    %3353 = vmatmul.mubr.f32.gmra.mrb[0].mxu0 %v3352
    %v3354 = vpop.f32.mrb[0].mxu0
    %v3355 = vadd.f32 %v2692, %v3354
    %v3356 = vpop.f32.mrb[0].mxu0
    %v3357 = vadd.f32 %v2694, %v3356
    %3358 = vmatprep.mubr.f32.mxu0 0.0
    %v3359 = vand.u32 %v80, 4294901760
    %3360 = vmatmul.mubr.f32.gmra.mrb[0].mxu0 %v3359
    %v3361 = vpop.f32.mrb[0].mxu0
    %v3362 = vadd.f32 %v2701, %v3361
    %v3363 = vpop.f32.mrb[0].mxu0
    %v3364 = vadd.f32 %v2703, %v3363
    %3365 = vmatprep.mubr.f32.mxu0 0.0
    %v3366 = vand.u32 %v81, 4294901760
    %3367 = vmatmul.mubr.f32.gmra.mrb[0].mxu0 %v3366
    %v3368 = vpop.f32.mrb[0].mxu0
    %v3369 = vadd.f32 %v2710, %v3368
    %v3370 = vpop.f32.mrb[0].mxu0
    %v3371 = vadd.f32 %v2712, %v3370
    %3372 = vmatprep.mubr.f32.mxu0 0.0
    %v3373 = vand.u32 %v82, 4294901760
    %3374 = vmatmul.mubr.f32.gmra.mrb[0].mxu0 %v3373
    %v3375 = vpop.f32.mrb[0].mxu0
    %v3376 = vadd.f32 %v2719, %v3375
    %v3377 = vpop.f32.mrb[0].mxu0
    %v3378 = vadd.f32 %v2721, %v3377
    %3379 = vmatprep.mubr.f32.mxu0 0.0
    %v3380 = vand.u32 %v83, 4294901760
    %3381 = vmatmul.mubr.f32.gmra.mrb[0].mxu0 %v3380
    %v3382 = vpop.f32.mrb[0].mxu0
    %v3383 = vadd.f32 %v2728, %v3382
    %v3384 = vpop.f32.mrb[0].mxu0
    %v3385 = vadd.f32 %v2730, %v3384
    %3386 = vmatprep.mubr.f32.mxu0 0.0
    %v3387 = vand.u32 %v84, 4294901760
    %3388 = vmatmul.mubr.f32.gmra.mrb[0].mxu0 %v3387
    %v3389 = vpop.f32.mrb[0].mxu0
    %v3390 = vadd.f32 %v2737, %v3389
    %v3391 = vpop.f32.mrb[0].mxu0
    %v3392 = vadd.f32 %v2739, %v3391
    %3393 = vmatprep.mubr.f32.mxu0 0.0
    %v3394 = vand.u32 %v85, 4294901760
    %3395 = vmatmul.mubr.f32.gmra.mrb[0].mxu0 %v3394
    %v3396 = vpop.f32.mrb[0].mxu0
    %v3397 = vadd.f32 %v2746, %v3396
    %v3398 = vpop.f32.mrb[0].mxu0
    %v3399 = vadd.f32 %v2748, %v3398
    %3400 = vmatprep.mubr.f32.mxu0 0.0
    %v3401 = vand.u32 %v86, 4294901760
    %3402 = vmatmul.mubr.f32.gmra.mrb[0].mxu0 %v3401
    %v3403 = vpop.f32.mrb[0].mxu0
    %v3404 = vadd.f32 %v2755, %v3403
    %v3405 = vpop.f32.mrb[0].mxu0
    %v3406 = vadd.f32 %v2757, %v3405
    %3407 = vmatprep.mubr.f32.mxu0 0.0
    %v3408 = vand.u32 %v87, 4294901760
    %3409 = vmatmul.mubr.f32.gmra.mrb[0].mxu0 %v3408
    %v3410 = vpop.f32.mrb[0].mxu0
    %v3411 = vadd.f32 %v2764, %v3410
    %v3412 = vpop.f32.mrb[0].mxu0
    %v3413 = vadd.f32 %v2766, %v3412
    %3414 = vmatprep.mubr.f32.mxu0 0.0
    %v3415 = vand.u32 %v88, 4294901760
    %3416 = vmatmul.mubr.f32.gmra.mrb[0].mxu0 %v3415
    %v3417 = vpop.f32.mrb[0].mxu0
    %v3418 = vadd.f32 %v2773, %v3417
    %v3419 = vpop.f32.mrb[0].mxu0
    %v3420 = vadd.f32 %v2775, %v3419
    %3421 = vmatprep.mubr.f32.mxu0 0.0
    %v3422 = vand.u32 %v89, 4294901760
    %3423 = vmatmul.mubr.f32.gmra.mrb[0].mxu0 %v3422
    %v3424 = vpop.f32.mrb[0].mxu0
    %v3425 = vadd.f32 %v2782, %v3424
    %v3426 = vpop.f32.mrb[0].mxu0
    %v3427 = vadd.f32 %v2784, %v3426
    %3428 = vmatprep.mubr.f32.mxu0 0.0
    %v3429 = vand.u32 %v90, 4294901760
    %3430 = vmatmul.mubr.f32.gmra.mrb[0].mxu0 %v3429
    %v3431 = vpop.f32.mrb[0].mxu0
    %v3432 = vadd.f32 %v2791, %v3431
    %v3433 = vpop.f32.mrb[0].mxu0
    %v3434 = vadd.f32 %v2793, %v3433
    %3435 = vmatprep.mubr.f32.mxu0 0.0
    %v3436 = vand.u32 %v91, 4294901760
    %3437 = vmatmul.mubr.f32.gmra.mrb[0].mxu0 %v3436
    %v3438 = vpop.f32.mrb[0].mxu0
    %v3439 = vadd.f32 %v2800, %v3438
    %v3440 = vpop.f32.mrb[0].mxu0
    %v3441 = vadd.f32 %v2802, %v3440
    %3442 = vmatprep.mubr.f32.mxu0 0.0
    %v3443 = vand.u32 %v92, 4294901760
    %3444 = vmatmul.mubr.f32.gmra.mrb[0].mxu0 %v3443
    %v3445 = vpop.f32.mrb[0].mxu0
    %v3446 = vadd.f32 %v2809, %v3445
    %v3447 = vpop.f32.mrb[0].mxu0
    %v3448 = vadd.f32 %v2811, %v3447
    %3449 = vmatprep.mubr.f32.mxu0 0.0
    %v3450 = vand.u32 %v93, 4294901760
    %3451 = vmatmul.mubr.f32.gmra.mrb[0].mxu0 %v3450
    %v3452 = vpop.f32.mrb[0].mxu0
    %v3453 = vadd.f32 %v2818, %v3452
    %v3454 = vpop.f32.mrb[0].mxu0
    %v3455 = vadd.f32 %v2820, %v3454
    %3456 = vmatprep.mubr.f32.mxu0 0.0
    %v3457 = vand.u32 %v94, 4294901760
    %3458 = vmatmul.mubr.f32.gmra.mrb[0].mxu0 %v3457
    %v3459 = vpop.f32.mrb[0].mxu0
    %v3460 = vadd.f32 %v2827, %v3459
    %v3461 = vpop.f32.mrb[0].mxu0
    %v3462 = vadd.f32 %v2829, %v3461
    %3463 = vmatprep.mubr.f32.mxu0 0.0
    %v3464 = vand.u32 %v95, 4294901760
    %3465 = vmatmul.mubr.f32.gmra.mrb[0].mxu0 %v3464
    %v3466 = vpop.f32.mrb[0].mxu0
    %v3467 = vadd.f32 %v2836, %v3466
    %v3468 = vpop.f32.mrb[0].mxu0
    %v3469 = vadd.f32 %v2838, %v3468
    %3470 = vmatprep.mubr.f32.mxu0 0.0
    %v3471 = vand.u32 %v96, 4294901760
    %3472 = vmatmul.mubr.f32.gmra.mrb[0].mxu0 %v3471
    %v3473 = vpop.f32.mrb[0].mxu0
    %v3474 = vadd.f32 %v2845, %v3473
    %v3475 = vpop.f32.mrb[0].mxu0
    %v3476 = vadd.f32 %v2847, %v3475
    %3477 = vmatprep.mubr.f32.mxu0 0.0
    %v3478 = vand.u32 %v97, 4294901760
    %3479 = vmatmul.mubr.f32.gmra.mrb[0].mxu0 %v3478
    %v3480 = vpop.f32.mrb[0].mxu0
    %v3481 = vadd.f32 %v2854, %v3480
    %v3482 = vpop.f32.mrb[0].mxu0
    %v3483 = vadd.f32 %v2856, %v3482
    %3484 = vmatprep.mubr.f32.mxu0 0.0
    %v3485 = vand.u32 %v98, 4294901760
    %3486 = vmatmul.mubr.f32.gmra.mrb[0].mxu0 %v3485
    %v3487 = vpop.f32.mrb[0].mxu0
    %v3488 = vadd.f32 %v2863, %v3487
    %v3489 = vpop.f32.mrb[0].mxu0
    %v3490 = vadd.f32 %v2865, %v3489
    %3491 = vmatprep.mubr.f32.mxu0 0.0
    %v3492 = vand.u32 %v99, 4294901760
    %3493 = vmatmul.mubr.f32.gmra.mrb[0].mxu0 %v3492
    %v3494 = vpop.f32.mrb[0].mxu0
    %v3495 = vadd.f32 %v2872, %v3494
    %v3496 = vpop.f32.mrb[0].mxu0
    %v3497 = vadd.f32 %v2874, %v3496
    %3498 = vmatprep.mubr.f32.mxu0 0.0
    %v3499 = vand.u32 %v100, 4294901760
    %3500 = vmatmul.mubr.f32.gmra.mrb[0].mxu0 %v3499
    %v3501 = vpop.f32.mrb[0].mxu0
    %v3502 = vadd.f32 %v2881, %v3501
    %v3503 = vpop.f32.mrb[0].mxu0
    %v3504 = vadd.f32 %v2883, %v3503
    %3505 = vmatprep.mubr.f32.mxu0 0.0
    %v3506 = vand.u32 %v101, 4294901760
    %3507 = vmatmul.mubr.f32.gmra.mrb[0].mxu0 %v3506
    %v3508 = vpop.f32.mrb[0].mxu0
    %v3509 = vadd.f32 %v2890, %v3508
    %v3510 = vpop.f32.mrb[0].mxu0
    %v3511 = vadd.f32 %v2892, %v3510
    %3512 = vmatprep.mubr.f32.mxu0 0.0
    %v3513 = vand.u32 %v102, 4294901760
    %3514 = vmatmul.mubr.f32.gmra.mrb[0].mxu0 %v3513
    %v3515 = vpop.f32.mrb[0].mxu0
    %v3516 = vadd.f32 %v2899, %v3515
    %v3517 = vpop.f32.mrb[0].mxu0
    %v3518 = vadd.f32 %v2901, %v3517
    %3519 = vmatprep.mubr.f32.mxu0 0.0
    %v3520 = vand.u32 %v103, 4294901760
    %3521 = vmatmul.mubr.f32.gmra.mrb[0].mxu0 %v3520
    %v3522 = vpop.f32.mrb[0].mxu0
    %v3523 = vadd.f32 %v2908, %v3522
    %v3524 = vpop.f32.mrb[0].mxu0
    %v3525 = vadd.f32 %v2910, %v3524
    %3526 = vmatprep.mubr.f32.mxu0 0.0
    %v3527 = vand.u32 %v104, 4294901760
    %3528 = vmatmul.mubr.f32.gmra.mrb[0].mxu0 %v3527
    %v3529 = vpop.f32.mrb[0].mxu0
    %v3530 = vadd.f32 %v2917, %v3529
    %v3531 = vpop.f32.mrb[0].mxu0
    %v3532 = vadd.f32 %v2919, %v3531
    %3533 = vmatprep.mubr.f32.mxu0 0.0
    %v3534 = vand.u32 %v105, 4294901760
    %3535 = vmatmul.mubr.f32.gmra.mrb[0].mxu0 %v3534
    %v3536 = vpop.f32.mrb[0].mxu0
    %v3537 = vadd.f32 %v2926, %v3536
    %v3538 = vpop.f32.mrb[0].mxu0
    %v3539 = vadd.f32 %v2928, %v3538
    %3540 = vmatprep.mubr.f32.mxu0 0.0
    %v3541 = vand.u32 %v106, 4294901760
    %3542 = vmatmul.mubr.f32.gmra.mrb[0].mxu0 %v3541
    %v3543 = vpop.f32.mrb[0].mxu0
    %v3544 = vadd.f32 %v2935, %v3543
    %v3545 = vpop.f32.mrb[0].mxu0
    %v3546 = vadd.f32 %v2937, %v3545
    %3547 = vdwg.mxu0
    %v3548 = vand.u32 %v108, 4294901760
    %3549 = vmatprep.subr.mxu0 %v3548
    %v3550 = vand.u32 %v107, 4294901760
    %3551 = vmatpush1.msra.mxu0 %v3550
    %v3552 = vand.u32 %v110, 4294901760
    %3553 = vmatprep.subr.mxu0 %v3552
    %v3554 = vand.u32 %v109, 4294901760
    %3555 = vmatpush1.msra.mxu0 %v3554
    %v3556 = vand.u32 %v112, 4294901760
    %3557 = vmatprep.subr.mxu0 %v3556
    %v3558 = vand.u32 %v111, 4294901760
    %3559 = vmatpush1.msra.mxu0 %v3558
    %v3560 = vand.u32 %v114, 4294901760
    %3561 = vmatprep.subr.mxu0 %v3560
    %v3562 = vand.u32 %v113, 4294901760
    %3563 = vmatpush1.msra.mxu0 %v3562
    %v3564 = vand.u32 %v116, 4294901760
    %3565 = vmatprep.subr.mxu0 %v3564
    %v3566 = vand.u32 %v115, 4294901760
    %3567 = vmatpush1.msra.mxu0 %v3566
    %v3568 = vand.u32 %v118, 4294901760
    %3569 = vmatprep.subr.mxu0 %v3568
    %v3570 = vand.u32 %v117, 4294901760
    %3571 = vmatpush1.msra.mxu0 %v3570
    %v3572 = vand.u32 %v120, 4294901760
    %3573 = vmatprep.subr.mxu0 %v3572
    %v3574 = vand.u32 %v119, 4294901760
    %3575 = vmatpush1.msra.mxu0 %v3574
    %v3576 = vand.u32 %v122, 4294901760
    %3577 = vmatprep.subr.mxu0 %v3576
    %v3578 = vand.u32 %v121, 4294901760
    %3579 = vmatpush1.msra.mxu0 %v3578
    %v3580 = vand.u32 %v124, 4294901760
    %3581 = vmatprep.subr.mxu0 %v3580
    %v3582 = vand.u32 %v123, 4294901760
    %3583 = vmatpush1.msra.mxu0 %v3582
    %v3584 = vand.u32 %v126, 4294901760
    %3585 = vmatprep.subr.mxu0 %v3584
    %v3586 = vand.u32 %v125, 4294901760
    %3587 = vmatpush1.msra.mxu0 %v3586
    %v3588 = vand.u32 %v128, 4294901760
    %3589 = vmatprep.subr.mxu0 %v3588
    %v3590 = vand.u32 %v127, 4294901760
    %3591 = vmatpush1.msra.mxu0 %v3590
    %v3592 = vand.u32 %v130, 4294901760
    %3593 = vmatprep.subr.mxu0 %v3592
    %v3594 = vand.u32 %v129, 4294901760
    %3595 = vmatpush1.msra.mxu0 %v3594
    %v3596 = vand.u32 %v132, 4294901760
    %3597 = vmatprep.subr.mxu0 %v3596
    %v3598 = vand.u32 %v131, 4294901760
    %3599 = vmatpush1.msra.mxu0 %v3598
    %v3600 = vand.u32 %v134, 4294901760
    %3601 = vmatprep.subr.mxu0 %v3600
    %v3602 = vand.u32 %v133, 4294901760
    %3603 = vmatpush1.msra.mxu0 %v3602
    %v3604 = vand.u32 %v136, 4294901760
    %3605 = vmatprep.subr.mxu0 %v3604
    %v3606 = vand.u32 %v135, 4294901760
    %3607 = vmatpush1.msra.mxu0 %v3606
    %v3608 = vand.u32 %v138, 4294901760
    %3609 = vmatprep.subr.mxu0 %v3608
    %v3610 = vand.u32 %v137, 4294901760
    %3611 = vmatpush1.msra.mxu0 %v3610
    %3612 = vmatprep.subr.mxu0 0.0
    %3613 = vmatpush1.msra.mxu0 0.0
    %3614 = vmatprep.subr.mxu0 0.0
    %3615 = vmatpush1.msra.mxu0 0.0
    %3616 = vmatprep.subr.mxu0 0.0
    %3617 = vmatpush1.msra.mxu0 0.0
    %3618 = vmatprep.subr.mxu0 0.0
    %3619 = vmatpush1.msra.mxu0 0.0
    %3620 = vmatprep.subr.mxu0 0.0
    %3621 = vmatpush1.msra.mxu0 0.0
    %3622 = vmatprep.subr.mxu0 0.0
    %3623 = vmatpush1.msra.mxu0 0.0
    %3624 = vmatprep.subr.mxu0 0.0
    %3625 = vmatpush1.msra.mxu0 0.0
    %3626 = vmatprep.subr.mxu0 0.0
    %3627 = vmatpush1.msra.mxu0 0.0
    %3628 = vmatprep.subr.mxu0 0.0
    %3629 = vmatpush1.msra.mxu0 0.0
    %3630 = vmatprep.subr.mxu0 0.0
    %3631 = vmatpush1.msra.mxu0 0.0
    %3632 = vmatprep.subr.mxu0 0.0
    %3633 = vmatpush1.msra.mxu0 0.0
    %3634 = vmatprep.subr.mxu0 0.0
    %3635 = vmatpush1.msra.mxu0 0.0
    %3636 = vmatprep.subr.mxu0 0.0
    %3637 = vmatpush1.msra.mxu0 0.0
    %3638 = vmatprep.subr.mxu0 0.0
    %3639 = vmatpush1.msra.mxu0 0.0
    %3640 = vmatprep.subr.mxu0 0.0
    %3641 = vmatpush1.msra.mxu0 0.0
    %3642 = vmatprep.subr.mxu0 0.0
    %3643 = vmatpush1.msra.mxu0 0.0
    %3644 = vmatprep.mubr.f32.mxu0 0.0
    %v3645 = vand.u32 %v43, 4294901760
    %3646 = vmatmul.mubr.f32.gmra.mrb[0].mxu0 %v3645
    %v3647 = vpop.f32.mrb[0].mxu0
    %v3648 = vadd.f32 %v3103, %v3647
    %v3649 = vpop.f32.mrb[0].mxu0
    %v3650 = vadd.f32 %v3105, %v3649
    %3651 = vmatprep.mubr.f32.mxu0 0.0
    %v3652 = vand.u32 %v44, 4294901760
    %3653 = vmatmul.mubr.f32.gmra.mrb[0].mxu0 %v3652
    %v3654 = vpop.f32.mrb[0].mxu0
    %v3655 = vadd.f32 %v3110, %v3654
    %v3656 = vpop.f32.mrb[0].mxu0
    %v3657 = vadd.f32 %v3112, %v3656
    %3658 = vmatprep.mubr.f32.mxu0 0.0
    %v3659 = vand.u32 %v45, 4294901760
    %3660 = vmatmul.mubr.f32.gmra.mrb[0].mxu0 %v3659
    %v3661 = vpop.f32.mrb[0].mxu0
    %v3662 = vadd.f32 %v3117, %v3661
    %v3663 = vpop.f32.mrb[0].mxu0
    %v3664 = vadd.f32 %v3119, %v3663
    %3665 = vmatprep.mubr.f32.mxu0 0.0
    %v3666 = vand.u32 %v46, 4294901760
    %3667 = vmatmul.mubr.f32.gmra.mrb[0].mxu0 %v3666
    %v3668 = vpop.f32.mrb[0].mxu0
    %v3669 = vadd.f32 %v3124, %v3668
    %v3670 = vpop.f32.mrb[0].mxu0
    %v3671 = vadd.f32 %v3126, %v3670
    %3672 = vmatprep.mubr.f32.mxu0 0.0
    %v3673 = vand.u32 %v47, 4294901760
    %3674 = vmatmul.mubr.f32.gmra.mrb[0].mxu0 %v3673
    %v3675 = vpop.f32.mrb[0].mxu0
    %v3676 = vadd.f32 %v3131, %v3675
    %v3677 = vpop.f32.mrb[0].mxu0
    %v3678 = vadd.f32 %v3133, %v3677
    %3679 = vmatprep.mubr.f32.mxu0 0.0
    %v3680 = vand.u32 %v48, 4294901760
    %3681 = vmatmul.mubr.f32.gmra.mrb[0].mxu0 %v3680
    %v3682 = vpop.f32.mrb[0].mxu0
    %v3683 = vadd.f32 %v3138, %v3682
    %v3684 = vpop.f32.mrb[0].mxu0
    %v3685 = vadd.f32 %v3140, %v3684
    %3686 = vmatprep.mubr.f32.mxu0 0.0
    %v3687 = vand.u32 %v49, 4294901760
    %3688 = vmatmul.mubr.f32.gmra.mrb[0].mxu0 %v3687
    %v3689 = vpop.f32.mrb[0].mxu0
    %v3690 = vadd.f32 %v3145, %v3689
    %v3691 = vpop.f32.mrb[0].mxu0
    %v3692 = vadd.f32 %v3147, %v3691
    %3693 = vmatprep.mubr.f32.mxu0 0.0
    %v3694 = vand.u32 %v50, 4294901760
    %3695 = vmatmul.mubr.f32.gmra.mrb[0].mxu0 %v3694
    %v3696 = vpop.f32.mrb[0].mxu0
    %v3697 = vadd.f32 %v3152, %v3696
    %v3698 = vpop.f32.mrb[0].mxu0
    %v3699 = vadd.f32 %v3154, %v3698
    %3700 = vmatprep.mubr.f32.mxu0 0.0
    %v3701 = vand.u32 %v51, 4294901760
    %3702 = vmatmul.mubr.f32.gmra.mrb[0].mxu0 %v3701
    %v3703 = vpop.f32.mrb[0].mxu0
    %v3704 = vadd.f32 %v3159, %v3703
    %v3705 = vpop.f32.mrb[0].mxu0
    %v3706 = vadd.f32 %v3161, %v3705
    %3707 = vmatprep.mubr.f32.mxu0 0.0
    %v3708 = vand.u32 %v52, 4294901760
    %3709 = vmatmul.mubr.f32.gmra.mrb[0].mxu0 %v3708
    %v3710 = vpop.f32.mrb[0].mxu0
    %v3711 = vadd.f32 %v3166, %v3710
    %v3712 = vpop.f32.mrb[0].mxu0
    %v3713 = vadd.f32 %v3168, %v3712
    %3714 = vmatprep.mubr.f32.mxu0 0.0
    %v3715 = vand.u32 %v53, 4294901760
    %3716 = vmatmul.mubr.f32.gmra.mrb[0].mxu0 %v3715
    %v3717 = vpop.f32.mrb[0].mxu0
    %v3718 = vadd.f32 %v3173, %v3717
    %v3719 = vpop.f32.mrb[0].mxu0
    %v3720 = vadd.f32 %v3175, %v3719
    %3721 = vmatprep.mubr.f32.mxu0 0.0
    %v3722 = vand.u32 %v54, 4294901760
    %3723 = vmatmul.mubr.f32.gmra.mrb[0].mxu0 %v3722
    %v3724 = vpop.f32.mrb[0].mxu0
    %v3725 = vadd.f32 %v3180, %v3724
    %v3726 = vpop.f32.mrb[0].mxu0
    %v3727 = vadd.f32 %v3182, %v3726
    %3728 = vmatprep.mubr.f32.mxu0 0.0
    %v3729 = vand.u32 %v55, 4294901760
    %3730 = vmatmul.mubr.f32.gmra.mrb[0].mxu0 %v3729
    %v3731 = vpop.f32.mrb[0].mxu0
    %v3732 = vadd.f32 %v3187, %v3731
    %v3733 = vpop.f32.mrb[0].mxu0
    %v3734 = vadd.f32 %v3189, %v3733
    %3735 = vmatprep.mubr.f32.mxu0 0.0
    %v3736 = vand.u32 %v56, 4294901760
    %3737 = vmatmul.mubr.f32.gmra.mrb[0].mxu0 %v3736
    %v3738 = vpop.f32.mrb[0].mxu0
    %v3739 = vadd.f32 %v3194, %v3738
    %v3740 = vpop.f32.mrb[0].mxu0
    %v3741 = vadd.f32 %v3196, %v3740
    %3742 = vmatprep.mubr.f32.mxu0 0.0
    %v3743 = vand.u32 %v57, 4294901760
    %3744 = vmatmul.mubr.f32.gmra.mrb[0].mxu0 %v3743
    %v3745 = vpop.f32.mrb[0].mxu0
    %v3746 = vadd.f32 %v3201, %v3745
    %v3747 = vpop.f32.mrb[0].mxu0
    %v3748 = vadd.f32 %v3203, %v3747
    %3749 = vmatprep.mubr.f32.mxu0 0.0
    %v3750 = vand.u32 %v58, 4294901760
    %3751 = vmatmul.mubr.f32.gmra.mrb[0].mxu0 %v3750
    %v3752 = vpop.f32.mrb[0].mxu0
    %v3753 = vadd.f32 %v3208, %v3752
    %v3754 = vpop.f32.mrb[0].mxu0
    %v3755 = vadd.f32 %v3210, %v3754
    %3756 = vmatprep.mubr.f32.mxu0 0.0
    %v3757 = vand.u32 %v59, 4294901760
    %3758 = vmatmul.mubr.f32.gmra.mrb[0].mxu0 %v3757
    %v3759 = vpop.f32.mrb[0].mxu0
    %v3760 = vadd.f32 %v3215, %v3759
    %v3761 = vpop.f32.mrb[0].mxu0
    %v3762 = vadd.f32 %v3217, %v3761
    %3763 = vmatprep.mubr.f32.mxu0 0.0
    %v3764 = vand.u32 %v60, 4294901760
    %3765 = vmatmul.mubr.f32.gmra.mrb[0].mxu0 %v3764
    %v3766 = vpop.f32.mrb[0].mxu0
    %v3767 = vadd.f32 %v3222, %v3766
    %v3768 = vpop.f32.mrb[0].mxu0
    %v3769 = vadd.f32 %v3224, %v3768
    %3770 = vmatprep.mubr.f32.mxu0 0.0
    %v3771 = vand.u32 %v61, 4294901760
    %3772 = vmatmul.mubr.f32.gmra.mrb[0].mxu0 %v3771
    %v3773 = vpop.f32.mrb[0].mxu0
    %v3774 = vadd.f32 %v3229, %v3773
    %v3775 = vpop.f32.mrb[0].mxu0
    %v3776 = vadd.f32 %v3231, %v3775
    %3777 = vmatprep.mubr.f32.mxu0 0.0
    %v3778 = vand.u32 %v62, 4294901760
    %3779 = vmatmul.mubr.f32.gmra.mrb[0].mxu0 %v3778
    %v3780 = vpop.f32.mrb[0].mxu0
    %v3781 = vadd.f32 %v3236, %v3780
    %v3782 = vpop.f32.mrb[0].mxu0
    %v3783 = vadd.f32 %v3238, %v3782
    %3784 = vmatprep.mubr.f32.mxu0 0.0
    %v3785 = vand.u32 %v63, 4294901760
    %3786 = vmatmul.mubr.f32.gmra.mrb[0].mxu0 %v3785
    %v3787 = vpop.f32.mrb[0].mxu0
    %v3788 = vadd.f32 %v3243, %v3787
    %v3789 = vpop.f32.mrb[0].mxu0
    %v3790 = vadd.f32 %v3245, %v3789
    %3791 = vmatprep.mubr.f32.mxu0 0.0
    %v3792 = vand.u32 %v64, 4294901760
    %3793 = vmatmul.mubr.f32.gmra.mrb[0].mxu0 %v3792
    %v3794 = vpop.f32.mrb[0].mxu0
    %v3795 = vadd.f32 %v3250, %v3794
    %v3796 = vpop.f32.mrb[0].mxu0
    %v3797 = vadd.f32 %v3252, %v3796
    %3798 = vmatprep.mubr.f32.mxu0 0.0
    %v3799 = vand.u32 %v65, 4294901760
    %3800 = vmatmul.mubr.f32.gmra.mrb[0].mxu0 %v3799
    %v3801 = vpop.f32.mrb[0].mxu0
    %v3802 = vadd.f32 %v3257, %v3801
    %v3803 = vpop.f32.mrb[0].mxu0
    %v3804 = vadd.f32 %v3259, %v3803
    %3805 = vmatprep.mubr.f32.mxu0 0.0
    %v3806 = vand.u32 %v66, 4294901760
    %3807 = vmatmul.mubr.f32.gmra.mrb[0].mxu0 %v3806
    %v3808 = vpop.f32.mrb[0].mxu0
    %v3809 = vadd.f32 %v3264, %v3808
    %v3810 = vpop.f32.mrb[0].mxu0
    %v3811 = vadd.f32 %v3266, %v3810
    %3812 = vmatprep.mubr.f32.mxu0 0.0
    %v3813 = vand.u32 %v67, 4294901760
    %3814 = vmatmul.mubr.f32.gmra.mrb[0].mxu0 %v3813
    %v3815 = vpop.f32.mrb[0].mxu0
    %v3816 = vadd.f32 %v3271, %v3815
    %v3817 = vpop.f32.mrb[0].mxu0
    %v3818 = vadd.f32 %v3273, %v3817
    %3819 = vmatprep.mubr.f32.mxu0 0.0
    %v3820 = vand.u32 %v68, 4294901760
    %3821 = vmatmul.mubr.f32.gmra.mrb[0].mxu0 %v3820
    %v3822 = vpop.f32.mrb[0].mxu0
    %v3823 = vadd.f32 %v3278, %v3822
    %v3824 = vpop.f32.mrb[0].mxu0
    %v3825 = vadd.f32 %v3280, %v3824
    %3826 = vmatprep.mubr.f32.mxu0 0.0
    %v3827 = vand.u32 %v69, 4294901760
    %3828 = vmatmul.mubr.f32.gmra.mrb[0].mxu0 %v3827
    %v3829 = vpop.f32.mrb[0].mxu0
    %v3830 = vadd.f32 %v3285, %v3829
    %v3831 = vpop.f32.mrb[0].mxu0
    %v3832 = vadd.f32 %v3287, %v3831
    %3833 = vmatprep.mubr.f32.mxu0 0.0
    %v3834 = vand.u32 %v70, 4294901760
    %3835 = vmatmul.mubr.f32.gmra.mrb[0].mxu0 %v3834
    %v3836 = vpop.f32.mrb[0].mxu0
    %v3837 = vadd.f32 %v3292, %v3836
    %v3838 = vpop.f32.mrb[0].mxu0
    %v3839 = vadd.f32 %v3294, %v3838
    %3840 = vmatprep.mubr.f32.mxu0 0.0
    %v3841 = vand.u32 %v71, 4294901760
    %3842 = vmatmul.mubr.f32.gmra.mrb[0].mxu0 %v3841
    %v3843 = vpop.f32.mrb[0].mxu0
    %v3844 = vadd.f32 %v3299, %v3843
    %v3845 = vpop.f32.mrb[0].mxu0
    %v3846 = vadd.f32 %v3301, %v3845
    %3847 = vmatprep.mubr.f32.mxu0 0.0
    %v3848 = vand.u32 %v72, 4294901760
    %3849 = vmatmul.mubr.f32.gmra.mrb[0].mxu0 %v3848
    %v3850 = vpop.f32.mrb[0].mxu0
    %v3851 = vadd.f32 %v3306, %v3850
    %v3852 = vpop.f32.mrb[0].mxu0
    %v3853 = vadd.f32 %v3308, %v3852
    %3854 = vmatprep.mubr.f32.mxu0 0.0
    %v3855 = vand.u32 %v73, 4294901760
    %3856 = vmatmul.mubr.f32.gmra.mrb[0].mxu0 %v3855
    %v3857 = vpop.f32.mrb[0].mxu0
    %v3858 = vadd.f32 %v3313, %v3857
    %v3859 = vpop.f32.mrb[0].mxu0
    %v3860 = vadd.f32 %v3315, %v3859
    %3861 = vmatprep.mubr.f32.mxu0 0.0
    %v3862 = vand.u32 %v74, 4294901760
    %3863 = vmatmul.mubr.f32.gmra.mrb[0].mxu0 %v3862
    %v3864 = vpop.f32.mrb[0].mxu0
    %v3865 = vadd.f32 %v3320, %v3864
    %v3866 = vpop.f32.mrb[0].mxu0
    %v3867 = vadd.f32 %v3322, %v3866
    %3868 = vmatprep.mubr.f32.mxu0 0.0
    %v3869 = vand.u32 %v75, 4294901760
    %3870 = vmatmul.mubr.f32.gmra.mrb[0].mxu0 %v3869
    %v3871 = vpop.f32.mrb[0].mxu0
    %v3872 = vadd.f32 %v3327, %v3871
    %v3873 = vpop.f32.mrb[0].mxu0
    %v3874 = vadd.f32 %v3329, %v3873
    %3875 = vmatprep.mubr.f32.mxu0 0.0
    %v3876 = vand.u32 %v76, 4294901760
    %3877 = vmatmul.mubr.f32.gmra.mrb[0].mxu0 %v3876
    %v3878 = vpop.f32.mrb[0].mxu0
    %v3879 = vadd.f32 %v3334, %v3878
    %v3880 = vpop.f32.mrb[0].mxu0
    %v3881 = vadd.f32 %v3336, %v3880
    %3882 = vmatprep.mubr.f32.mxu0 0.0
    %v3883 = vand.u32 %v77, 4294901760
    %3884 = vmatmul.mubr.f32.gmra.mrb[0].mxu0 %v3883
    %v3885 = vpop.f32.mrb[0].mxu0
    %v3886 = vadd.f32 %v3341, %v3885
    %v3887 = vpop.f32.mrb[0].mxu0
    %v3888 = vadd.f32 %v3343, %v3887
    %3889 = vmatprep.mubr.f32.mxu0 0.0
    %v3890 = vand.u32 %v78, 4294901760
    %3891 = vmatmul.mubr.f32.gmra.mrb[0].mxu0 %v3890
    %v3892 = vpop.f32.mrb[0].mxu0
    %v3893 = vadd.f32 %v3348, %v3892
    %v3894 = vpop.f32.mrb[0].mxu0
    %v3895 = vadd.f32 %v3350, %v3894
    %3896 = vmatprep.mubr.f32.mxu0 0.0
    %v3897 = vand.u32 %v79, 4294901760
    %3898 = vmatmul.mubr.f32.gmra.mrb[0].mxu0 %v3897
    %v3899 = vpop.f32.mrb[0].mxu0
    %v3900 = vadd.f32 %v3355, %v3899
    %v3901 = vpop.f32.mrb[0].mxu0
    %v3902 = vadd.f32 %v3357, %v3901
    %3903 = vmatprep.mubr.f32.mxu0 0.0
    %v3904 = vand.u32 %v80, 4294901760
    %3905 = vmatmul.mubr.f32.gmra.mrb[0].mxu0 %v3904
    %v3906 = vpop.f32.mrb[0].mxu0
    %v3907 = vadd.f32 %v3362, %v3906
    %v3908 = vpop.f32.mrb[0].mxu0
    %v3909 = vadd.f32 %v3364, %v3908
    %3910 = vmatprep.mubr.f32.mxu0 0.0
    %v3911 = vand.u32 %v81, 4294901760
    %3912 = vmatmul.mubr.f32.gmra.mrb[0].mxu0 %v3911
    %v3913 = vpop.f32.mrb[0].mxu0
    %v3914 = vadd.f32 %v3369, %v3913
    %v3915 = vpop.f32.mrb[0].mxu0
    %v3916 = vadd.f32 %v3371, %v3915
    %3917 = vmatprep.mubr.f32.mxu0 0.0
    %v3918 = vand.u32 %v82, 4294901760
    %3919 = vmatmul.mubr.f32.gmra.mrb[0].mxu0 %v3918
    %v3920 = vpop.f32.mrb[0].mxu0
    %v3921 = vadd.f32 %v3376, %v3920
    %v3922 = vpop.f32.mrb[0].mxu0
    %v3923 = vadd.f32 %v3378, %v3922
    %3924 = vmatprep.mubr.f32.mxu0 0.0
    %v3925 = vand.u32 %v83, 4294901760
    %3926 = vmatmul.mubr.f32.gmra.mrb[0].mxu0 %v3925
    %v3927 = vpop.f32.mrb[0].mxu0
    %v3928 = vadd.f32 %v3383, %v3927
    %v3929 = vpop.f32.mrb[0].mxu0
    %v3930 = vadd.f32 %v3385, %v3929
    %3931 = vmatprep.mubr.f32.mxu0 0.0
    %v3932 = vand.u32 %v84, 4294901760
    %3933 = vmatmul.mubr.f32.gmra.mrb[0].mxu0 %v3932
    %v3934 = vpop.f32.mrb[0].mxu0
    %v3935 = vadd.f32 %v3390, %v3934
    %v3936 = vpop.f32.mrb[0].mxu0
    %v3937 = vadd.f32 %v3392, %v3936
    %3938 = vmatprep.mubr.f32.mxu0 0.0
    %v3939 = vand.u32 %v85, 4294901760
    %3940 = vmatmul.mubr.f32.gmra.mrb[0].mxu0 %v3939
    %v3941 = vpop.f32.mrb[0].mxu0
    %v3942 = vadd.f32 %v3397, %v3941
    %v3943 = vpop.f32.mrb[0].mxu0
    %v3944 = vadd.f32 %v3399, %v3943
    %3945 = vmatprep.mubr.f32.mxu0 0.0
    %v3946 = vand.u32 %v86, 4294901760
    %3947 = vmatmul.mubr.f32.gmra.mrb[0].mxu0 %v3946
    %v3948 = vpop.f32.mrb[0].mxu0
    %v3949 = vadd.f32 %v3404, %v3948
    %v3950 = vpop.f32.mrb[0].mxu0
    %v3951 = vadd.f32 %v3406, %v3950
    %3952 = vmatprep.mubr.f32.mxu0 0.0
    %v3953 = vand.u32 %v87, 4294901760
    %3954 = vmatmul.mubr.f32.gmra.mrb[0].mxu0 %v3953
    %v3955 = vpop.f32.mrb[0].mxu0
    %v3956 = vadd.f32 %v3411, %v3955
    %v3957 = vpop.f32.mrb[0].mxu0
    %v3958 = vadd.f32 %v3413, %v3957
    %3959 = vmatprep.mubr.f32.mxu0 0.0
    %v3960 = vand.u32 %v88, 4294901760
    %3961 = vmatmul.mubr.f32.gmra.mrb[0].mxu0 %v3960
    %v3962 = vpop.f32.mrb[0].mxu0
    %v3963 = vadd.f32 %v3418, %v3962
    %v3964 = vpop.f32.mrb[0].mxu0
    %v3965 = vadd.f32 %v3420, %v3964
    %3966 = vmatprep.mubr.f32.mxu0 0.0
    %v3967 = vand.u32 %v89, 4294901760
    %3968 = vmatmul.mubr.f32.gmra.mrb[0].mxu0 %v3967
    %v3969 = vpop.f32.mrb[0].mxu0
    %v3970 = vadd.f32 %v3425, %v3969
    %v3971 = vpop.f32.mrb[0].mxu0
    %v3972 = vadd.f32 %v3427, %v3971
    %3973 = vmatprep.mubr.f32.mxu0 0.0
    %v3974 = vand.u32 %v90, 4294901760
    %3975 = vmatmul.mubr.f32.gmra.mrb[0].mxu0 %v3974
    %v3976 = vpop.f32.mrb[0].mxu0
    %v3977 = vadd.f32 %v3432, %v3976
    %v3978 = vpop.f32.mrb[0].mxu0
    %v3979 = vadd.f32 %v3434, %v3978
    %3980 = vmatprep.mubr.f32.mxu0 0.0
    %v3981 = vand.u32 %v91, 4294901760
    %3982 = vmatmul.mubr.f32.gmra.mrb[0].mxu0 %v3981
    %v3983 = vpop.f32.mrb[0].mxu0
    %v3984 = vadd.f32 %v3439, %v3983
    %v3985 = vpop.f32.mrb[0].mxu0
    %v3986 = vadd.f32 %v3441, %v3985
    %3987 = vmatprep.mubr.f32.mxu0 0.0
    %v3988 = vand.u32 %v92, 4294901760
    %3989 = vmatmul.mubr.f32.gmra.mrb[0].mxu0 %v3988
    %v3990 = vpop.f32.mrb[0].mxu0
    %v3991 = vadd.f32 %v3446, %v3990
    %v3992 = vpop.f32.mrb[0].mxu0
    %v3993 = vadd.f32 %v3448, %v3992
    %3994 = vmatprep.mubr.f32.mxu0 0.0
    %v3995 = vand.u32 %v93, 4294901760
    %3996 = vmatmul.mubr.f32.gmra.mrb[0].mxu0 %v3995
    %v3997 = vpop.f32.mrb[0].mxu0
    %v3998 = vadd.f32 %v3453, %v3997
    %v3999 = vpop.f32.mrb[0].mxu0
    %v4000 = vadd.f32 %v3455, %v3999
    %4001 = vmatprep.mubr.f32.mxu0 0.0
    %v4002 = vand.u32 %v94, 4294901760
    %4003 = vmatmul.mubr.f32.gmra.mrb[0].mxu0 %v4002
    %v4004 = vpop.f32.mrb[0].mxu0
    %v4005 = vadd.f32 %v3460, %v4004
    %v4006 = vpop.f32.mrb[0].mxu0
    %v4007 = vadd.f32 %v3462, %v4006
    %4008 = vmatprep.mubr.f32.mxu0 0.0
    %v4009 = vand.u32 %v95, 4294901760
    %4010 = vmatmul.mubr.f32.gmra.mrb[0].mxu0 %v4009
    %v4011 = vpop.f32.mrb[0].mxu0
    %v4012 = vadd.f32 %v3467, %v4011
    %v4013 = vpop.f32.mrb[0].mxu0
    %v4014 = vadd.f32 %v3469, %v4013
    %4015 = vmatprep.mubr.f32.mxu0 0.0
    %v4016 = vand.u32 %v96, 4294901760
    %4017 = vmatmul.mubr.f32.gmra.mrb[0].mxu0 %v4016
    %v4018 = vpop.f32.mrb[0].mxu0
    %v4019 = vadd.f32 %v3474, %v4018
    %v4020 = vpop.f32.mrb[0].mxu0
    %v4021 = vadd.f32 %v3476, %v4020
    %4022 = vmatprep.mubr.f32.mxu0 0.0
    %v4023 = vand.u32 %v97, 4294901760
    %4024 = vmatmul.mubr.f32.gmra.mrb[0].mxu0 %v4023
    %v4025 = vpop.f32.mrb[0].mxu0
    %v4026 = vadd.f32 %v3481, %v4025
    %v4027 = vpop.f32.mrb[0].mxu0
    %v4028 = vadd.f32 %v3483, %v4027
    %4029 = vmatprep.mubr.f32.mxu0 0.0
    %v4030 = vand.u32 %v98, 4294901760
    %4031 = vmatmul.mubr.f32.gmra.mrb[0].mxu0 %v4030
    %v4032 = vpop.f32.mrb[0].mxu0
    %v4033 = vadd.f32 %v3488, %v4032
    %v4034 = vpop.f32.mrb[0].mxu0
    %v4035 = vadd.f32 %v3490, %v4034
    %4036 = vmatprep.mubr.f32.mxu0 0.0
    %v4037 = vand.u32 %v99, 4294901760
    %4038 = vmatmul.mubr.f32.gmra.mrb[0].mxu0 %v4037
    %v4039 = vpop.f32.mrb[0].mxu0
    %v4040 = vadd.f32 %v3495, %v4039
    %v4041 = vpop.f32.mrb[0].mxu0
    %v4042 = vadd.f32 %v3497, %v4041
    %4043 = vmatprep.mubr.f32.mxu0 0.0
    %v4044 = vand.u32 %v100, 4294901760
    %4045 = vmatmul.mubr.f32.gmra.mrb[0].mxu0 %v4044
    %v4046 = vpop.f32.mrb[0].mxu0
    %v4047 = vadd.f32 %v3502, %v4046
    %v4048 = vpop.f32.mrb[0].mxu0
    %v4049 = vadd.f32 %v3504, %v4048
    %4050 = vmatprep.mubr.f32.mxu0 0.0
    %v4051 = vand.u32 %v101, 4294901760
    %4052 = vmatmul.mubr.f32.gmra.mrb[0].mxu0 %v4051
    %v4053 = vpop.f32.mrb[0].mxu0
    %v4054 = vadd.f32 %v3509, %v4053
    %v4055 = vpop.f32.mrb[0].mxu0
    %v4056 = vadd.f32 %v3511, %v4055
    %4057 = vmatprep.mubr.f32.mxu0 0.0
    %v4058 = vand.u32 %v102, 4294901760
    %4059 = vmatmul.mubr.f32.gmra.mrb[0].mxu0 %v4058
    %v4060 = vpop.f32.mrb[0].mxu0
    %v4061 = vadd.f32 %v3516, %v4060
    %v4062 = vpop.f32.mrb[0].mxu0
    %v4063 = vadd.f32 %v3518, %v4062
    %4064 = vmatprep.mubr.f32.mxu0 0.0
    %v4065 = vand.u32 %v103, 4294901760
    %4066 = vmatmul.mubr.f32.gmra.mrb[0].mxu0 %v4065
    %v4067 = vpop.f32.mrb[0].mxu0
    %v4068 = vadd.f32 %v3523, %v4067
    %v4069 = vpop.f32.mrb[0].mxu0
    %v4070 = vadd.f32 %v3525, %v4069
    %4071 = vmatprep.mubr.f32.mxu0 0.0
    %v4072 = vand.u32 %v104, 4294901760
    %4073 = vmatmul.mubr.f32.gmra.mrb[0].mxu0 %v4072
    %v4074 = vpop.f32.mrb[0].mxu0
    %v4075 = vadd.f32 %v3530, %v4074
    %v4076 = vpop.f32.mrb[0].mxu0
    %v4077 = vadd.f32 %v3532, %v4076
    %4078 = vmatprep.mubr.f32.mxu0 0.0
    %v4079 = vand.u32 %v105, 4294901760
    %4080 = vmatmul.mubr.f32.gmra.mrb[0].mxu0 %v4079
    %v4081 = vpop.f32.mrb[0].mxu0
    %v4082 = vadd.f32 %v3537, %v4081
    %v4083 = vpop.f32.mrb[0].mxu0
    %v4084 = vadd.f32 %v3539, %v4083
    %4085 = vmatprep.mubr.f32.mxu0 0.0
    %v4086 = vand.u32 %v106, 4294901760
    %4087 = vmatmul.mubr.f32.gmra.mrb[0].mxu0 %v4086
    %v4088 = vpop.f32.mrb[0].mxu0
    %v4089 = vadd.f32 %v3544, %v4088
    %v4090 = vpop.f32.mrb[0].mxu0
    %v4091 = vadd.f32 %v3546, %v4090
    %4092 = vdwg.mxu0
    %4093 = vst [vmem:[#allocation7] sm:$0xff] %v3648
    %4094 = vst [vmem:[#allocation7 + $0x8] sm:$0xff] %v3650
    %4095 = vst [vmem:[#allocation7 + $0x10] sm:$0xff] %v3655
    %4096 = vst [vmem:[#allocation7 + $0x18] sm:$0xff] %v3657
    %4097 = vst [vmem:[#allocation7 + $0x20] sm:$0xff] %v3662
    %4098 = vst [vmem:[#allocation7 + $0x28] sm:$0xff] %v3664
    %4099 = vst [vmem:[#allocation7 + $0x30] sm:$0xff] %v3669
    %4100 = vst [vmem:[#allocation7 + $0x38] sm:$0xff] %v3671
    %4101 = vst [vmem:[#allocation7 + $0x40] sm:$0xff] %v3676
    %4102 = vst [vmem:[#allocation7 + $0x48] sm:$0xff] %v3678
    %4103 = vst [vmem:[#allocation7 + $0x50] sm:$0xff] %v3683
    %4104 = vst [vmem:[#allocation7 + $0x58] sm:$0xff] %v3685
    %4105 = vst [vmem:[#allocation7 + $0x60] sm:$0xff] %v3690
    %4106 = vst [vmem:[#allocation7 + $0x68] sm:$0xff] %v3692
    %4107 = vst [vmem:[#allocation7 + $0x70] sm:$0xff] %v3697
    %4108 = vst [vmem:[#allocation7 + $0x78] sm:$0xff] %v3699
    %4109 = vst [vmem:[#allocation7 + $0x80] sm:$0xff] %v3704
    %4110 = vst [vmem:[#allocation7 + $0x88] sm:$0xff] %v3706
    %4111 = vst [vmem:[#allocation7 + $0x90] sm:$0xff] %v3711
    %4112 = vst [vmem:[#allocation7 + $0x98] sm:$0xff] %v3713
    %4113 = vst [vmem:[#allocation7 + $0xa0] sm:$0xff] %v3718
    %4114 = vst [vmem:[#allocation7 + $0xa8] sm:$0xff] %v3720
    %4115 = vst [vmem:[#allocation7 + $0xb0] sm:$0xff] %v3725
    %4116 = vst [vmem:[#allocation7 + $0xb8] sm:$0xff] %v3727
    %4117 = vst [vmem:[#allocation7 + $0xc0] sm:$0xff] %v3732
    %4118 = vst [vmem:[#allocation7 + $0xc8] sm:$0xff] %v3734
    %4119 = vst [vmem:[#allocation7 + $0xd0] sm:$0xff] %v3739
    %4120 = vst [vmem:[#allocation7 + $0xd8] sm:$0xff] %v3741
    %4121 = vst [vmem:[#allocation7 + $0xe0] sm:$0xff] %v3746
    %4122 = vst [vmem:[#allocation7 + $0xe8] sm:$0xff] %v3748
    %4123 = vst [vmem:[#allocation7 + $0xf0] sm:$0xff] %v3753
    %4124 = vst [vmem:[#allocation7 + $0xf8] sm:$0xff] %v3755
    %4125 = vst [vmem:[#allocation7 + $0x100] sm:$0xff] %v3760
    %4126 = vst [vmem:[#allocation7 + $0x108] sm:$0xff] %v3762
    %4127 = vst [vmem:[#allocation7 + $0x110] sm:$0xff] %v3767
    %4128 = vst [vmem:[#allocation7 + $0x118] sm:$0xff] %v3769
    %4129 = vst [vmem:[#allocation7 + $0x120] sm:$0xff] %v3774
    %4130 = vst [vmem:[#allocation7 + $0x128] sm:$0xff] %v3776
    %4131 = vst [vmem:[#allocation7 + $0x130] sm:$0xff] %v3781
    %4132 = vst [vmem:[#allocation7 + $0x138] sm:$0xff] %v3783
    %4133 = vst [vmem:[#allocation7 + $0x140] sm:$0xff] %v3788
    %4134 = vst [vmem:[#allocation7 + $0x148] sm:$0xff] %v3790
    %4135 = vst [vmem:[#allocation7 + $0x150] sm:$0xff] %v3795
    %4136 = vst [vmem:[#allocation7 + $0x158] sm:$0xff] %v3797
    %4137 = vst [vmem:[#allocation7 + $0x160] sm:$0xff] %v3802
    %4138 = vst [vmem:[#allocation7 + $0x168] sm:$0xff] %v3804
    %4139 = vst [vmem:[#allocation7 + $0x170] sm:$0xff] %v3809
    %4140 = vst [vmem:[#allocation7 + $0x178] sm:$0xff] %v3811
    %4141 = vst [vmem:[#allocation7 + $0x180] sm:$0xff] %v3816
    %4142 = vst [vmem:[#allocation7 + $0x188] sm:$0xff] %v3818
    %4143 = vst [vmem:[#allocation7 + $0x190] sm:$0xff] %v3823
    %4144 = vst [vmem:[#allocation7 + $0x198] sm:$0xff] %v3825
    %4145 = vst [vmem:[#allocation7 + $0x1a0] sm:$0xff] %v3830
    %4146 = vst [vmem:[#allocation7 + $0x1a8] sm:$0xff] %v3832
    %4147 = vst [vmem:[#allocation7 + $0x1b0] sm:$0xff] %v3837
    %4148 = vst [vmem:[#allocation7 + $0x1b8] sm:$0xff] %v3839
    %4149 = vst [vmem:[#allocation7 + $0x1c0] sm:$0xff] %v3844
    %4150 = vst [vmem:[#allocation7 + $0x1c8] sm:$0xff] %v3846
    %4151 = vst [vmem:[#allocation7 + $0x1d0] sm:$0xff] %v3851
    %4152 = vst [vmem:[#allocation7 + $0x1d8] sm:$0xff] %v3853
    %4153 = vst [vmem:[#allocation7 + $0x1e0] sm:$0xff] %v3858
    %4154 = vst [vmem:[#allocation7 + $0x1e8] sm:$0xff] %v3860
    %4155 = vst [vmem:[#allocation7 + $0x1f0] sm:$0xff] %v3865
    %4156 = vst [vmem:[#allocation7 + $0x1f8] sm:$0xff] %v3867
    %4157 = vst [vmem:[#allocation7 + $0x200] sm:$0xff] %v3872
    %4158 = vst [vmem:[#allocation7 + $0x208] sm:$0xff] %v3874
    %4159 = vst [vmem:[#allocation7 + $0x210] sm:$0xff] %v3879
    %4160 = vst [vmem:[#allocation7 + $0x218] sm:$0xff] %v3881
    %4161 = vst [vmem:[#allocation7 + $0x220] sm:$0xff] %v3886
    %4162 = vst [vmem:[#allocation7 + $0x228] sm:$0xff] %v3888
    %4163 = vst [vmem:[#allocation7 + $0x230] sm:$0xff] %v3893
    %4164 = vst [vmem:[#allocation7 + $0x238] sm:$0xff] %v3895
    %4165 = vst [vmem:[#allocation7 + $0x240] sm:$0xff] %v3900
    %4166 = vst [vmem:[#allocation7 + $0x248] sm:$0xff] %v3902
    %4167 = vst [vmem:[#allocation7 + $0x250] sm:$0xff] %v3907
    %4168 = vst [vmem:[#allocation7 + $0x258] sm:$0xff] %v3909
    %4169 = vst [vmem:[#allocation7 + $0x260] sm:$0xff] %v3914
    %4170 = vst [vmem:[#allocation7 + $0x268] sm:$0xff] %v3916
    %4171 = vst [vmem:[#allocation7 + $0x270] sm:$0xff] %v3921
    %4172 = vst [vmem:[#allocation7 + $0x278] sm:$0xff] %v3923
    %4173 = vst [vmem:[#allocation7 + $0x280] sm:$0xff] %v3928
    %4174 = vst [vmem:[#allocation7 + $0x288] sm:$0xff] %v3930
    %4175 = vst [vmem:[#allocation7 + $0x290] sm:$0xff] %v3935
    %4176 = vst [vmem:[#allocation7 + $0x298] sm:$0xff] %v3937
    %4177 = vst [vmem:[#allocation7 + $0x2a0] sm:$0xff] %v3942
    %4178 = vst [vmem:[#allocation7 + $0x2a8] sm:$0xff] %v3944
    %4179 = vst [vmem:[#allocation7 + $0x2b0] sm:$0xff] %v3949
    %4180 = vst [vmem:[#allocation7 + $0x2b8] sm:$0xff] %v3951
    %4181 = vst [vmem:[#allocation7 + $0x2c0] sm:$0xff] %v3956
    %4182 = vst [vmem:[#allocation7 + $0x2c8] sm:$0xff] %v3958
    %4183 = vst [vmem:[#allocation7 + $0x2d0] sm:$0xff] %v3963
    %4184 = vst [vmem:[#allocation7 + $0x2d8] sm:$0xff] %v3965
    %4185 = vst [vmem:[#allocation7 + $0x2e0] sm:$0xff] %v3970
    %4186 = vst [vmem:[#allocation7 + $0x2e8] sm:$0xff] %v3972
    %4187 = vst [vmem:[#allocation7 + $0x2f0] sm:$0xff] %v3977
    %4188 = vst [vmem:[#allocation7 + $0x2f8] sm:$0xff] %v3979
    %4189 = vst [vmem:[#allocation7 + $0x300] sm:$0xff] %v3984
    %4190 = vst [vmem:[#allocation7 + $0x308] sm:$0xff] %v3986
    %4191 = vst [vmem:[#allocation7 + $0x310] sm:$0xff] %v3991
    %4192 = vst [vmem:[#allocation7 + $0x318] sm:$0xff] %v3993
    %4193 = vst [vmem:[#allocation7 + $0x320] sm:$0xff] %v3998
    %4194 = vst [vmem:[#allocation7 + $0x328] sm:$0xff] %v4000
    %4195 = vst [vmem:[#allocation7 + $0x330] sm:$0xff] %v4005
    %4196 = vst [vmem:[#allocation7 + $0x338] sm:$0xff] %v4007
    %4197 = vst [vmem:[#allocation7 + $0x340] sm:$0xff] %v4012
    %4198 = vst [vmem:[#allocation7 + $0x348] sm:$0xff] %v4014
    %4199 = vst [vmem:[#allocation7 + $0x350] sm:$0xff] %v4019
    %4200 = vst [vmem:[#allocation7 + $0x358] sm:$0xff] %v4021
    %4201 = vst [vmem:[#allocation7 + $0x360] sm:$0xff] %v4026
    %4202 = vst [vmem:[#allocation7 + $0x368] sm:$0xff] %v4028
    %4203 = vst [vmem:[#allocation7 + $0x370] sm:$0xff] %v4033
    %4204 = vst [vmem:[#allocation7 + $0x378] sm:$0xff] %v4035
    %4205 = vst [vmem:[#allocation7 + $0x380] sm:$0xff] %v4040
    %4206 = vst [vmem:[#allocation7 + $0x388] sm:$0xff] %v4042
    %4207 = vst [vmem:[#allocation7 + $0x390] sm:$0xff] %v4047
    %4208 = vst [vmem:[#allocation7 + $0x398] sm:$0xff] %v4049
    %4209 = vst [vmem:[#allocation7 + $0x3a0] sm:$0xff] %v4054
    %4210 = vst [vmem:[#allocation7 + $0x3a8] sm:$0xff] %v4056
    %4211 = vst [vmem:[#allocation7 + $0x3b0] sm:$0xff] %v4061
    %4212 = vst [vmem:[#allocation7 + $0x3b8] sm:$0xff] %v4063
    %4213 = vst [vmem:[#allocation7 + $0x3c0] sm:$0xff] %v4068
    %4214 = vst [vmem:[#allocation7 + $0x3c8] sm:$0xff] %v4070
    %4215 = vst [vmem:[#allocation7 + $0x3d0] sm:$0xff] %v4075
    %4216 = vst [vmem:[#allocation7 + $0x3d8] sm:$0xff] %v4077
    %4217 = vst [vmem:[#allocation7 + $0x3e0] sm:$0xff] %v4082
    %4218 = vst [vmem:[#allocation7 + $0x3e8] sm:$0xff] %v4084
    %4219 = vst [vmem:[#allocation7 + $0x3f0] sm:$0xff] %v4089
    %4220 = vst [vmem:[#allocation7 + $0x3f8] sm:$0xff] %v4091
    // Predicated region
    $region22: #{tpu_custom_call.1} parent=1 // pred_check
      _
    $region23: #{tpu_custom_call.1} parent=1 // pred_check_branch
      %4222 = sbr.rel (0) target = $region25
    $region24: #{tpu_custom_call.1} parent=1 // pred_region
      %s4224 = ssub.s32 16384, 16384
      %4225 = vsyncadd [#allocation4], %s4224
      %s4226 = sshll.u32 [#allocation7], 4
      %s4227 = int_to_ptr.vmem [resolvable:$true] %s4226
      %4232 = dma.vmem_to_hbm [thread:$0]  %s4227, 16384, %s3, [#allocation4], 256, 256, 16
    $region25: #{tpu_custom_call.1} parent=1 // pred_fallthru
      _
    // Predicated region
    $region26: #{tpu_custom_call.1} parent=1 // pred_check
      _
    $region27: #{tpu_custom_call.1} parent=1 // pred_check_branch
      %4234 = sbr.rel (0) target = $region29
    $region28: #{tpu_custom_call.1} parent=1 // pred_region
      %4235 = dma.done [#allocation4], 16384
    $region29: #{tpu_custom_call.1} parent=1 // pred_fallthru
      _
    %4236 = vsyncpa [#allocation3], 1
    %4237 = vsyncpa [#allocation6], 1
    %4238 = vsyncpa [#allocation4], 1

</llo_original>
